<compile_context>
chip_gen: v6e
topology: v6e:2x2x1
jax: 0.10.0
libtpu: 0.0.40
codegen_flags: <defaults>
</compile_context>

<pallas_src>
import math
import functools

import jax
import jax.numpy as jnp
from jax import lax
from jax.experimental import pallas as pl
from jax.experimental.pallas import tpu as pltpu

_LN_EPS = 1e-5
_MXU_DTYPE = jnp.bfloat16   # dtype for the GRU input-projection matmul


def _block_diag(w, b):
    """[din, dout] -> [b*din, b*dout] block-diagonal (batch-parallel weights)."""
    din, dout = w.shape
    eye = jnp.eye(b, dtype=w.dtype)
    return (eye[:, None, :, None] * w[None, :, None, :]).reshape(b * din, b * dout)


def _state_tracker_kernel(sc_ref, src_ref, pe_ref, rowp_ref, sel_ref, selt_ref,
                          dft_ref, idft_ref, wi_ref, wh_ref, bias_ref,
                          whead_ref, bhead_ref, out_ref,
                          *, B, L, F, Fp, C, H, S):
    del S  # output width comes from whead/bhead shapes
    f32 = jnp.float32
    BC = B * C
    BH = B * H
    BIG = f32(1e30)

    rowp = rowp_ref[...]                                   # [6, BC]
    gamma, beta = rowp[0:1, :], rowp[1:2, :]
    cwr, cwi = rowp[2:3, :], rowp[3:4, :]
    cwhr, cwhi = rowp[4:5, :], rowp[5:6, :]
    sel = sel_ref[...]                                     # [BC, B]
    sel_t = selt_ref[...]                                  # [B, BC]

    # ---- 1. scale + positional encoding --------------------------------
    # TODO(synk): nn.Dropout layers are treated as eval-mode identity; train
    # mode would need pltpu.prng_* in-kernel.
    x = src_ref[...] * (C ** 0.5) + pe_ref[...]            # [L, BC]

    # ---- 2. LayerNorm over C per (t, b): segment mean/var via selector
    #         matmuls (keeps the [L, B*C] lane layout, uses MXU slack) -----
    inv_c = 1.0 / C
    mu = jnp.dot(x, sel, preferred_element_type=f32) * inv_c           # [L, B]
    xc = x - jnp.dot(mu, sel_t, preferred_element_type=f32)            # [L, BC]
    var = jnp.dot(xc * xc, sel, preferred_element_type=f32) * inv_c    # [L, B]
    rstd = lax.rsqrt(var + _LN_EPS)
    xn = xc * jnp.dot(rstd, sel_t, preferred_element_type=f32) * gamma + beta

    # ---- 3. rfft(norm='ortho') over time as ONE [2Fp, L] x [L, BC] matmul;
    #         real rows 0..F-1, imag rows Fp..Fp+F-1 (sublane aligned) -----
    xf = jnp.dot(dft_ref[...], xn, preferred_element_type=f32)         # [2Fp, BC]
    xr = xf[:Fp, :]
    xi = xf[Fp:, :]

    # ---- 4. adaptive high-freq mask: per-batch torch lower median + global
    #         torch.quantile(linear) via rank-count order statistics -------
    sq = xr * xr + xi * xi                                             # [Fp, BC]
    e_fb = jnp.dot(sq, sel, preferred_element_type=f32)                # [Fp, B]
    row_valid = lax.broadcasted_iota(jnp.int32, (Fp, 1), 0) < F        # [Fp, 1]
    e_q = jnp.where(row_valid, e_fb, BIG)                              # [Fp, B]
    # per-batch lower median = k-th smallest, k = (F-1)//2
    lt_m = (e_q[None, :, :] < e_q[:, None, :]).astype(f32)             # [Fp,Fp,B]
    cnt_m = jnp.sum(lt_m, axis=1)                                      # [Fp, B]
    k_med = float((F - 1) // 2)
    med = jnp.max(jnp.where(cnt_m <= k_med, e_q, -BIG),
                  axis=0, keepdims=True)                               # [1, B]
    norm = e_fb / (med + 1e-6)                                         # [Fp, B]
    # global quantile over the B*F valid normalized energies
    nq = jnp.where(row_valid, norm, BIG)                               # [Fp, B]
    g_lt = (nq[None, None, :, :] < nq[:, :, None, None]).astype(f32)   # [Fp,B,Fp,B]
    g_cnt = jnp.sum(jnp.sum(g_lt, axis=3), axis=2)                     # [Fp, B]
    q_lo = sc_ref[0]
    q_hi = sc_ref[1]
    q_frac = sc_ref[2]
    v_lo = jnp.max(jnp.max(jnp.where(g_cnt <= q_lo, nq, -BIG),
                           axis=1, keepdims=True), axis=0, keepdims=True)
    v_hi = jnp.max(jnp.max(jnp.where(g_cnt <= q_hi, nq, -BIG),
                           axis=1, keepdims=True), axis=0, keepdims=True)
    thr = v_lo * (1.0 - q_frac) + v_hi * q_frac                        # [1, 1]
    mask_fb = (norm < thr).astype(f32)                                 # [Fp, B]
    mask_e = jnp.dot(mask_fb, sel_t, preferred_element_type=f32)       # [Fp, BC]

    # ---- 5. complex weighting + masked high-frequency branch ------------
    yr = xr * cwr - xi * cwi + mask_e * (xr * cwhr - xi * cwhi)
    yi = xr * cwi + xi * cwr + mask_e * (xr * cwhi + xi * cwhr)
    y = jnp.concatenate([yr, yi], axis=0)                              # [2Fp, BC]

    # ---- 6. irfft(norm='ortho', n=L) as ONE [L, 2Fp] x [2Fp, BC] matmul -
    xa = jnp.dot(idft_ref[...], y, preferred_element_type=f32)         # [L, BC]

    # ---- 7. GRU input projections: 3 per-gate dots (block-diag over batch,
    #         so gate math never slices unaligned lanes), biases hoisted ---
    bias = bias_ref[...]                                               # [4, BH]
    xa_m = xa.astype(_MXU_DTYPE)
    xg_r = jnp.dot(xa_m, wi_ref[0], preferred_element_type=f32) + bias[0:1, :]
    xg_z = jnp.dot(xa_m, wi_ref[1], preferred_element_type=f32) + bias[1:2, :]
    xg_n = jnp.dot(xa_m, wi_ref[2], preferred_element_type=f32) + bias[2:3, :]
    b_hn = bias[3:4, :]
    w_hr = wh_ref[0]
    w_hz = wh_ref[1]
    w_hn = wh_ref[2]                                                   # [BH, BH]

    # ---- 8. GRU recurrence (PyTorch gates r, z, n; h0 = 0); hidden state
    #         kept lane-flat [1, B*H]; static unroll keeps every per-step
    #         slice static and the projections in vregs (no VMEM scratch) --
    # TODO(synk): for L >~ 32 spill xg_* to a VMEM scratch and switch to
    # lax.fori_loop(..., unroll=4) to bound code size / vreg live ranges.
    h = jnp.zeros((1, BH), f32)
    for t in range(L):
        r = jax.nn.sigmoid(xg_r[t:t + 1, :] +
                           jnp.dot(h, w_hr, preferred_element_type=f32))
        z = jax.nn.sigmoid(xg_z[t:t + 1, :] +
                           jnp.dot(h, w_hz, preferred_element_type=f32))
        n = jnp.tanh(xg_n[t:t + 1, :] +
                     r * (jnp.dot(h, w_hn, preferred_element_type=f32) + b_hn))
        h = (1.0 - z) * n + z * h

    # ---- 9. fused (fc -> decoder) head on the last hidden state ---------
    out_ref[...] = (jnp.dot(h, whead_ref[...], preferred_element_type=f32)
                    + bhead_ref[...])                                  # [1, B*S]


def state_tracker_transformer_forward(src0, src_mask, params):
    # src_mask is accepted for signature parity with the PyTorch module; the
    # reference forward never uses it.
    del src_mask
    L, B, C = src0.shape
    F = L // 2 + 1
    Fp = ((F + 7) // 8) * 8          # sublane-aligned frequency count
    H = params["w_hr_T"].shape[0]
    S = params["w_dec_T"].shape[1]
    f32 = jnp.float32

    # -- rfft / irfft (ortho) as matmuls, freq rows/cols padded to Fp -------
    n_idx = jnp.arange(L, dtype=f32)
    f_idx = jnp.arange(F, dtype=f32)
    ang = 2.0 * math.pi * f_idx[:, None] * n_idx[None, :] / L           # [F, L]
    inv_sqrt_l = 1.0 / math.sqrt(L)
    dft_pad = jnp.zeros((2 * Fp, L), f32)
    dft_pad = dft_pad.at[:F].set(jnp.cos(ang) * inv_sqrt_l)
    dft_pad = dft_pad.at[Fp:Fp + F].set(-jnp.sin(ang) * inv_sqrt_l)
    wgt = jnp.array([1.0 if (f == 0 or (L % 2 == 0 and f == L // 2)) else 2.0
                     for f in range(F)], f32)
    idft_pad = jnp.zeros((L, 2 * Fp), f32)
    idft_pad = idft_pad.at[:, :F].set(wgt[None, :] * jnp.cos(ang).T * inv_sqrt_l)
    idft_pad = idft_pad.at[:, Fp:Fp + F].set(-wgt[None, :] * jnp.sin(ang).T * inv_sqrt_l)

    # -- activations / consolidated parameter slabs (lane layout b*C+c) -----
    src2 = src0.reshape(L, B * C).astype(f32)                           # [L, B*C]
    pe_t = jnp.tile(params["pe"][:L].astype(f32), (1, B))               # [L, B*C]
    rowp = jnp.concatenate([
        jnp.tile(params["ln_gamma"], (1, B)),
        jnp.tile(params["ln_beta"], (1, B)),
        jnp.tile(params["cw_r"], (1, B)),
        jnp.tile(params["cw_i"], (1, B)),
        jnp.tile(params["cwh_r"], (1, B)),
        jnp.tile(params["cwh_i"], (1, B)),
    ], axis=0).astype(f32)                                              # [6, B*C]
    sel = jnp.repeat(jnp.eye(B, dtype=f32), C, axis=0)                  # [B*C, B]
    sel_t = sel.T                                                       # [B, B*C]

    wi = jnp.stack([_block_diag(params["w_ir_T"].astype(f32), B),
                    _block_diag(params["w_iz_T"].astype(f32), B),
                    _block_diag(params["w_in_T"].astype(f32), B)],
                   axis=0).astype(_MXU_DTYPE)                           # [3, B*C, B*H]
    wh = jnp.stack([_block_diag(params["w_hr_T"].astype(f32), B),
                    _block_diag(params["w_hz_T"].astype(f32), B),
                    _block_diag(params["w_hn_T"].astype(f32), B)],
                   axis=0)                                              # [3, B*H, B*H]
    bias = jnp.concatenate([
        jnp.tile(params["b_ir"] + params["b_hr"], (1, B)),
        jnp.tile(params["b_iz"] + params["b_hz"], (1, B)),
        jnp.tile(params["b_in"], (1, B)),
        jnp.tile(params["b_hn"], (1, B)),
    ], axis=0).astype(f32)                                              # [4, B*H]

    # exact algebraic fold of fc(H->C) followed by decoder(C->S)
    w_head = jnp.dot(params["w_fc_T"], params["w_dec_T"])               # [H, S]
    b_head = jnp.dot(params["b_fc"], params["w_dec_T"]) + params["b_dec"]
    w_head_blk = _block_diag(w_head.astype(f32), B)                     # [B*H, B*S]
    b_head_t = jnp.tile(b_head.astype(f32), (1, B))                     # [1, B*S]

    # torch.quantile(q, interpolation='linear') index scalars (runtime q)
    n_valid = B * F
    q = jnp.reshape(params["threshold_param"], ()).astype(f32)
    pos = q * (n_valid - 1)
    q_lo = jnp.clip(jnp.floor(pos), 0.0, float(n_valid - 1))
    q_hi = jnp.minimum(q_lo + 1.0, float(n_valid - 1))
    q_frac = pos - q_lo
    scal = jnp.stack([q_lo, q_hi, q_frac]).astype(f32)                  # (3,)

    BC, BH, BS = B * C, B * H, B * S
    flops = int(2 * (2 * Fp) * L * BC * 2        # DFT + iDFT
                + 3 * 2 * L * BC * BH            # GRU input projections
                + L * 3 * 2 * BH * BH            # GRU recurrence
                + 2 * BH * BS                    # fused head
                + 5 * 2 * L * BC * B             # LayerNorm selector matmuls
                + (Fp * B) ** 2 + Fp * Fp * B)   # median/quantile rank counts
    bytes_accessed = int(4 * (2 * L * BC + 6 * BC + 2 * BC * B + 2 * Fp * L
                              + L * 2 * Fp + 3 * BH * BH + 4 * BH
                              + BH * BS + 2 * BS + 3)
                         + 2 * 3 * BC * BH)
    cost = pl.CostEstimate(flops=flops, transcendentals=int(3 * L * BH),
                           bytes_accessed=bytes_accessed)

    kernel = functools.partial(_state_tracker_kernel, B=B, L=L, F=F, Fp=Fp,
                               C=C, H=H, S=S)
    vmem = pltpu.MemorySpace.VMEM
    smem = pltpu.MemorySpace.SMEM
    # Gridless: the global quantile couples batches (single TensorCore).
    # TODO(synk): v7x 2-TC split = batch-parallel grid + cross-core threshold
    # combine (per-core partial rank counts).
    out_flat = pl.pallas_call(
        kernel,
        out_shape=jax.ShapeDtypeStruct((1, B * S), f32),
        in_specs=[pl.BlockSpec(memory_space=smem)] +
                 [pl.BlockSpec(memory_space=vmem)] * 12,
        out_specs=pl.BlockSpec(memory_space=vmem),
        compiler_params=pltpu.CompilerParams(
            vmem_limit_bytes=32 * 1024 * 1024),
        cost_estimate=cost,
    )(scal, src2, pe_t, rowp, sel, sel_t, dft_pad, idft_pad,
      wi, wh, bias, w_head_blk, b_head_t)
    return out_flat.reshape(B, S)


def init_params(key, *, dim_model, d_hid, dim_state, max_turn=100):
    """Deterministic synthetic init matching the shapes used in the torch forward."""
    C, H, S = dim_model, d_hid, dim_state
    ks = jax.random.split(key, 12)
    p = {}
    # Adaptive_Spectral_Block: complex weights ~ N(0, 0.02^2)
    cw = jax.random.normal(ks[0], (C, 2), jnp.float32) * 0.02
    cwh = jax.random.normal(ks[1], (C, 2), jnp.float32) * 0.02
    p["cw_r"], p["cw_i"] = cw[:, 0][None, :], cw[:, 1][None, :]
    p["cwh_r"], p["cwh_i"] = cwh[:, 0][None, :], cwh[:, 1][None, :]
    p["threshold_param"] = jax.random.uniform(ks[2], (), jnp.float32) * 0.5
    # StateGRU.norm1 (LayerNorm)
    p["ln_gamma"] = jnp.ones((1, C), jnp.float32)
    p["ln_beta"] = jnp.zeros((1, C), jnp.float32)
    # nn.GRU default init U(-1/sqrt(H), 1/sqrt(H)); gate order r, z, n
    bound = 1.0 / math.sqrt(H)
    w_ih = jax.random.uniform(ks[3], (3 * H, C), jnp.float32, -bound, bound)
    w_hh = jax.random.uniform(ks[4], (3 * H, H), jnp.float32, -bound, bound)
    b_ih = jax.random.uniform(ks[5], (3 * H,), jnp.float32, -bound, bound)
    b_hh = jax.random.uniform(ks[6], (3 * H,), jnp.float32, -bound, bound)
    p["w_ir_T"], p["w_iz_T"], p["w_in_T"] = (w_ih[0:H].T, w_ih[H:2 * H].T, w_ih[2 * H:3 * H].T)
    p["w_hr_T"], p["w_hz_T"], p["w_hn_T"] = (w_hh[0:H].T, w_hh[H:2 * H].T, w_hh[2 * H:3 * H].T)
    p["b_ir"], p["b_iz"], p["b_in"] = (b_ih[0:H][None], b_ih[H:2 * H][None], b_ih[2 * H:3 * H][None])
    p["b_hr"], p["b_hz"], p["b_hn"] = (b_hh[0:H][None], b_hh[H:2 * H][None], b_hh[2 * H:3 * H][None])
    # StateGRU.fc: Linear(H, C)
    fb = 1.0 / math.sqrt(H)
    p["w_fc_T"] = jax.random.uniform(ks[7], (C, H), jnp.float32, -fb, fb).T       # [H,C]
    p["b_fc"] = jax.random.uniform(ks[8], (1, C), jnp.float32, -fb, fb)
    # decoder: Linear(C, S); init_weights(): weight U(-0.1, 0.1), bias zero
    p["w_dec_T"] = jax.random.uniform(ks[9], (S, C), jnp.float32, -0.1, 0.1).T    # [C,S]
    p["b_dec"] = jnp.zeros((1, S), jnp.float32)
    # PositionalEncoding buffer, max_len = MAX_TURN + 1, stored as [max_len, C]
    max_len = max_turn + 1
    position = jnp.arange(max_len, dtype=jnp.float32)[:, None]
    div_term = jnp.exp(jnp.arange(0, C, 2, dtype=jnp.float32) * (-math.log(10000.0) / C))
    pe = jnp.zeros((max_len, C), jnp.float32)
    pe = pe.at[:, 0::2].set(jnp.sin(position * div_term))
    pe = pe.at[:, 1::2].set(jnp.cos(position * div_term))
    p["pe"] = pe
    return p


if __name__ == "__main__":
    SEQ_LEN, BATCH = 8, 2
    DIM_MODEL, D_HID, DIM_STATE = 32, 32, 8

    key = jax.random.PRNGKey(0)
    k_param, k_src = jax.random.split(key)
    params = init_params(k_param, dim_model=DIM_MODEL, d_hid=D_HID,
                         dim_state=DIM_STATE)

    src0 = jax.random.normal(k_src, (SEQ_LEN, BATCH, DIM_MODEL), jnp.float32)
    # causal mask as built in build_state (unused by the reference forward)
    src_mask = jnp.where(
        jnp.triu(jnp.ones((SEQ_LEN, SEQ_LEN), jnp.float32), k=1) > 0,
        -jnp.inf, 0.0)

    fwd = jax.jit(state_tracker_transformer_forward)
    s_t = fwd(src0, src_mask, params)
    s_t = jax.block_until_ready(s_t)

    assert s_t.shape == (BATCH, DIM_STATE)
    assert bool(jnp.all(jnp.isfinite(s_t)))
    print("KERNEL_OK")
</pallas_src>

<mosaic_0001>
module attributes {stable_mosaic.version = 11 : i64} {
  func.func @_state_tracker_kernel(%arg0: memref<3xf32, #tpu.memory_space<smem>>, %arg1: memref<8x64xf32, #tpu.memory_space<vmem>>, %arg2: memref<8x64xf32, #tpu.memory_space<vmem>>, %arg3: memref<6x64xf32, #tpu.memory_space<vmem>>, %arg4: memref<64x2xf32, #tpu.memory_space<vmem>>, %arg5: memref<2x64xf32, #tpu.memory_space<vmem>>, %arg6: memref<16x8xf32, #tpu.memory_space<vmem>>, %arg7: memref<8x16xf32, #tpu.memory_space<vmem>>, %arg8: memref<3x64x64xbf16, #tpu.memory_space<vmem>>, %arg9: memref<3x64x64xf32, #tpu.memory_space<vmem>>, %arg10: memref<4x64xf32, #tpu.memory_space<vmem>>, %arg11: memref<64x16xf32, #tpu.memory_space<vmem>>, %arg12: memref<1x16xf32, #tpu.memory_space<vmem>>, %arg13: memref<1x16xf32, #tpu.memory_space<vmem>>) attributes {dimension_semantics = [], scalar_prefetch = 0 : i64, scratch_operands = 0 : i64, tpu.core_type = #tpu.core_type<tc>} {
    %c0 = arith.constant 0 : index
    %c0_0 = arith.constant 0 : index
    %0 = vector.load %arg3[%c0, %c0_0] : memref<6x64xf32, #tpu.memory_space<vmem>>, vector<6x64xf32>
    %1 = vector.extract_strided_slice %0 {offsets = [0, 0], sizes = [1, 64], strides = [1, 1]} : vector<6x64xf32> to vector<1x64xf32>
    %2 = vector.extract_strided_slice %0 {offsets = [1, 0], sizes = [1, 64], strides = [1, 1]} : vector<6x64xf32> to vector<1x64xf32>
    %3 = vector.extract_strided_slice %0 {offsets = [2, 0], sizes = [1, 64], strides = [1, 1]} : vector<6x64xf32> to vector<1x64xf32>
    %4 = vector.extract_strided_slice %0 {offsets = [3, 0], sizes = [1, 64], strides = [1, 1]} : vector<6x64xf32> to vector<1x64xf32>
    %5 = vector.extract_strided_slice %0 {offsets = [4, 0], sizes = [1, 64], strides = [1, 1]} : vector<6x64xf32> to vector<1x64xf32>
    %6 = vector.extract_strided_slice %0 {offsets = [5, 0], sizes = [1, 64], strides = [1, 1]} : vector<6x64xf32> to vector<1x64xf32>
    %c0_1 = arith.constant 0 : index
    %c0_2 = arith.constant 0 : index
    %7 = vector.load %arg4[%c0_1, %c0_2] : memref<64x2xf32, #tpu.memory_space<vmem>>, vector<64x2xf32>
    %c0_3 = arith.constant 0 : index
    %c0_4 = arith.constant 0 : index
    %8 = vector.load %arg5[%c0_3, %c0_4] : memref<2x64xf32, #tpu.memory_space<vmem>>, vector<2x64xf32>
    %c0_5 = arith.constant 0 : index
    %c0_6 = arith.constant 0 : index
    %9 = vector.load %arg1[%c0_5, %c0_6] : memref<8x64xf32, #tpu.memory_space<vmem>>, vector<8x64xf32>
    %cst = arith.constant 5.65685415 : f32
    %10 = vector.broadcast %cst : f32 to vector<8x64xf32>
    %11 = arith.mulf %9, %10 : vector<8x64xf32>
    %c0_7 = arith.constant 0 : index
    %c0_8 = arith.constant 0 : index
    %12 = vector.load %arg2[%c0_7, %c0_8] : memref<8x64xf32, #tpu.memory_space<vmem>>, vector<8x64xf32>
    %13 = arith.addf %11, %12 : vector<8x64xf32>
    %cst_9 = arith.constant dense<0.000000e+00> : vector<8x2xf32>
    %14 = tpu.matmul %13, %7, %cst_9 {dimension_numbers = #tpu.dot_dimension_numbers<[1], [0], [0], [1], [0, 0, 1, 1], [], []>} : vector<8x64xf32>, vector<64x2xf32>, vector<8x2xf32> -> vector<8x2xf32>
    %cst_10 = arith.constant 3.125000e-02 : f32
    %15 = vector.broadcast %cst_10 : f32 to vector<8x2xf32>
    %16 = arith.mulf %14, %15 : vector<8x2xf32>
    %cst_11 = arith.constant dense<0.000000e+00> : vector<8x64xf32>
    %17 = tpu.matmul %16, %8, %cst_11 {dimension_numbers = #tpu.dot_dimension_numbers<[1], [0], [0], [1], [0, 0, 1, 1], [], []>} : vector<8x2xf32>, vector<2x64xf32>, vector<8x64xf32> -> vector<8x64xf32>
    %18 = arith.subf %13, %17 : vector<8x64xf32>
    %19 = arith.mulf %18, %18 : vector<8x64xf32>
    %cst_12 = arith.constant dense<0.000000e+00> : vector<8x2xf32>
    %20 = tpu.matmul %19, %7, %cst_12 {dimension_numbers = #tpu.dot_dimension_numbers<[1], [0], [0], [1], [0, 0, 1, 1], [], []>} : vector<8x64xf32>, vector<64x2xf32>, vector<8x2xf32> -> vector<8x2xf32>
    %cst_13 = arith.constant 3.125000e-02 : f32
    %21 = vector.broadcast %cst_13 : f32 to vector<8x2xf32>
    %22 = arith.mulf %20, %21 : vector<8x2xf32>
    %cst_14 = arith.constant 9.99999974E-6 : f32
    %23 = vector.broadcast %cst_14 : f32 to vector<8x2xf32>
    %24 = arith.addf %22, %23 : vector<8x2xf32>
    %25 = math.rsqrt %24 : vector<8x2xf32>
    %cst_15 = arith.constant dense<0.000000e+00> : vector<8x64xf32>
    %26 = tpu.matmul %25, %8, %cst_15 {dimension_numbers = #tpu.dot_dimension_numbers<[1], [0], [0], [1], [0, 0, 1, 1], [], []>} : vector<8x2xf32>, vector<2x64xf32>, vector<8x64xf32> -> vector<8x64xf32>
    %27 = arith.mulf %18, %26 : vector<8x64xf32>
    %28 = vector.broadcast %1 : vector<1x64xf32> to vector<8x64xf32>
    %29 = arith.mulf %27, %28 : vector<8x64xf32>
    %30 = vector.broadcast %2 : vector<1x64xf32> to vector<8x64xf32>
    %31 = arith.addf %29, %30 : vector<8x64xf32>
    %c0_16 = arith.constant 0 : index
    %c0_17 = arith.constant 0 : index
    %32 = vector.load %arg6[%c0_16, %c0_17] : memref<16x8xf32, #tpu.memory_space<vmem>>, vector<16x8xf32>
    %cst_18 = arith.constant dense<0.000000e+00> : vector<16x64xf32>
    %33 = tpu.matmul %32, %31, %cst_18 {dimension_numbers = #tpu.dot_dimension_numbers<[1], [0], [0], [1], [0, 0, 1, 1], [], []>} : vector<16x8xf32>, vector<8x64xf32>, vector<16x64xf32> -> vector<16x64xf32>
    %34 = vector.extract_strided_slice %33 {offsets = [0, 0], sizes = [8, 64], strides = [1, 1]} : vector<16x64xf32> to vector<8x64xf32>
    %35 = vector.extract_strided_slice %33 {offsets = [8, 0], sizes = [8, 64], strides = [1, 1]} : vector<16x64xf32> to vector<8x64xf32>
    %36 = arith.mulf %34, %34 : vector<8x64xf32>
    %37 = arith.mulf %35, %35 : vector<8x64xf32>
    %38 = arith.addf %36, %37 : vector<8x64xf32>
    %cst_19 = arith.constant dense<0.000000e+00> : vector<8x2xf32>
    %39 = tpu.matmul %38, %7, %cst_19 {dimension_numbers = #tpu.dot_dimension_numbers<[1], [0], [0], [1], [0, 0, 1, 1], [], []>} : vector<8x64xf32>, vector<64x2xf32>, vector<8x2xf32> -> vector<8x2xf32>
    %40 = tpu.iota {dimensions = array<i32: 0>} : vector<8x1xi32>
    %c5_i32 = arith.constant 5 : i32
    %41 = vector.broadcast %c5_i32 : i32 to vector<8x1xi32>
    %42 = arith.cmpi slt, %40, %41 : vector<8x1xi32>
    %cst_20 = arith.constant 1.000000e+30 : f32
    %43 = vector.shape_cast %42 : vector<8x1xi1> to vector<8x1xi1>
    %44 = vector.broadcast %43 : vector<8x1xi1> to vector<8x2xi1>
    %45 = vector.broadcast %cst_20 : f32 to vector<8x2xf32>
    %46 = arith.select %44, %39, %45 : vector<8x2xi1>, vector<8x2xf32>
    %47 = vector.shape_cast %46 : vector<8x2xf32> to vector<1x8x2xf32>
    %48 = vector.shape_cast %46 : vector<8x2xf32> to vector<8x1x2xf32>
    %49 = vector.broadcast %47 : vector<1x8x2xf32> to vector<8x8x2xf32>
    %50 = vector.broadcast %48 : vector<8x1x2xf32> to vector<8x8x2xf32>
    %51 = arith.cmpf olt, %49, %50 : vector<8x8x2xf32>
    %52 = arith.extui %51 : vector<8x8x2xi1> to vector<8x8x2xi32>
    %53 = arith.sitofp %52 : vector<8x8x2xi32> to vector<8x8x2xf32>
    %cst_21 = arith.constant dense<0.000000e+00> : vector<8x2xf32>
    %54 = vector.multi_reduction <add>, %53, %cst_21 [1] : vector<8x8x2xf32> to vector<8x2xf32>
    %cst_22 = arith.constant 2.000000e+00 : f32
    %55 = vector.broadcast %cst_22 : f32 to vector<8x2xf32>
    %56 = arith.cmpf ole, %54, %55 : vector<8x2xf32>
    %cst_23 = arith.constant 0.000000e+00 : f32
    %cst_24 = arith.constant 1.000000e+30 : f32
    %57 = arith.subf %cst_23, %cst_24 : f32
    %58 = vector.broadcast %57 : f32 to vector<8x2xf32>
    %59 = arith.select %56, %46, %58 : vector<8x2xi1>, vector<8x2xf32>
    %cst_25 = arith.constant dense<0xFF800000> : vector<2xf32>
    %60 = vector.multi_reduction <maximumf>, %59, %cst_25 [0] : vector<8x2xf32> to vector<2xf32>
    %61 = vector.shape_cast %60 : vector<2xf32> to vector<1x2xf32>
    %cst_26 = arith.constant 9.99999997E-7 : f32
    %62 = vector.broadcast %cst_26 : f32 to vector<1x2xf32>
    %63 = arith.addf %61, %62 : vector<1x2xf32>
    %64 = vector.broadcast %63 : vector<1x2xf32> to vector<8x2xf32>
    %65 = arith.divf %39, %64 : vector<8x2xf32>
    %cst_27 = arith.constant 1.000000e+30 : f32
    %66 = vector.shape_cast %42 : vector<8x1xi1> to vector<8x1xi1>
    %67 = vector.broadcast %66 : vector<8x1xi1> to vector<8x2xi1>
    %68 = vector.broadcast %cst_27 : f32 to vector<8x2xf32>
    %69 = arith.select %67, %65, %68 : vector<8x2xi1>, vector<8x2xf32>
    %70 = vector.shape_cast %69 : vector<8x2xf32> to vector<1x1x8x2xf32>
    %71 = vector.shape_cast %69 : vector<8x2xf32> to vector<8x2x1x1xf32>
    %72 = vector.broadcast %70 : vector<1x1x8x2xf32> to vector<8x2x8x2xf32>
    %73 = vector.broadcast %71 : vector<8x2x1x1xf32> to vector<8x2x8x2xf32>
    %74 = arith.cmpf olt, %72, %73 : vector<8x2x8x2xf32>
    %75 = arith.extui %74 : vector<8x2x8x2xi1> to vector<8x2x8x2xi32>
    %76 = arith.sitofp %75 : vector<8x2x8x2xi32> to vector<8x2x8x2xf32>
    %cst_28 = arith.constant dense<0.000000e+00> : vector<8x2x8xf32>
    %77 = vector.multi_reduction <add>, %76, %cst_28 [3] : vector<8x2x8x2xf32> to vector<8x2x8xf32>
    %cst_29 = arith.constant dense<0.000000e+00> : vector<8x2xf32>
    %78 = vector.multi_reduction <add>, %77, %cst_29 [2] : vector<8x2x8xf32> to vector<8x2xf32>
    %c0_30 = arith.constant 0 : index
    %79 = memref.load %arg0[%c0_30] : memref<3xf32, #tpu.memory_space<smem>>
    %c1 = arith.constant 1 : index
    %80 = memref.load %arg0[%c1] : memref<3xf32, #tpu.memory_space<smem>>
    %c2 = arith.constant 2 : index
    %81 = memref.load %arg0[%c2] : memref<3xf32, #tpu.memory_space<smem>>
    %82 = vector.broadcast %79 : f32 to vector<8x2xf32>
    %83 = arith.cmpf ole, %78, %82 : vector<8x2xf32>
    %cst_31 = arith.constant 0.000000e+00 : f32
    %cst_32 = arith.constant 1.000000e+30 : f32
    %84 = arith.subf %cst_31, %cst_32 : f32
    %85 = vector.broadcast %84 : f32 to vector<8x2xf32>
    %86 = arith.select %83, %69, %85 : vector<8x2xi1>, vector<8x2xf32>
    %cst_33 = arith.constant dense<0xFF800000> : vector<8xf32>
    %87 = vector.multi_reduction <maximumf>, %86, %cst_33 [1] : vector<8x2xf32> to vector<8xf32>
    %88 = vector.shape_cast %87 : vector<8xf32> to vector<8x1xf32>
    %cst_34 = arith.constant dense<0xFF800000> : vector<1xf32>
    %89 = vector.multi_reduction <maximumf>, %88, %cst_34 [0] : vector<8x1xf32> to vector<1xf32>
    %90 = vector.shape_cast %89 : vector<1xf32> to vector<1x1xf32>
    %91 = vector.broadcast %80 : f32 to vector<8x2xf32>
    %92 = arith.cmpf ole, %78, %91 : vector<8x2xf32>
    %cst_35 = arith.constant 0.000000e+00 : f32
    %cst_36 = arith.constant 1.000000e+30 : f32
    %93 = arith.subf %cst_35, %cst_36 : f32
    %94 = vector.broadcast %93 : f32 to vector<8x2xf32>
    %95 = arith.select %92, %69, %94 : vector<8x2xi1>, vector<8x2xf32>
    %cst_37 = arith.constant dense<0xFF800000> : vector<8xf32>
    %96 = vector.multi_reduction <maximumf>, %95, %cst_37 [1] : vector<8x2xf32> to vector<8xf32>
    %97 = vector.shape_cast %96 : vector<8xf32> to vector<8x1xf32>
    %cst_38 = arith.constant dense<0xFF800000> : vector<1xf32>
    %98 = vector.multi_reduction <maximumf>, %97, %cst_38 [0] : vector<8x1xf32> to vector<1xf32>
    %99 = vector.shape_cast %98 : vector<1xf32> to vector<1x1xf32>
    %cst_39 = arith.constant 1.000000e+00 : f32
    %100 = arith.subf %cst_39, %81 : f32
    %101 = vector.broadcast %100 : f32 to vector<1x1xf32>
    %102 = arith.mulf %90, %101 : vector<1x1xf32>
    %103 = vector.broadcast %81 : f32 to vector<1x1xf32>
    %104 = arith.mulf %99, %103 : vector<1x1xf32>
    %105 = arith.addf %102, %104 : vector<1x1xf32>
    %106 = vector.broadcast %105 : vector<1x1xf32> to vector<8x2xf32>
    %107 = arith.cmpf olt, %65, %106 : vector<8x2xf32>
    %108 = arith.extui %107 : vector<8x2xi1> to vector<8x2xi32>
    %109 = arith.sitofp %108 : vector<8x2xi32> to vector<8x2xf32>
    %cst_40 = arith.constant dense<0.000000e+00> : vector<8x64xf32>
    %110 = tpu.matmul %109, %8, %cst_40 {dimension_numbers = #tpu.dot_dimension_numbers<[1], [0], [0], [1], [0, 0, 1, 1], [], []>} : vector<8x2xf32>, vector<2x64xf32>, vector<8x64xf32> -> vector<8x64xf32>
    %111 = vector.broadcast %3 : vector<1x64xf32> to vector<8x64xf32>
    %112 = arith.mulf %34, %111 : vector<8x64xf32>
    %113 = vector.broadcast %4 : vector<1x64xf32> to vector<8x64xf32>
    %114 = arith.mulf %35, %113 : vector<8x64xf32>
    %115 = arith.subf %112, %114 : vector<8x64xf32>
    %116 = vector.broadcast %5 : vector<1x64xf32> to vector<8x64xf32>
    %117 = arith.mulf %34, %116 : vector<8x64xf32>
    %118 = vector.broadcast %6 : vector<1x64xf32> to vector<8x64xf32>
    %119 = arith.mulf %35, %118 : vector<8x64xf32>
    %120 = arith.subf %117, %119 : vector<8x64xf32>
    %121 = arith.mulf %110, %120 : vector<8x64xf32>
    %122 = arith.addf %115, %121 : vector<8x64xf32>
    %123 = vector.broadcast %4 : vector<1x64xf32> to vector<8x64xf32>
    %124 = arith.mulf %34, %123 : vector<8x64xf32>
    %125 = vector.broadcast %3 : vector<1x64xf32> to vector<8x64xf32>
    %126 = arith.mulf %35, %125 : vector<8x64xf32>
    %127 = arith.addf %124, %126 : vector<8x64xf32>
    %128 = vector.broadcast %6 : vector<1x64xf32> to vector<8x64xf32>
    %129 = arith.mulf %34, %128 : vector<8x64xf32>
    %130 = vector.broadcast %5 : vector<1x64xf32> to vector<8x64xf32>
    %131 = arith.mulf %35, %130 : vector<8x64xf32>
    %132 = arith.addf %129, %131 : vector<8x64xf32>
    %133 = arith.mulf %110, %132 : vector<8x64xf32>
    %134 = arith.addf %127, %133 : vector<8x64xf32>
    %135 = tpu.concatenate %122, %134 in 0 : vector<8x64xf32>, vector<8x64xf32> -> vector<16x64xf32>
    %c0_41 = arith.constant 0 : index
    %c0_42 = arith.constant 0 : index
    %136 = vector.load %arg7[%c0_41, %c0_42] : memref<8x16xf32, #tpu.memory_space<vmem>>, vector<8x16xf32>
    %cst_43 = arith.constant dense<0.000000e+00> : vector<8x64xf32>
    %137 = tpu.matmul %136, %135, %cst_43 {dimension_numbers = #tpu.dot_dimension_numbers<[1], [0], [0], [1], [0, 0, 1, 1], [], []>} : vector<8x16xf32>, vector<16x64xf32>, vector<8x64xf32> -> vector<8x64xf32>
    %c0_44 = arith.constant 0 : index
    %c0_45 = arith.constant 0 : index
    %138 = vector.load %arg10[%c0_44, %c0_45] : memref<4x64xf32, #tpu.memory_space<vmem>>, vector<4x64xf32>
    %139 = arith.truncf %137 : vector<8x64xf32> to vector<8x64xbf16>
    %c0_46 = arith.constant 0 : index
    %c0_47 = arith.constant 0 : index
    %c0_48 = arith.constant 0 : index
    %140 = vector.load %arg8[%c0_46, %c0_47, %c0_48] : memref<3x64x64xbf16, #tpu.memory_space<vmem>>, vector<1x64x64xbf16>
    %141 = vector.shape_cast %140 : vector<1x64x64xbf16> to vector<64x64xbf16>
    %cst_49 = arith.constant dense<0.000000e+00> : vector<8x64xf32>
    %142 = tpu.matmul %139, %141, %cst_49 {dimension_numbers = #tpu.dot_dimension_numbers<[1], [0], [0], [1], [0, 0, 1, 1], [], []>} : vector<8x64xbf16>, vector<64x64xbf16>, vector<8x64xf32> -> vector<8x64xf32>
    %143 = vector.extract_strided_slice %138 {offsets = [0, 0], sizes = [1, 64], strides = [1, 1]} : vector<4x64xf32> to vector<1x64xf32>
    %144 = vector.broadcast %143 : vector<1x64xf32> to vector<8x64xf32>
    %145 = arith.addf %142, %144 : vector<8x64xf32>
    %c1_50 = arith.constant 1 : index
    %c0_51 = arith.constant 0 : index
    %c0_52 = arith.constant 0 : index
    %146 = vector.load %arg8[%c1_50, %c0_51, %c0_52] : memref<3x64x64xbf16, #tpu.memory_space<vmem>>, vector<1x64x64xbf16>
    %147 = vector.shape_cast %146 : vector<1x64x64xbf16> to vector<64x64xbf16>
    %cst_53 = arith.constant dense<0.000000e+00> : vector<8x64xf32>
    %148 = tpu.matmul %139, %147, %cst_53 {dimension_numbers = #tpu.dot_dimension_numbers<[1], [0], [0], [1], [0, 0, 1, 1], [], []>} : vector<8x64xbf16>, vector<64x64xbf16>, vector<8x64xf32> -> vector<8x64xf32>
    %149 = vector.extract_strided_slice %138 {offsets = [1, 0], sizes = [1, 64], strides = [1, 1]} : vector<4x64xf32> to vector<1x64xf32>
    %150 = vector.broadcast %149 : vector<1x64xf32> to vector<8x64xf32>
    %151 = arith.addf %148, %150 : vector<8x64xf32>
    %c2_54 = arith.constant 2 : index
    %c0_55 = arith.constant 0 : index
    %c0_56 = arith.constant 0 : index
    %152 = vector.load %arg8[%c2_54, %c0_55, %c0_56] : memref<3x64x64xbf16, #tpu.memory_space<vmem>>, vector<1x64x64xbf16>
    %153 = vector.shape_cast %152 : vector<1x64x64xbf16> to vector<64x64xbf16>
    %cst_57 = arith.constant dense<0.000000e+00> : vector<8x64xf32>
    %154 = tpu.matmul %139, %153, %cst_57 {dimension_numbers = #tpu.dot_dimension_numbers<[1], [0], [0], [1], [0, 0, 1, 1], [], []>} : vector<8x64xbf16>, vector<64x64xbf16>, vector<8x64xf32> -> vector<8x64xf32>
    %155 = vector.extract_strided_slice %138 {offsets = [2, 0], sizes = [1, 64], strides = [1, 1]} : vector<4x64xf32> to vector<1x64xf32>
    %156 = vector.broadcast %155 : vector<1x64xf32> to vector<8x64xf32>
    %157 = arith.addf %154, %156 : vector<8x64xf32>
    %158 = vector.extract_strided_slice %138 {offsets = [3, 0], sizes = [1, 64], strides = [1, 1]} : vector<4x64xf32> to vector<1x64xf32>
    %c0_58 = arith.constant 0 : index
    %c0_59 = arith.constant 0 : index
    %c0_60 = arith.constant 0 : index
    %159 = vector.load %arg9[%c0_58, %c0_59, %c0_60] : memref<3x64x64xf32, #tpu.memory_space<vmem>>, vector<1x64x64xf32>
    %160 = vector.shape_cast %159 : vector<1x64x64xf32> to vector<64x64xf32>
    %c1_61 = arith.constant 1 : index
    %c0_62 = arith.constant 0 : index
    %c0_63 = arith.constant 0 : index
    %161 = vector.load %arg9[%c1_61, %c0_62, %c0_63] : memref<3x64x64xf32, #tpu.memory_space<vmem>>, vector<1x64x64xf32>
    %162 = vector.shape_cast %161 : vector<1x64x64xf32> to vector<64x64xf32>
    %c2_64 = arith.constant 2 : index
    %c0_65 = arith.constant 0 : index
    %c0_66 = arith.constant 0 : index
    %163 = vector.load %arg9[%c2_64, %c0_65, %c0_66] : memref<3x64x64xf32, #tpu.memory_space<vmem>>, vector<1x64x64xf32>
    %164 = vector.shape_cast %163 : vector<1x64x64xf32> to vector<64x64xf32>
    %cst_67 = arith.constant 0.000000e+00 : f32
    %165 = vector.broadcast %cst_67 : f32 to vector<1x64xf32>
    %166 = vector.extract_strided_slice %145 {offsets = [0, 0], sizes = [1, 64], strides = [1, 1]} : vector<8x64xf32> to vector<1x64xf32>
    %cst_68 = arith.constant dense<0.000000e+00> : vector<1x64xf32>
    %167 = tpu.matmul %165, %160, %cst_68 {dimension_numbers = #tpu.dot_dimension_numbers<[1], [0], [0], [1], [0, 0, 1, 1], [], []>} : vector<1x64xf32>, vector<64x64xf32>, vector<1x64xf32> -> vector<1x64xf32>
    %168 = arith.addf %166, %167 : vector<1x64xf32>
    %169 = arith.negf %168 : vector<1x64xf32>
    %170 = math.exp %169 : vector<1x64xf32>
    %cst_69 = arith.constant 1.000000e+00 : f32
    %171 = vector.broadcast %cst_69 : f32 to vector<1x64xf32>
    %172 = arith.addf %171, %170 : vector<1x64xf32>
    %173 = arith.divf %171, %172 : vector<1x64xf32>
    %174 = vector.extract_strided_slice %151 {offsets = [0, 0], sizes = [1, 64], strides = [1, 1]} : vector<8x64xf32> to vector<1x64xf32>
    %cst_70 = arith.constant dense<0.000000e+00> : vector<1x64xf32>
    %175 = tpu.matmul %165, %162, %cst_70 {dimension_numbers = #tpu.dot_dimension_numbers<[1], [0], [0], [1], [0, 0, 1, 1], [], []>} : vector<1x64xf32>, vector<64x64xf32>, vector<1x64xf32> -> vector<1x64xf32>
    %176 = arith.addf %174, %175 : vector<1x64xf32>
    %177 = arith.negf %176 : vector<1x64xf32>
    %178 = math.exp %177 : vector<1x64xf32>
    %cst_71 = arith.constant 1.000000e+00 : f32
    %179 = vector.broadcast %cst_71 : f32 to vector<1x64xf32>
    %180 = arith.addf %179, %178 : vector<1x64xf32>
    %181 = arith.divf %179, %180 : vector<1x64xf32>
    %182 = vector.extract_strided_slice %157 {offsets = [0, 0], sizes = [1, 64], strides = [1, 1]} : vector<8x64xf32> to vector<1x64xf32>
    %cst_72 = arith.constant dense<0.000000e+00> : vector<1x64xf32>
    %183 = tpu.matmul %165, %164, %cst_72 {dimension_numbers = #tpu.dot_dimension_numbers<[1], [0], [0], [1], [0, 0, 1, 1], [], []>} : vector<1x64xf32>, vector<64x64xf32>, vector<1x64xf32> -> vector<1x64xf32>
    %184 = arith.addf %183, %158 : vector<1x64xf32>
    %185 = arith.mulf %173, %184 : vector<1x64xf32>
    %186 = arith.addf %182, %185 : vector<1x64xf32>
    %187 = math.tanh %186 : vector<1x64xf32>
    %cst_73 = arith.constant 1.000000e+00 : f32
    %188 = vector.broadcast %cst_73 : f32 to vector<1x64xf32>
    %189 = arith.subf %188, %181 : vector<1x64xf32>
    %190 = arith.mulf %189, %187 : vector<1x64xf32>
    %191 = arith.mulf %181, %165 : vector<1x64xf32>
    %192 = arith.addf %190, %191 : vector<1x64xf32>
    %193 = vector.extract_strided_slice %145 {offsets = [1, 0], sizes = [1, 64], strides = [1, 1]} : vector<8x64xf32> to vector<1x64xf32>
    %cst_74 = arith.constant dense<0.000000e+00> : vector<1x64xf32>
    %194 = tpu.matmul %192, %160, %cst_74 {dimension_numbers = #tpu.dot_dimension_numbers<[1], [0], [0], [1], [0, 0, 1, 1], [], []>} : vector<1x64xf32>, vector<64x64xf32>, vector<1x64xf32> -> vector<1x64xf32>
    %195 = arith.addf %193, %194 : vector<1x64xf32>
    %196 = arith.negf %195 : vector<1x64xf32>
    %197 = math.exp %196 : vector<1x64xf32>
    %cst_75 = arith.constant 1.000000e+00 : f32
    %198 = vector.broadcast %cst_75 : f32 to vector<1x64xf32>
    %199 = arith.addf %198, %197 : vector<1x64xf32>
    %200 = arith.divf %198, %199 : vector<1x64xf32>
    %201 = vector.extract_strided_slice %151 {offsets = [1, 0], sizes = [1, 64], strides = [1, 1]} : vector<8x64xf32> to vector<1x64xf32>
    %cst_76 = arith.constant dense<0.000000e+00> : vector<1x64xf32>
    %202 = tpu.matmul %192, %162, %cst_76 {dimension_numbers = #tpu.dot_dimension_numbers<[1], [0], [0], [1], [0, 0, 1, 1], [], []>} : vector<1x64xf32>, vector<64x64xf32>, vector<1x64xf32> -> vector<1x64xf32>
    %203 = arith.addf %201, %202 : vector<1x64xf32>
    %204 = arith.negf %203 : vector<1x64xf32>
    %205 = math.exp %204 : vector<1x64xf32>
    %cst_77 = arith.constant 1.000000e+00 : f32
    %206 = vector.broadcast %cst_77 : f32 to vector<1x64xf32>
    %207 = arith.addf %206, %205 : vector<1x64xf32>
    %208 = arith.divf %206, %207 : vector<1x64xf32>
    %209 = vector.extract_strided_slice %157 {offsets = [1, 0], sizes = [1, 64], strides = [1, 1]} : vector<8x64xf32> to vector<1x64xf32>
    %cst_78 = arith.constant dense<0.000000e+00> : vector<1x64xf32>
    %210 = tpu.matmul %192, %164, %cst_78 {dimension_numbers = #tpu.dot_dimension_numbers<[1], [0], [0], [1], [0, 0, 1, 1], [], []>} : vector<1x64xf32>, vector<64x64xf32>, vector<1x64xf32> -> vector<1x64xf32>
    %211 = arith.addf %210, %158 : vector<1x64xf32>
    %212 = arith.mulf %200, %211 : vector<1x64xf32>
    %213 = arith.addf %209, %212 : vector<1x64xf32>
    %214 = math.tanh %213 : vector<1x64xf32>
    %cst_79 = arith.constant 1.000000e+00 : f32
    %215 = vector.broadcast %cst_79 : f32 to vector<1x64xf32>
    %216 = arith.subf %215, %208 : vector<1x64xf32>
    %217 = arith.mulf %216, %214 : vector<1x64xf32>
    %218 = arith.mulf %208, %192 : vector<1x64xf32>
    %219 = arith.addf %217, %218 : vector<1x64xf32>
    %220 = vector.extract_strided_slice %145 {offsets = [2, 0], sizes = [1, 64], strides = [1, 1]} : vector<8x64xf32> to vector<1x64xf32>
    %cst_80 = arith.constant dense<0.000000e+00> : vector<1x64xf32>
    %221 = tpu.matmul %219, %160, %cst_80 {dimension_numbers = #tpu.dot_dimension_numbers<[1], [0], [0], [1], [0, 0, 1, 1], [], []>} : vector<1x64xf32>, vector<64x64xf32>, vector<1x64xf32> -> vector<1x64xf32>
    %222 = arith.addf %220, %221 : vector<1x64xf32>
    %223 = arith.negf %222 : vector<1x64xf32>
    %224 = math.exp %223 : vector<1x64xf32>
    %cst_81 = arith.constant 1.000000e+00 : f32
    %225 = vector.broadcast %cst_81 : f32 to vector<1x64xf32>
    %226 = arith.addf %225, %224 : vector<1x64xf32>
    %227 = arith.divf %225, %226 : vector<1x64xf32>
    %228 = vector.extract_strided_slice %151 {offsets = [2, 0], sizes = [1, 64], strides = [1, 1]} : vector<8x64xf32> to vector<1x64xf32>
    %cst_82 = arith.constant dense<0.000000e+00> : vector<1x64xf32>
    %229 = tpu.matmul %219, %162, %cst_82 {dimension_numbers = #tpu.dot_dimension_numbers<[1], [0], [0], [1], [0, 0, 1, 1], [], []>} : vector<1x64xf32>, vector<64x64xf32>, vector<1x64xf32> -> vector<1x64xf32>
    %230 = arith.addf %228, %229 : vector<1x64xf32>
    %231 = arith.negf %230 : vector<1x64xf32>
    %232 = math.exp %231 : vector<1x64xf32>
    %cst_83 = arith.constant 1.000000e+00 : f32
    %233 = vector.broadcast %cst_83 : f32 to vector<1x64xf32>
    %234 = arith.addf %233, %232 : vector<1x64xf32>
    %235 = arith.divf %233, %234 : vector<1x64xf32>
    %236 = vector.extract_strided_slice %157 {offsets = [2, 0], sizes = [1, 64], strides = [1, 1]} : vector<8x64xf32> to vector<1x64xf32>
    %cst_84 = arith.constant dense<0.000000e+00> : vector<1x64xf32>
    %237 = tpu.matmul %219, %164, %cst_84 {dimension_numbers = #tpu.dot_dimension_numbers<[1], [0], [0], [1], [0, 0, 1, 1], [], []>} : vector<1x64xf32>, vector<64x64xf32>, vector<1x64xf32> -> vector<1x64xf32>
    %238 = arith.addf %237, %158 : vector<1x64xf32>
    %239 = arith.mulf %227, %238 : vector<1x64xf32>
    %240 = arith.addf %236, %239 : vector<1x64xf32>
    %241 = math.tanh %240 : vector<1x64xf32>
    %cst_85 = arith.constant 1.000000e+00 : f32
    %242 = vector.broadcast %cst_85 : f32 to vector<1x64xf32>
    %243 = arith.subf %242, %235 : vector<1x64xf32>
    %244 = arith.mulf %243, %241 : vector<1x64xf32>
    %245 = arith.mulf %235, %219 : vector<1x64xf32>
    %246 = arith.addf %244, %245 : vector<1x64xf32>
    %247 = vector.extract_strided_slice %145 {offsets = [3, 0], sizes = [1, 64], strides = [1, 1]} : vector<8x64xf32> to vector<1x64xf32>
    %cst_86 = arith.constant dense<0.000000e+00> : vector<1x64xf32>
    %248 = tpu.matmul %246, %160, %cst_86 {dimension_numbers = #tpu.dot_dimension_numbers<[1], [0], [0], [1], [0, 0, 1, 1], [], []>} : vector<1x64xf32>, vector<64x64xf32>, vector<1x64xf32> -> vector<1x64xf32>
    %249 = arith.addf %247, %248 : vector<1x64xf32>
    %250 = arith.negf %249 : vector<1x64xf32>
    %251 = math.exp %250 : vector<1x64xf32>
    %cst_87 = arith.constant 1.000000e+00 : f32
    %252 = vector.broadcast %cst_87 : f32 to vector<1x64xf32>
    %253 = arith.addf %252, %251 : vector<1x64xf32>
    %254 = arith.divf %252, %253 : vector<1x64xf32>
    %255 = vector.extract_strided_slice %151 {offsets = [3, 0], sizes = [1, 64], strides = [1, 1]} : vector<8x64xf32> to vector<1x64xf32>
    %cst_88 = arith.constant dense<0.000000e+00> : vector<1x64xf32>
    %256 = tpu.matmul %246, %162, %cst_88 {dimension_numbers = #tpu.dot_dimension_numbers<[1], [0], [0], [1], [0, 0, 1, 1], [], []>} : vector<1x64xf32>, vector<64x64xf32>, vector<1x64xf32> -> vector<1x64xf32>
    %257 = arith.addf %255, %256 : vector<1x64xf32>
    %258 = arith.negf %257 : vector<1x64xf32>
    %259 = math.exp %258 : vector<1x64xf32>
    %cst_89 = arith.constant 1.000000e+00 : f32
    %260 = vector.broadcast %cst_89 : f32 to vector<1x64xf32>
    %261 = arith.addf %260, %259 : vector<1x64xf32>
    %262 = arith.divf %260, %261 : vector<1x64xf32>
    %263 = vector.extract_strided_slice %157 {offsets = [3, 0], sizes = [1, 64], strides = [1, 1]} : vector<8x64xf32> to vector<1x64xf32>
    %cst_90 = arith.constant dense<0.000000e+00> : vector<1x64xf32>
    %264 = tpu.matmul %246, %164, %cst_90 {dimension_numbers = #tpu.dot_dimension_numbers<[1], [0], [0], [1], [0, 0, 1, 1], [], []>} : vector<1x64xf32>, vector<64x64xf32>, vector<1x64xf32> -> vector<1x64xf32>
    %265 = arith.addf %264, %158 : vector<1x64xf32>
    %266 = arith.mulf %254, %265 : vector<1x64xf32>
    %267 = arith.addf %263, %266 : vector<1x64xf32>
    %268 = math.tanh %267 : vector<1x64xf32>
    %cst_91 = arith.constant 1.000000e+00 : f32
    %269 = vector.broadcast %cst_91 : f32 to vector<1x64xf32>
    %270 = arith.subf %269, %262 : vector<1x64xf32>
    %271 = arith.mulf %270, %268 : vector<1x64xf32>
    %272 = arith.mulf %262, %246 : vector<1x64xf32>
    %273 = arith.addf %271, %272 : vector<1x64xf32>
    %274 = vector.extract_strided_slice %145 {offsets = [4, 0], sizes = [1, 64], strides = [1, 1]} : vector<8x64xf32> to vector<1x64xf32>
    %cst_92 = arith.constant dense<0.000000e+00> : vector<1x64xf32>
    %275 = tpu.matmul %273, %160, %cst_92 {dimension_numbers = #tpu.dot_dimension_numbers<[1], [0], [0], [1], [0, 0, 1, 1], [], []>} : vector<1x64xf32>, vector<64x64xf32>, vector<1x64xf32> -> vector<1x64xf32>
    %276 = arith.addf %274, %275 : vector<1x64xf32>
    %277 = arith.negf %276 : vector<1x64xf32>
    %278 = math.exp %277 : vector<1x64xf32>
    %cst_93 = arith.constant 1.000000e+00 : f32
    %279 = vector.broadcast %cst_93 : f32 to vector<1x64xf32>
    %280 = arith.addf %279, %278 : vector<1x64xf32>
    %281 = arith.divf %279, %280 : vector<1x64xf32>
    %282 = vector.extract_strided_slice %151 {offsets = [4, 0], sizes = [1, 64], strides = [1, 1]} : vector<8x64xf32> to vector<1x64xf32>
    %cst_94 = arith.constant dense<0.000000e+00> : vector<1x64xf32>
    %283 = tpu.matmul %273, %162, %cst_94 {dimension_numbers = #tpu.dot_dimension_numbers<[1], [0], [0], [1], [0, 0, 1, 1], [], []>} : vector<1x64xf32>, vector<64x64xf32>, vector<1x64xf32> -> vector<1x64xf32>
    %284 = arith.addf %282, %283 : vector<1x64xf32>
    %285 = arith.negf %284 : vector<1x64xf32>
    %286 = math.exp %285 : vector<1x64xf32>
    %cst_95 = arith.constant 1.000000e+00 : f32
    %287 = vector.broadcast %cst_95 : f32 to vector<1x64xf32>
    %288 = arith.addf %287, %286 : vector<1x64xf32>
    %289 = arith.divf %287, %288 : vector<1x64xf32>
    %290 = vector.extract_strided_slice %157 {offsets = [4, 0], sizes = [1, 64], strides = [1, 1]} : vector<8x64xf32> to vector<1x64xf32>
    %cst_96 = arith.constant dense<0.000000e+00> : vector<1x64xf32>
    %291 = tpu.matmul %273, %164, %cst_96 {dimension_numbers = #tpu.dot_dimension_numbers<[1], [0], [0], [1], [0, 0, 1, 1], [], []>} : vector<1x64xf32>, vector<64x64xf32>, vector<1x64xf32> -> vector<1x64xf32>
    %292 = arith.addf %291, %158 : vector<1x64xf32>
    %293 = arith.mulf %281, %292 : vector<1x64xf32>
    %294 = arith.addf %290, %293 : vector<1x64xf32>
    %295 = math.tanh %294 : vector<1x64xf32>
    %cst_97 = arith.constant 1.000000e+00 : f32
    %296 = vector.broadcast %cst_97 : f32 to vector<1x64xf32>
    %297 = arith.subf %296, %289 : vector<1x64xf32>
    %298 = arith.mulf %297, %295 : vector<1x64xf32>
    %299 = arith.mulf %289, %273 : vector<1x64xf32>
    %300 = arith.addf %298, %299 : vector<1x64xf32>
    %301 = vector.extract_strided_slice %145 {offsets = [5, 0], sizes = [1, 64], strides = [1, 1]} : vector<8x64xf32> to vector<1x64xf32>
    %cst_98 = arith.constant dense<0.000000e+00> : vector<1x64xf32>
    %302 = tpu.matmul %300, %160, %cst_98 {dimension_numbers = #tpu.dot_dimension_numbers<[1], [0], [0], [1], [0, 0, 1, 1], [], []>} : vector<1x64xf32>, vector<64x64xf32>, vector<1x64xf32> -> vector<1x64xf32>
    %303 = arith.addf %301, %302 : vector<1x64xf32>
    %304 = arith.negf %303 : vector<1x64xf32>
    %305 = math.exp %304 : vector<1x64xf32>
    %cst_99 = arith.constant 1.000000e+00 : f32
    %306 = vector.broadcast %cst_99 : f32 to vector<1x64xf32>
    %307 = arith.addf %306, %305 : vector<1x64xf32>
    %308 = arith.divf %306, %307 : vector<1x64xf32>
    %309 = vector.extract_strided_slice %151 {offsets = [5, 0], sizes = [1, 64], strides = [1, 1]} : vector<8x64xf32> to vector<1x64xf32>
    %cst_100 = arith.constant dense<0.000000e+00> : vector<1x64xf32>
    %310 = tpu.matmul %300, %162, %cst_100 {dimension_numbers = #tpu.dot_dimension_numbers<[1], [0], [0], [1], [0, 0, 1, 1], [], []>} : vector<1x64xf32>, vector<64x64xf32>, vector<1x64xf32> -> vector<1x64xf32>
    %311 = arith.addf %309, %310 : vector<1x64xf32>
    %312 = arith.negf %311 : vector<1x64xf32>
    %313 = math.exp %312 : vector<1x64xf32>
    %cst_101 = arith.constant 1.000000e+00 : f32
    %314 = vector.broadcast %cst_101 : f32 to vector<1x64xf32>
    %315 = arith.addf %314, %313 : vector<1x64xf32>
    %316 = arith.divf %314, %315 : vector<1x64xf32>
    %317 = vector.extract_strided_slice %157 {offsets = [5, 0], sizes = [1, 64], strides = [1, 1]} : vector<8x64xf32> to vector<1x64xf32>
    %cst_102 = arith.constant dense<0.000000e+00> : vector<1x64xf32>
    %318 = tpu.matmul %300, %164, %cst_102 {dimension_numbers = #tpu.dot_dimension_numbers<[1], [0], [0], [1], [0, 0, 1, 1], [], []>} : vector<1x64xf32>, vector<64x64xf32>, vector<1x64xf32> -> vector<1x64xf32>
    %319 = arith.addf %318, %158 : vector<1x64xf32>
    %320 = arith.mulf %308, %319 : vector<1x64xf32>
    %321 = arith.addf %317, %320 : vector<1x64xf32>
    %322 = math.tanh %321 : vector<1x64xf32>
    %cst_103 = arith.constant 1.000000e+00 : f32
    %323 = vector.broadcast %cst_103 : f32 to vector<1x64xf32>
    %324 = arith.subf %323, %316 : vector<1x64xf32>
    %325 = arith.mulf %324, %322 : vector<1x64xf32>
    %326 = arith.mulf %316, %300 : vector<1x64xf32>
    %327 = arith.addf %325, %326 : vector<1x64xf32>
    %328 = vector.extract_strided_slice %145 {offsets = [6, 0], sizes = [1, 64], strides = [1, 1]} : vector<8x64xf32> to vector<1x64xf32>
    %cst_104 = arith.constant dense<0.000000e+00> : vector<1x64xf32>
    %329 = tpu.matmul %327, %160, %cst_104 {dimension_numbers = #tpu.dot_dimension_numbers<[1], [0], [0], [1], [0, 0, 1, 1], [], []>} : vector<1x64xf32>, vector<64x64xf32>, vector<1x64xf32> -> vector<1x64xf32>
    %330 = arith.addf %328, %329 : vector<1x64xf32>
    %331 = arith.negf %330 : vector<1x64xf32>
    %332 = math.exp %331 : vector<1x64xf32>
    %cst_105 = arith.constant 1.000000e+00 : f32
    %333 = vector.broadcast %cst_105 : f32 to vector<1x64xf32>
    %334 = arith.addf %333, %332 : vector<1x64xf32>
    %335 = arith.divf %333, %334 : vector<1x64xf32>
    %336 = vector.extract_strided_slice %151 {offsets = [6, 0], sizes = [1, 64], strides = [1, 1]} : vector<8x64xf32> to vector<1x64xf32>
    %cst_106 = arith.constant dense<0.000000e+00> : vector<1x64xf32>
    %337 = tpu.matmul %327, %162, %cst_106 {dimension_numbers = #tpu.dot_dimension_numbers<[1], [0], [0], [1], [0, 0, 1, 1], [], []>} : vector<1x64xf32>, vector<64x64xf32>, vector<1x64xf32> -> vector<1x64xf32>
    %338 = arith.addf %336, %337 : vector<1x64xf32>
    %339 = arith.negf %338 : vector<1x64xf32>
    %340 = math.exp %339 : vector<1x64xf32>
    %cst_107 = arith.constant 1.000000e+00 : f32
    %341 = vector.broadcast %cst_107 : f32 to vector<1x64xf32>
    %342 = arith.addf %341, %340 : vector<1x64xf32>
    %343 = arith.divf %341, %342 : vector<1x64xf32>
    %344 = vector.extract_strided_slice %157 {offsets = [6, 0], sizes = [1, 64], strides = [1, 1]} : vector<8x64xf32> to vector<1x64xf32>
    %cst_108 = arith.constant dense<0.000000e+00> : vector<1x64xf32>
    %345 = tpu.matmul %327, %164, %cst_108 {dimension_numbers = #tpu.dot_dimension_numbers<[1], [0], [0], [1], [0, 0, 1, 1], [], []>} : vector<1x64xf32>, vector<64x64xf32>, vector<1x64xf32> -> vector<1x64xf32>
    %346 = arith.addf %345, %158 : vector<1x64xf32>
    %347 = arith.mulf %335, %346 : vector<1x64xf32>
    %348 = arith.addf %344, %347 : vector<1x64xf32>
    %349 = math.tanh %348 : vector<1x64xf32>
    %cst_109 = arith.constant 1.000000e+00 : f32
    %350 = vector.broadcast %cst_109 : f32 to vector<1x64xf32>
    %351 = arith.subf %350, %343 : vector<1x64xf32>
    %352 = arith.mulf %351, %349 : vector<1x64xf32>
    %353 = arith.mulf %343, %327 : vector<1x64xf32>
    %354 = arith.addf %352, %353 : vector<1x64xf32>
    %355 = vector.extract_strided_slice %145 {offsets = [7, 0], sizes = [1, 64], strides = [1, 1]} : vector<8x64xf32> to vector<1x64xf32>
    %cst_110 = arith.constant dense<0.000000e+00> : vector<1x64xf32>
    %356 = tpu.matmul %354, %160, %cst_110 {dimension_numbers = #tpu.dot_dimension_numbers<[1], [0], [0], [1], [0, 0, 1, 1], [], []>} : vector<1x64xf32>, vector<64x64xf32>, vector<1x64xf32> -> vector<1x64xf32>
    %357 = arith.addf %355, %356 : vector<1x64xf32>
    %358 = arith.negf %357 : vector<1x64xf32>
    %359 = math.exp %358 : vector<1x64xf32>
    %cst_111 = arith.constant 1.000000e+00 : f32
    %360 = vector.broadcast %cst_111 : f32 to vector<1x64xf32>
    %361 = arith.addf %360, %359 : vector<1x64xf32>
    %362 = arith.divf %360, %361 : vector<1x64xf32>
    %363 = vector.extract_strided_slice %151 {offsets = [7, 0], sizes = [1, 64], strides = [1, 1]} : vector<8x64xf32> to vector<1x64xf32>
    %cst_112 = arith.constant dense<0.000000e+00> : vector<1x64xf32>
    %364 = tpu.matmul %354, %162, %cst_112 {dimension_numbers = #tpu.dot_dimension_numbers<[1], [0], [0], [1], [0, 0, 1, 1], [], []>} : vector<1x64xf32>, vector<64x64xf32>, vector<1x64xf32> -> vector<1x64xf32>
    %365 = arith.addf %363, %364 : vector<1x64xf32>
    %366 = arith.negf %365 : vector<1x64xf32>
    %367 = math.exp %366 : vector<1x64xf32>
    %cst_113 = arith.constant 1.000000e+00 : f32
    %368 = vector.broadcast %cst_113 : f32 to vector<1x64xf32>
    %369 = arith.addf %368, %367 : vector<1x64xf32>
    %370 = arith.divf %368, %369 : vector<1x64xf32>
    %371 = vector.extract_strided_slice %157 {offsets = [7, 0], sizes = [1, 64], strides = [1, 1]} : vector<8x64xf32> to vector<1x64xf32>
    %cst_114 = arith.constant dense<0.000000e+00> : vector<1x64xf32>
    %372 = tpu.matmul %354, %164, %cst_114 {dimension_numbers = #tpu.dot_dimension_numbers<[1], [0], [0], [1], [0, 0, 1, 1], [], []>} : vector<1x64xf32>, vector<64x64xf32>, vector<1x64xf32> -> vector<1x64xf32>
    %373 = arith.addf %372, %158 : vector<1x64xf32>
    %374 = arith.mulf %362, %373 : vector<1x64xf32>
    %375 = arith.addf %371, %374 : vector<1x64xf32>
    %376 = math.tanh %375 : vector<1x64xf32>
    %cst_115 = arith.constant 1.000000e+00 : f32
    %377 = vector.broadcast %cst_115 : f32 to vector<1x64xf32>
    %378 = arith.subf %377, %370 : vector<1x64xf32>
    %379 = arith.mulf %378, %376 : vector<1x64xf32>
    %380 = arith.mulf %370, %354 : vector<1x64xf32>
    %381 = arith.addf %379, %380 : vector<1x64xf32>
    %c0_116 = arith.constant 0 : index
    %c0_117 = arith.constant 0 : index
    %382 = vector.load %arg11[%c0_116, %c0_117] : memref<64x16xf32, #tpu.memory_space<vmem>>, vector<64x16xf32>
    %cst_118 = arith.constant dense<0.000000e+00> : vector<1x16xf32>
    %383 = tpu.matmul %381, %382, %cst_118 {dimension_numbers = #tpu.dot_dimension_numbers<[1], [0], [0], [1], [0, 0, 1, 1], [], []>} : vector<1x64xf32>, vector<64x16xf32>, vector<1x16xf32> -> vector<1x16xf32>
    %c0_119 = arith.constant 0 : index
    %c0_120 = arith.constant 0 : index
    %384 = vector.load %arg12[%c0_119, %c0_120] : memref<1x16xf32, #tpu.memory_space<vmem>>, vector<1x16xf32>
    %385 = arith.addf %383, %384 : vector<1x16xf32>
    %c0_121 = arith.constant 0 : index
    %c0_122 = arith.constant 0 : index
    %386 = vector.load %arg13[%c0_121, %c0_122] : memref<1x16xf32, #tpu.memory_space<vmem>>, vector<1x16xf32>
    tpu.vector_store %arg13[%c0_121, %c0_122], %385 {strides = array<i32>} : memref<1x16xf32, #tpu.memory_space<vmem>>, vector<1x16xf32>,
    return
  }
}

</mosaic_0001>

<llo_original>
// kernel: tile.64
$region0: #{tile.64}
  %s0 = inlined_call_operand.vmem [shape: f32[8,2,32], index: 0, kind: input, shape index: {}]
  %s1 = inlined_call_operand.vmem [shape: f32[8,64], index: 1, kind: output, shape index: {}]
  $region1: #{tile.64} parent=0
    #allocation0 [shape = 'u8[32768]{0}', space=vmem, size = 0x8000, scoped, tag = 'scoped mem for input reshape']
    %s3 = sshll.u32 1, 2
    %s4 = ssub.s32 %s3, 1
    %s5 = smul.addr 2, 7
    %s6 = scalar_lea.vmem %s0, %s5
    %v7 = vld [vmem:[%s6] sm:%s4]
    %s8 = scalar_lea.vmem [#allocation0], 56
    %9 = vst [vmem:[%s8] sm:%s4] %v7
    %s10 = smul.addr 2, 6
    %s11 = scalar_lea.vmem %s0, %s10
    %v12 = vld [vmem:[%s11] sm:%s4]
    %s13 = scalar_lea.vmem [#allocation0], 48
    %14 = vst [vmem:[%s13] sm:%s4] %v12
    %s15 = smul.addr 2, 5
    %s16 = scalar_lea.vmem %s0, %s15
    %v17 = vld [vmem:[%s16] sm:%s4]
    %s18 = scalar_lea.vmem [#allocation0], 40
    %19 = vst [vmem:[%s18] sm:%s4] %v17
    %s20 = smul.addr 2, 4
    %s21 = scalar_lea.vmem %s0, %s20
    %v22 = vld [vmem:[%s21] sm:%s4]
    %s23 = scalar_lea.vmem [#allocation0], 32
    %24 = vst [vmem:[%s23] sm:%s4] %v22
    %s25 = smul.addr 2, 3
    %s26 = scalar_lea.vmem %s0, %s25
    %v27 = vld [vmem:[%s26] sm:%s4]
    %s28 = scalar_lea.vmem [#allocation0], 24
    %29 = vst [vmem:[%s28] sm:%s4] %v27
    %s30 = smul.addr 2, 2
    %s31 = scalar_lea.vmem %s0, %s30
    %v32 = vld [vmem:[%s31] sm:%s4]
    %s33 = scalar_lea.vmem [#allocation0], 16
    %34 = vst [vmem:[%s33] sm:%s4] %v32
    %s35 = scalar_lea.vmem %s0, 2
    %v36 = vld [vmem:[%s35] sm:%s4]
    %s37 = scalar_lea.vmem [#allocation0], 8
    %38 = vst [vmem:[%s37] sm:%s4] %v36
    %v39 = vld [vmem:[%s0] sm:%s4]
    %40 = vst [vmem:[#allocation0] sm:%s4] %v39
    %v41 = vld [vmem:[#allocation0] ss:$8 sm:$0xf]
    %v42 = vld [vmem:[#allocation0] ss:$8 sm:$0xf0]
    %vm43 = vcmask 1047556
    %v44 = vsel %vm43, %v42, %v41
    %vm45 = vcmask 261120
    %46 = vst.msk [vmem:[%s1] sm:$0xff] %vm45, %v44
    %s47 = scalar_lea.vmem [#allocation0], 1
    %v48 = vld [vmem:[%s47] ss:$8 sm:$0xf]
    %s49 = scalar_lea.vmem [#allocation0], 1
    %v50 = vld [vmem:[%s49] ss:$8 sm:$0xf0]
    %vm51 = vcmask 1047556
    %v52 = vsel %vm51, %v50, %v48
    %53 = vrot.lane.b32.xlu0 %v52, 32
    %v54 = vpop.permute.xlu0 %53
    %vm55 = vcmask 523520
    %56 = vst.msk [vmem:[%s1] sm:$0xff] %vm55, %v54

// kernel: state_tracker_transformer_forward.1
$region0: #{state_tracker_transformer_forward.1}
  #allocation0 [shape = 'u32[]', space=smem, size = 0x4, offset = 0x4, fixed_abs, tag = 'smem constant byte address 0x4 - core index']
  #allocation1 [shape = 'u32[144,128]{1,0:T(1,128)}', space=vmem, size = 0x12000, scoped, tag = 'internal scratch']
  %s0 = inlined_call_operand.vmem [shape: f32[3], index: 0, kind: input, shape index: {}]
  %s1 = inlined_call_operand.vmem [shape: f32[8,64], index: 1, kind: input, shape index: {}]
  %s2 = inlined_call_operand.vmem [shape: f32[8,64], index: 2, kind: input, shape index: {}]
  %s3 = inlined_call_operand.vmem [shape: f32[6,64], index: 3, kind: input, shape index: {}]
  %s4 = inlined_call_operand.vmem [shape: f32[64,2], index: 4, kind: input, shape index: {}]
  %s5 = inlined_call_operand.vmem [shape: f32[2,64], index: 5, kind: input, shape index: {}]
  %s6 = inlined_call_operand.vmem [shape: f32[16,8], index: 6, kind: input, shape index: {}]
  %s7 = inlined_call_operand.vmem [shape: f32[8,16], index: 7, kind: input, shape index: {}]
  %s8 = inlined_call_operand.vmem [shape: bf16[3,64,64], index: 8, kind: input, shape index: {}]
  %s9 = inlined_call_operand.vmem [shape: f32[3,64,64], index: 9, kind: input, shape index: {}]
  %s10 = inlined_call_operand.vmem [shape: f32[4,64], index: 10, kind: input, shape index: {}]
  %s11 = inlined_call_operand.vmem [shape: f32[64,16], index: 11, kind: input, shape index: {}]
  %s12 = inlined_call_operand.vmem [shape: f32[1,16], index: 12, kind: input, shape index: {}]
  %s13 = inlined_call_operand.vmem [shape: f32[1,16], index: 13, kind: output, shape index: {}]
  %s14 = sld [smem:[#allocation0]]
  $region66: #{state_tracker_transformer_forward.1} parent=0
    _
  %s16 = ssub.s32 1, %s14
  %s17 = scalar_select 0, %s16, %s14
  $region1: #{state_tracker_transformer_forward.1} parent=0
    #allocation2 [shape = 'u8[512]{0}', space=smem, size = 0x200, scoped, tag = 'input window, operand 0, single buffered']
    #allocation3 [shape = 's32[1]{0}', space=sflag, size = 0x4, scoped, tag = 'scoped memory for state_tracker_transformer_forward.1']
    %18 = vsyncpa [#allocation3], 0
    // Predicated region
    $region2: #{state_tracker_transformer_forward.1} parent=1 // pred_check
      _
    $region3: #{state_tracker_transformer_forward.1} parent=1 // pred_check_branch
      %20 = sbr.rel (0) target = $region5
    $region4: #{state_tracker_transformer_forward.1} parent=1 // pred_region
      %s22 = ssub.s32 16, 16
      %23 = vsyncadd [#allocation3], %s22
      %s25 = sshll.u32 %s0, 4
      %s26 = int_to_ptr.vmem [resolvable:$true] %s25
      %28 = dma.vmem_to_smem %s26, 16, [#allocation2], [#allocation3]
    $region5: #{state_tracker_transformer_forward.1} parent=1 // pred_fallthru
      _
    // Predicated region
    $region6: #{state_tracker_transformer_forward.1} parent=1 // pred_check
      _
    $region7: #{state_tracker_transformer_forward.1} parent=1 // pred_check_branch
      %30 = sbr.rel (0) target = $region9
    $region8: #{state_tracker_transformer_forward.1} parent=1 // pred_region
      _
    $region9: #{state_tracker_transformer_forward.1} parent=1 // pred_fallthru
      _
    // Predicated region
    $region10: #{state_tracker_transformer_forward.1} parent=1 // pred_check
      _
    $region11: #{state_tracker_transformer_forward.1} parent=1 // pred_check_branch
      %32 = sbr.rel (0) target = $region13
    $region12: #{state_tracker_transformer_forward.1} parent=1 // pred_region
      _
    $region13: #{state_tracker_transformer_forward.1} parent=1 // pred_fallthru
      _
    // Predicated region
    $region14: #{state_tracker_transformer_forward.1} parent=1 // pred_check
      _
    $region15: #{state_tracker_transformer_forward.1} parent=1 // pred_check_branch
      %34 = sbr.rel (0) target = $region17
    $region16: #{state_tracker_transformer_forward.1} parent=1 // pred_region
      _
    $region17: #{state_tracker_transformer_forward.1} parent=1 // pred_fallthru
      _
    // Predicated region
    $region18: #{state_tracker_transformer_forward.1} parent=1 // pred_check
      _
    $region19: #{state_tracker_transformer_forward.1} parent=1 // pred_check_branch
      %36 = sbr.rel (0) target = $region21
    $region20: #{state_tracker_transformer_forward.1} parent=1 // pred_region
      _
    $region21: #{state_tracker_transformer_forward.1} parent=1 // pred_fallthru
      _
    // Predicated region
    $region22: #{state_tracker_transformer_forward.1} parent=1 // pred_check
      _
    $region23: #{state_tracker_transformer_forward.1} parent=1 // pred_check_branch
      %38 = sbr.rel (0) target = $region25
    $region24: #{state_tracker_transformer_forward.1} parent=1 // pred_region
      _
    $region25: #{state_tracker_transformer_forward.1} parent=1 // pred_fallthru
      _
    // Predicated region
    $region26: #{state_tracker_transformer_forward.1} parent=1 // pred_check
      _
    $region27: #{state_tracker_transformer_forward.1} parent=1 // pred_check_branch
      %40 = sbr.rel (0) target = $region29
    $region28: #{state_tracker_transformer_forward.1} parent=1 // pred_region
      _
    $region29: #{state_tracker_transformer_forward.1} parent=1 // pred_fallthru
      _
    // Predicated region
    $region30: #{state_tracker_transformer_forward.1} parent=1 // pred_check
      _
    $region31: #{state_tracker_transformer_forward.1} parent=1 // pred_check_branch
      %42 = sbr.rel (0) target = $region33
    $region32: #{state_tracker_transformer_forward.1} parent=1 // pred_region
      _
    $region33: #{state_tracker_transformer_forward.1} parent=1 // pred_fallthru
      _
    // Predicated region
    $region34: #{state_tracker_transformer_forward.1} parent=1 // pred_check
      _
    $region35: #{state_tracker_transformer_forward.1} parent=1 // pred_check_branch
      %44 = sbr.rel (0) target = $region37
    $region36: #{state_tracker_transformer_forward.1} parent=1 // pred_region
      _
    $region37: #{state_tracker_transformer_forward.1} parent=1 // pred_fallthru
      _
    // Predicated region
    $region38: #{state_tracker_transformer_forward.1} parent=1 // pred_check
      _
    $region39: #{state_tracker_transformer_forward.1} parent=1 // pred_check_branch
      %46 = sbr.rel (0) target = $region41
    $region40: #{state_tracker_transformer_forward.1} parent=1 // pred_region
      _
    $region41: #{state_tracker_transformer_forward.1} parent=1 // pred_fallthru
      _
    // Predicated region
    $region42: #{state_tracker_transformer_forward.1} parent=1 // pred_check
      _
    $region43: #{state_tracker_transformer_forward.1} parent=1 // pred_check_branch
      %48 = sbr.rel (0) target = $region45
    $region44: #{state_tracker_transformer_forward.1} parent=1 // pred_region
      _
    $region45: #{state_tracker_transformer_forward.1} parent=1 // pred_fallthru
      _
    // Predicated region
    $region46: #{state_tracker_transformer_forward.1} parent=1 // pred_check
      _
    $region47: #{state_tracker_transformer_forward.1} parent=1 // pred_check_branch
      %50 = sbr.rel (0) target = $region49
    $region48: #{state_tracker_transformer_forward.1} parent=1 // pred_region
      _
    $region49: #{state_tracker_transformer_forward.1} parent=1 // pred_fallthru
      _
    // Predicated region
    $region50: #{state_tracker_transformer_forward.1} parent=1 // pred_check
      _
    $region51: #{state_tracker_transformer_forward.1} parent=1 // pred_check_branch
      %52 = sbr.rel (0) target = $region53
    $region52: #{state_tracker_transformer_forward.1} parent=1 // pred_region
      _
    $region53: #{state_tracker_transformer_forward.1} parent=1 // pred_fallthru
      _
    // Predicated region
    $region54: #{state_tracker_transformer_forward.1} parent=1 // pred_check
      _
    $region55: #{state_tracker_transformer_forward.1} parent=1 // pred_check_branch
      %54 = sbr.rel (0) target = $region57
    $region56: #{state_tracker_transformer_forward.1} parent=1 // pred_region
      %55 = dma.done [#allocation3], 16
    $region57: #{state_tracker_transformer_forward.1} parent=1 // pred_fallthru
      _
    %56 = sfence
    %v58 = vld [vmem:[%s3] sm:$0x3f]
    %v59 = vld [vmem:[%s4] sm:$0xff]
    %v60 = vld [vmem:[%s4 + $0x8] sm:$0xff]
    %v61 = vld [vmem:[%s4 + $0x10] sm:$0xff]
    %v62 = vld [vmem:[%s4 + $0x18] sm:$0xff]
    %v63 = vld [vmem:[%s4 + $0x20] sm:$0xff]
    %v64 = vld [vmem:[%s4 + $0x28] sm:$0xff]
    %v65 = vld [vmem:[%s4 + $0x30] sm:$0xff]
    %v66 = vld [vmem:[%s4 + $0x38] sm:$0xff]
    %v67 = vld [vmem:[%s5] sm:$0x3]
    %v68 = vld [vmem:[%s1] sm:$0xff]
    %v69 = vmul.f32 %v68, 5.656854
    %v70 = vld [vmem:[%s2] sm:$0xff]
    %v71 = vadd.f32 %v69, %v70
    %vm72 = vcmask 523264
    %v74 = vsel %vm72, %v71, 0
    %76 = vmatprep.subr.mxu0 0.0
    %77 = vmatpush1.msra.mxu0 0.0
    %78 = vmatprep.subr.mxu0 0.0
    %79 = vmatpush1.msra.mxu0 0.0
    %80 = vmatprep.subr.mxu0 0.0
    %81 = vmatpush1.msra.mxu0 0.0
    %82 = vmatprep.subr.mxu0 0.0
    %83 = vmatpush1.msra.mxu0 0.0
    %84 = vmatprep.subr.mxu0 0.0
    %85 = vmatpush1.msra.mxu0 0.0
    %86 = vmatprep.subr.mxu0 0.0
    %87 = vmatpush1.msra.mxu0 0.0
    %88 = vmatprep.subr.mxu0 0.0
    %89 = vmatpush1.msra.mxu0 0.0
    %90 = vmatprep.subr.mxu0 0.0
    %91 = vmatpush1.msra.mxu0 0.0
    %92 = vmatprep.subr.mxu0 0.0
    %93 = vmatpush1.msra.mxu0 %v66
    %94 = vmatprep.subr.mxu0 0.0
    %95 = vmatpush1.msra.mxu0 %v65
    %96 = vmatprep.subr.mxu0 0.0
    %97 = vmatpush1.msra.mxu0 %v64
    %98 = vmatprep.subr.mxu0 0.0
    %99 = vmatpush1.msra.mxu0 %v63
    %100 = vmatprep.subr.mxu0 0.0
    %101 = vmatpush1.msra.mxu0 %v62
    %102 = vmatprep.subr.mxu0 0.0
    %103 = vmatpush1.msra.mxu0 %v61
    %104 = vmatprep.subr.mxu0 0.0
    %105 = vmatpush1.msra.mxu0 %v60
    %106 = vmatprep.subr.mxu0 0.0
    %107 = vmatpush1.msra.mxu0 %v59
    %108 = vmatprep.subr.mxu0 0.0
    %109 = vmatpush2.msra.mxu0 0.0
    %110 = vmatprep.subr.mxu0 0.0
    %111 = vmatpush2.msra.mxu0 0.0
    %112 = vmatprep.subr.mxu0 0.0
    %113 = vmatpush2.msra.mxu0 0.0
    %114 = vmatprep.subr.mxu0 0.0
    %115 = vmatpush2.msra.mxu0 0.0
    %116 = vmatprep.subr.mxu0 0.0
    %117 = vmatpush2.msra.mxu0 0.0
    %118 = vmatprep.subr.mxu0 0.0
    %119 = vmatpush2.msra.mxu0 0.0
    %120 = vmatprep.subr.mxu0 0.0
    %121 = vmatpush2.msra.mxu0 0.0
    %122 = vmatprep.subr.mxu0 0.0
    %123 = vmatpush2.msra.mxu0 0.0
    %124 = vmatprep.subr.mxu0 0.0
    %125 = vmatpush2.msra.mxu0 0.0
    %126 = vmatprep.subr.mxu0 0.0
    %127 = vmatpush2.msra.mxu0 0.0
    %128 = vmatprep.subr.mxu0 0.0
    %129 = vmatpush2.msra.mxu0 0.0
    %130 = vmatprep.subr.mxu0 0.0
    %131 = vmatpush2.msra.mxu0 0.0
    %132 = vmatprep.subr.mxu0 0.0
    %133 = vmatpush2.msra.mxu0 0.0
    %134 = vmatprep.subr.mxu0 0.0
    %135 = vmatpush2.msra.mxu0 0.0
    %136 = vmatprep.subr.mxu0 0.0
    %137 = vmatpush2.msra.mxu0 0.0
    %138 = vmatprep.subr.mxu0 0.0
    %139 = vmatpush2.msra.mxu0 0.0
    %140 = vmatprep.mubr.f32.mxu0 0.0
    %141 = vmatmul.mubr.f32.gmra.mxu0 %v74
    %v142 = vpop.f32.mrf.mxu0
    %v143 = vadd.f32 0.0, %v142
    %v144 = vpop.f32.mrf.mxu0
    %145 = vdwg.mxu0
    %v146 = vmul.f32 %v143, 0.03125
    %vm147 = vcmask 15360
    %v149 = vsel %vm147, %v146, 0
    %vm151 = vcmask 1041408
    %v153 = vsel %vm151, %v67, 0
    %155 = vmatprep.subr.mxu0 0.0
    %156 = vmatpush1.msra.mxu0 0.0
    %157 = vmatprep.subr.mxu0 0.0
    %158 = vmatpush1.msra.mxu0 0.0
    %159 = vmatprep.subr.mxu0 0.0
    %160 = vmatpush1.msra.mxu0 0.0
    %161 = vmatprep.subr.mxu0 0.0
    %162 = vmatpush1.msra.mxu0 0.0
    %163 = vmatprep.subr.mxu0 0.0
    %164 = vmatpush1.msra.mxu0 0.0
    %165 = vmatprep.subr.mxu0 0.0
    %166 = vmatpush1.msra.mxu0 0.0
    %167 = vmatprep.subr.mxu0 0.0
    %168 = vmatpush1.msra.mxu0 0.0
    %169 = vmatprep.subr.mxu0 0.0
    %170 = vmatpush1.msra.mxu0 0.0
    %171 = vmatprep.subr.mxu0 0.0
    %172 = vmatpush1.msra.mxu0 0.0
    %173 = vmatprep.subr.mxu0 0.0
    %174 = vmatpush1.msra.mxu0 0.0
    %175 = vmatprep.subr.mxu0 0.0
    %176 = vmatpush1.msra.mxu0 0.0
    %177 = vmatprep.subr.mxu0 0.0
    %178 = vmatpush1.msra.mxu0 0.0
    %179 = vmatprep.subr.mxu0 0.0
    %180 = vmatpush1.msra.mxu0 0.0
    %181 = vmatprep.subr.mxu0 0.0
    %182 = vmatpush1.msra.mxu0 0.0
    %183 = vmatprep.subr.mxu0 0.0
    %184 = vmatpush1.msra.mxu0 0.0
    %185 = vmatprep.subr.mxu0 0.0
    %186 = vmatpush1.msra.mxu0 %v153
    %187 = vmatprep.subr.mxu0 0.0
    %188 = vmatpush2.msra.mxu0 0.0
    %189 = vmatprep.subr.mxu0 0.0
    %190 = vmatpush2.msra.mxu0 0.0
    %191 = vmatprep.subr.mxu0 0.0
    %192 = vmatpush2.msra.mxu0 0.0
    %193 = vmatprep.subr.mxu0 0.0
    %194 = vmatpush2.msra.mxu0 0.0
    %195 = vmatprep.subr.mxu0 0.0
    %196 = vmatpush2.msra.mxu0 0.0
    %197 = vmatprep.subr.mxu0 0.0
    %198 = vmatpush2.msra.mxu0 0.0
    %199 = vmatprep.subr.mxu0 0.0
    %200 = vmatpush2.msra.mxu0 0.0
    %201 = vmatprep.subr.mxu0 0.0
    %202 = vmatpush2.msra.mxu0 0.0
    %203 = vmatprep.subr.mxu0 0.0
    %204 = vmatpush2.msra.mxu0 0.0
    %205 = vmatprep.subr.mxu0 0.0
    %206 = vmatpush2.msra.mxu0 0.0
    %207 = vmatprep.subr.mxu0 0.0
    %208 = vmatpush2.msra.mxu0 0.0
    %209 = vmatprep.subr.mxu0 0.0
    %210 = vmatpush2.msra.mxu0 0.0
    %211 = vmatprep.subr.mxu0 0.0
    %212 = vmatpush2.msra.mxu0 0.0
    %213 = vmatprep.subr.mxu0 0.0
    %214 = vmatpush2.msra.mxu0 0.0
    %215 = vmatprep.subr.mxu0 0.0
    %216 = vmatpush2.msra.mxu0 0.0
    %217 = vmatprep.subr.mxu0 0.0
    %218 = vmatpush2.msra.mxu0 0.0
    %219 = vmatprep.mubr.f32.mxu0 0.0
    %220 = vmatmul.mubr.f32.gmra.mxu0 %v149
    %v221 = vpop.f32.mrf.mxu0
    %v222 = vadd.f32 0.0, %v221
    %v223 = vpop.f32.mrf.mxu0
    %224 = vdwg.mxu0
    %v225 = vsub.f32 %v71, %v222
    %v226 = vmul.f32 %v225, %v225
    %v228 = vsel %vm72, %v226, 0
    %230 = vmatprep.subr.mxu0 0.0
    %231 = vmatpush1.msra.mxu0 0.0
    %232 = vmatprep.subr.mxu0 0.0
    %233 = vmatpush1.msra.mxu0 0.0
    %234 = vmatprep.subr.mxu0 0.0
    %235 = vmatpush1.msra.mxu0 0.0
    %236 = vmatprep.subr.mxu0 0.0
    %237 = vmatpush1.msra.mxu0 0.0
    %238 = vmatprep.subr.mxu0 0.0
    %239 = vmatpush1.msra.mxu0 0.0
    %240 = vmatprep.subr.mxu0 0.0
    %241 = vmatpush1.msra.mxu0 0.0
    %242 = vmatprep.subr.mxu0 0.0
    %243 = vmatpush1.msra.mxu0 0.0
    %244 = vmatprep.subr.mxu0 0.0
    %245 = vmatpush1.msra.mxu0 0.0
    %246 = vmatprep.subr.mxu0 0.0
    %247 = vmatpush1.msra.mxu0 %v66
    %248 = vmatprep.subr.mxu0 0.0
    %249 = vmatpush1.msra.mxu0 %v65
    %250 = vmatprep.subr.mxu0 0.0
    %251 = vmatpush1.msra.mxu0 %v64
    %252 = vmatprep.subr.mxu0 0.0
    %253 = vmatpush1.msra.mxu0 %v63
    %254 = vmatprep.subr.mxu0 0.0
    %255 = vmatpush1.msra.mxu0 %v62
    %256 = vmatprep.subr.mxu0 0.0
    %257 = vmatpush1.msra.mxu0 %v61
    %258 = vmatprep.subr.mxu0 0.0
    %259 = vmatpush1.msra.mxu0 %v60
    %260 = vmatprep.subr.mxu0 0.0
    %261 = vmatpush1.msra.mxu0 %v59
    %262 = vmatprep.subr.mxu0 0.0
    %263 = vmatpush2.msra.mxu0 0.0
    %264 = vmatprep.subr.mxu0 0.0
    %265 = vmatpush2.msra.mxu0 0.0
    %266 = vmatprep.subr.mxu0 0.0
    %267 = vmatpush2.msra.mxu0 0.0
    %268 = vmatprep.subr.mxu0 0.0
    %269 = vmatpush2.msra.mxu0 0.0
    %270 = vmatprep.subr.mxu0 0.0
    %271 = vmatpush2.msra.mxu0 0.0
    %272 = vmatprep.subr.mxu0 0.0
    %273 = vmatpush2.msra.mxu0 0.0
    %274 = vmatprep.subr.mxu0 0.0
    %275 = vmatpush2.msra.mxu0 0.0
    %276 = vmatprep.subr.mxu0 0.0
    %277 = vmatpush2.msra.mxu0 0.0
    %278 = vmatprep.subr.mxu0 0.0
    %279 = vmatpush2.msra.mxu0 0.0
    %280 = vmatprep.subr.mxu0 0.0
    %281 = vmatpush2.msra.mxu0 0.0
    %282 = vmatprep.subr.mxu0 0.0
    %283 = vmatpush2.msra.mxu0 0.0
    %284 = vmatprep.subr.mxu0 0.0
    %285 = vmatpush2.msra.mxu0 0.0
    %286 = vmatprep.subr.mxu0 0.0
    %287 = vmatpush2.msra.mxu0 0.0
    %288 = vmatprep.subr.mxu0 0.0
    %289 = vmatpush2.msra.mxu0 0.0
    %290 = vmatprep.subr.mxu0 0.0
    %291 = vmatpush2.msra.mxu0 0.0
    %292 = vmatprep.subr.mxu0 0.0
    %293 = vmatpush2.msra.mxu0 0.0
    %294 = vmatprep.mubr.f32.mxu0 0.0
    %295 = vmatmul.mubr.f32.gmra.mxu0 %v228
    %v296 = vpop.f32.mrf.mxu0
    %v297 = vadd.f32 0.0, %v296
    %v298 = vpop.f32.mrf.mxu0
    %299 = vdwg.mxu0
    %v300 = vmul.f32 %v297, 0.03125
    %v301 = vadd.f32 %v300, 1e-05
    %v302 = vrsqrt.pop %v301
    %v304 = vsel %vm147, %v302, 0
    %306 = vmatprep.subr.mxu0 0.0
    %307 = vmatpush1.msra.mxu0 0.0
    %308 = vmatprep.subr.mxu0 0.0
    %309 = vmatpush1.msra.mxu0 0.0
    %310 = vmatprep.subr.mxu0 0.0
    %311 = vmatpush1.msra.mxu0 0.0
    %312 = vmatprep.subr.mxu0 0.0
    %313 = vmatpush1.msra.mxu0 0.0
    %314 = vmatprep.subr.mxu0 0.0
    %315 = vmatpush1.msra.mxu0 0.0
    %316 = vmatprep.subr.mxu0 0.0
    %317 = vmatpush1.msra.mxu0 0.0
    %318 = vmatprep.subr.mxu0 0.0
    %319 = vmatpush1.msra.mxu0 0.0
    %320 = vmatprep.subr.mxu0 0.0
    %321 = vmatpush1.msra.mxu0 0.0
    %322 = vmatprep.subr.mxu0 0.0
    %323 = vmatpush1.msra.mxu0 0.0
    %324 = vmatprep.subr.mxu0 0.0
    %325 = vmatpush1.msra.mxu0 0.0
    %326 = vmatprep.subr.mxu0 0.0
    %327 = vmatpush1.msra.mxu0 0.0
    %328 = vmatprep.subr.mxu0 0.0
    %329 = vmatpush1.msra.mxu0 0.0
    %330 = vmatprep.subr.mxu0 0.0
    %331 = vmatpush1.msra.mxu0 0.0
    %332 = vmatprep.subr.mxu0 0.0
    %333 = vmatpush1.msra.mxu0 0.0
    %334 = vmatprep.subr.mxu0 0.0
    %335 = vmatpush1.msra.mxu0 0.0
    %336 = vmatprep.subr.mxu0 0.0
    %337 = vmatpush1.msra.mxu0 %v153
    %338 = vmatprep.subr.mxu0 0.0
    %339 = vmatpush2.msra.mxu0 0.0
    %340 = vmatprep.subr.mxu0 0.0
    %341 = vmatpush2.msra.mxu0 0.0
    %342 = vmatprep.subr.mxu0 0.0
    %343 = vmatpush2.msra.mxu0 0.0
    %344 = vmatprep.subr.mxu0 0.0
    %345 = vmatpush2.msra.mxu0 0.0
    %346 = vmatprep.subr.mxu0 0.0
    %347 = vmatpush2.msra.mxu0 0.0
    %348 = vmatprep.subr.mxu0 0.0
    %349 = vmatpush2.msra.mxu0 0.0
    %350 = vmatprep.subr.mxu0 0.0
    %351 = vmatpush2.msra.mxu0 0.0
    %352 = vmatprep.subr.mxu0 0.0
    %353 = vmatpush2.msra.mxu0 0.0
    %354 = vmatprep.subr.mxu0 0.0
    %355 = vmatpush2.msra.mxu0 0.0
    %356 = vmatprep.subr.mxu0 0.0
    %357 = vmatpush2.msra.mxu0 0.0
    %358 = vmatprep.subr.mxu0 0.0
    %359 = vmatpush2.msra.mxu0 0.0
    %360 = vmatprep.subr.mxu0 0.0
    %361 = vmatpush2.msra.mxu0 0.0
    %362 = vmatprep.subr.mxu0 0.0
    %363 = vmatpush2.msra.mxu0 0.0
    %364 = vmatprep.subr.mxu0 0.0
    %365 = vmatpush2.msra.mxu0 0.0
    %366 = vmatprep.subr.mxu0 0.0
    %367 = vmatpush2.msra.mxu0 0.0
    %368 = vmatprep.subr.mxu0 0.0
    %369 = vmatpush2.msra.mxu0 0.0
    %370 = vmatprep.mubr.f32.mxu0 0.0
    %371 = vmatmul.mubr.f32.gmra.mxu0 %v304
    %v372 = vpop.f32.mrf.mxu0
    %v373 = vadd.f32 0.0, %v372
    %v374 = vpop.f32.mrf.mxu0
    %375 = vdwg.mxu0
    %v376 = vmul.f32 %v225, %v373
    %v377 = vlaneseq
    %v378 = vshrl.u32 %v377, 7
    %v379 = vsub.s32 0, %v378
    %v380 = vrot.slane %v58, %v379
    %v381 = vmul.f32 %v376, %v380
    %v382 = vlaneseq
    %v383 = vshrl.u32 %v382, 7
    %v384 = vsub.s32 1, %v383
    %v385 = vrot.slane %v58, %v384
    %v386 = vadd.f32 %v381, %v385
    %v387 = vld [vmem:[%s6] sm:$0xff]
    %v388 = vld [vmem:[%s6 + $0x8] sm:$0xff]
    %vm389 = vcmask 64512
    %v391 = vsel %vm389, %v387, 0
    %v394 = vsel %vm389, %v388, 0
    %396 = vmatprep.subr.mxu0 0.0
    %397 = vmatpush1.msra.mxu0 0.0
    %398 = vmatprep.subr.mxu0 0.0
    %399 = vmatpush1.msra.mxu0 0.0
    %400 = vmatprep.subr.mxu0 0.0
    %401 = vmatpush1.msra.mxu0 0.0
    %402 = vmatprep.subr.mxu0 0.0
    %403 = vmatpush1.msra.mxu0 0.0
    %404 = vmatprep.subr.mxu0 0.0
    %405 = vmatpush1.msra.mxu0 0.0
    %406 = vmatprep.subr.mxu0 0.0
    %407 = vmatpush1.msra.mxu0 0.0
    %408 = vmatprep.subr.mxu0 0.0
    %409 = vmatpush1.msra.mxu0 0.0
    %410 = vmatprep.subr.mxu0 0.0
    %411 = vmatpush1.msra.mxu0 0.0
    %412 = vmatprep.subr.mxu0 0.0
    %413 = vmatpush1.msra.mxu0 0.0
    %414 = vmatprep.subr.mxu0 0.0
    %415 = vmatpush1.msra.mxu0 0.0
    %416 = vmatprep.subr.mxu0 0.0
    %417 = vmatpush1.msra.mxu0 0.0
    %418 = vmatprep.subr.mxu0 0.0
    %419 = vmatpush1.msra.mxu0 0.0
    %420 = vmatprep.subr.mxu0 0.0
    %421 = vmatpush1.msra.mxu0 0.0
    %422 = vmatprep.subr.mxu0 0.0
    %423 = vmatpush1.msra.mxu0 0.0
    %424 = vmatprep.subr.mxu0 0.0
    %425 = vmatpush1.msra.mxu0 0.0
    %426 = vmatprep.subr.mxu0 0.0
    %427 = vmatpush1.msra.mxu0 %v386
    %428 = vmatprep.subr.mxu0 0.0
    %429 = vmatpush2.msra.mxu0 0.0
    %430 = vmatprep.subr.mxu0 0.0
    %431 = vmatpush2.msra.mxu0 0.0
    %432 = vmatprep.subr.mxu0 0.0
    %433 = vmatpush2.msra.mxu0 0.0
    %434 = vmatprep.subr.mxu0 0.0
    %435 = vmatpush2.msra.mxu0 0.0
    %436 = vmatprep.subr.mxu0 0.0
    %437 = vmatpush2.msra.mxu0 0.0
    %438 = vmatprep.subr.mxu0 0.0
    %439 = vmatpush2.msra.mxu0 0.0
    %440 = vmatprep.subr.mxu0 0.0
    %441 = vmatpush2.msra.mxu0 0.0
    %442 = vmatprep.subr.mxu0 0.0
    %443 = vmatpush2.msra.mxu0 0.0
    %444 = vmatprep.subr.mxu0 0.0
    %445 = vmatpush2.msra.mxu0 0.0
    %446 = vmatprep.subr.mxu0 0.0
    %447 = vmatpush2.msra.mxu0 0.0
    %448 = vmatprep.subr.mxu0 0.0
    %449 = vmatpush2.msra.mxu0 0.0
    %450 = vmatprep.subr.mxu0 0.0
    %451 = vmatpush2.msra.mxu0 0.0
    %452 = vmatprep.subr.mxu0 0.0
    %453 = vmatpush2.msra.mxu0 0.0
    %454 = vmatprep.subr.mxu0 0.0
    %455 = vmatpush2.msra.mxu0 0.0
    %456 = vmatprep.subr.mxu0 0.0
    %457 = vmatpush2.msra.mxu0 0.0
    %458 = vmatprep.subr.mxu0 0.0
    %459 = vmatpush2.msra.mxu0 0.0
    %460 = vmatprep.mubr.f32.mxu0 0.0
    %461 = vmatmul.mubr.f32.gmra.mxu0 %v391
    %v462 = vpop.f32.mrf.mxu0
    %v463 = vadd.f32 0.0, %v462
    %v464 = vpop.f32.mrf.mxu0
    %465 = vmatprep.mubr.f32.mxu0 0.0
    %466 = vmatmul.mubr.f32.gmra.mxu0 %v394
    %v467 = vpop.f32.mrf.mxu0
    %v468 = vadd.f32 0.0, %v467
    %v469 = vpop.f32.mrf.mxu0
    %470 = vdwg.mxu0
    %v471 = vmul.f32 %v463, %v463
    %v472 = vmul.f32 %v468, %v468
    %v473 = vadd.f32 %v471, %v472
    %v475 = vsel %vm72, %v473, 0
    %477 = vmatprep.subr.mxu0 0.0
    %478 = vmatpush1.msra.mxu0 0.0
    %479 = vmatprep.subr.mxu0 0.0
    %480 = vmatpush1.msra.mxu0 0.0
    %481 = vmatprep.subr.mxu0 0.0
    %482 = vmatpush1.msra.mxu0 0.0
    %483 = vmatprep.subr.mxu0 0.0
    %484 = vmatpush1.msra.mxu0 0.0
    %485 = vmatprep.subr.mxu0 0.0
    %486 = vmatpush1.msra.mxu0 0.0
    %487 = vmatprep.subr.mxu0 0.0
    %488 = vmatpush1.msra.mxu0 0.0
    %489 = vmatprep.subr.mxu0 0.0
    %490 = vmatpush1.msra.mxu0 0.0
    %491 = vmatprep.subr.mxu0 0.0
    %492 = vmatpush1.msra.mxu0 0.0
    %493 = vmatprep.subr.mxu0 0.0
    %494 = vmatpush1.msra.mxu0 %v66
    %495 = vmatprep.subr.mxu0 0.0
    %496 = vmatpush1.msra.mxu0 %v65
    %497 = vmatprep.subr.mxu0 0.0
    %498 = vmatpush1.msra.mxu0 %v64
    %499 = vmatprep.subr.mxu0 0.0
    %500 = vmatpush1.msra.mxu0 %v63
    %501 = vmatprep.subr.mxu0 0.0
    %502 = vmatpush1.msra.mxu0 %v62
    %503 = vmatprep.subr.mxu0 0.0
    %504 = vmatpush1.msra.mxu0 %v61
    %505 = vmatprep.subr.mxu0 0.0
    %506 = vmatpush1.msra.mxu0 %v60
    %507 = vmatprep.subr.mxu0 0.0
    %508 = vmatpush1.msra.mxu0 %v59
    %509 = vmatprep.subr.mxu0 0.0
    %510 = vmatpush2.msra.mxu0 0.0
    %511 = vmatprep.subr.mxu0 0.0
    %512 = vmatpush2.msra.mxu0 0.0
    %513 = vmatprep.subr.mxu0 0.0
    %514 = vmatpush2.msra.mxu0 0.0
    %515 = vmatprep.subr.mxu0 0.0
    %516 = vmatpush2.msra.mxu0 0.0
    %517 = vmatprep.subr.mxu0 0.0
    %518 = vmatpush2.msra.mxu0 0.0
    %519 = vmatprep.subr.mxu0 0.0
    %520 = vmatpush2.msra.mxu0 0.0
    %521 = vmatprep.subr.mxu0 0.0
    %522 = vmatpush2.msra.mxu0 0.0
    %523 = vmatprep.subr.mxu0 0.0
    %524 = vmatpush2.msra.mxu0 0.0
    %525 = vmatprep.subr.mxu0 0.0
    %526 = vmatpush2.msra.mxu0 0.0
    %527 = vmatprep.subr.mxu0 0.0
    %528 = vmatpush2.msra.mxu0 0.0
    %529 = vmatprep.subr.mxu0 0.0
    %530 = vmatpush2.msra.mxu0 0.0
    %531 = vmatprep.subr.mxu0 0.0
    %532 = vmatpush2.msra.mxu0 0.0
    %533 = vmatprep.subr.mxu0 0.0
    %534 = vmatpush2.msra.mxu0 0.0
    %535 = vmatprep.subr.mxu0 0.0
    %536 = vmatpush2.msra.mxu0 0.0
    %537 = vmatprep.subr.mxu0 0.0
    %538 = vmatpush2.msra.mxu0 0.0
    %539 = vmatprep.subr.mxu0 0.0
    %540 = vmatpush2.msra.mxu0 0.0
    %541 = vmatprep.mubr.f32.mxu0 0.0
    %542 = vmatmul.mubr.f32.gmra.mxu0 %v475
    %v543 = vpop.f32.mrf.mxu0
    %v544 = vadd.f32 0.0, %v543
    %v545 = vpop.f32.mrf.mxu0
    %546 = vdwg.mxu0
    %v547 = vlaneseq
    %v548 = vshrl.u32 %v547, 7
    %vm549 = vcmp.lt.s32.totalorder %v548, 5
    %v550 = vsel %vm549, 1, 0
    %vm551 = vcmp.eq.s32.totalorder %v550, 1
    %v552 = vsel %vm551, %v544, 1e+30
    %v554 = vcombine.high %v552, %v552
    %v556 = vunpack.c.l.s4 1966171168
    %v557 = vunpack.c.0.s8 %v556
    %v558 = vlaneseq
    %v559 = vshrl.u32 %v558, 7
    %v560 = vsub.s32 %v557, %v559
    %v561 = vrot.slane %v552, %v560
    %v563 = vunpack.c.l.s4 1966171168
    %v564 = vunpack.c.0.s8 %v563
    %v565 = vlaneseq
    %v566 = vshrl.u32 %v565, 7
    %v567 = vsub.s32 %v564, %v566
    %v568 = vrot.slane %v554, %v567
    %v569 = vcombine.high %v561, %v561
    %v570 = vcombine.high %v568, %v568
    %v572 = vunpack.c.l.s4 1966171168
    %v573 = vunpack.c.0.s8 %v572
    %v574 = vlaneseq
    %v575 = vshrl.u32 %v574, 7
    %v576 = vsub.s32 %v573, %v575
    %v577 = vrot.slane %v561, %v576
    %v579 = vunpack.c.l.s4 1966171168
    %v580 = vunpack.c.0.s8 %v579
    %v581 = vlaneseq
    %v582 = vshrl.u32 %v581, 7
    %v583 = vsub.s32 %v580, %v582
    %v584 = vrot.slane %v568, %v583
    %v586 = vunpack.c.l.s4 1966171168
    %v587 = vunpack.c.0.s8 %v586
    %v588 = vlaneseq
    %v589 = vshrl.u32 %v588, 7
    %v590 = vsub.s32 %v587, %v589
    %v591 = vrot.slane %v569, %v590
    %v593 = vunpack.c.l.s4 1966171168
    %v594 = vunpack.c.0.s8 %v593
    %v595 = vlaneseq
    %v596 = vshrl.u32 %v595, 7
    %v597 = vsub.s32 %v594, %v596
    %v598 = vrot.slane %v570, %v597
    %v599 = vcombine.high %v577, %v577
    %v600 = vcombine.high %v584, %v584
    %v601 = vcombine.high %v591, %v591
    %v602 = vcombine.high %v598, %v598
    %v603 = vlaneseq
    %v604 = vshrl.u32 %v603, 7
    %v605 = vsub.s32 0, %v604
    %v606 = vrot.slane %v577, %v605
    %v607 = vlaneseq
    %v608 = vshrl.u32 %v607, 7
    %v609 = vsub.s32 0, %v608
    %v610 = vrot.slane %v591, %v609
    %v611 = vlaneseq
    %v612 = vshrl.u32 %v611, 7
    %v613 = vsub.s32 0, %v612
    %v614 = vrot.slane %v599, %v613
    %v615 = vlaneseq
    %v616 = vshrl.u32 %v615, 7
    %v617 = vsub.s32 0, %v616
    %v618 = vrot.slane %v601, %v617
    %v619 = vlaneseq
    %v620 = vshrl.u32 %v619, 7
    %v621 = vsub.s32 0, %v620
    %v622 = vrot.slane %v584, %v621
    %v623 = vlaneseq
    %v624 = vshrl.u32 %v623, 7
    %v625 = vsub.s32 0, %v624
    %v626 = vrot.slane %v598, %v625
    %v627 = vlaneseq
    %v628 = vshrl.u32 %v627, 7
    %v629 = vsub.s32 0, %v628
    %v630 = vrot.slane %v600, %v629
    %v631 = vlaneseq
    %v632 = vshrl.u32 %v631, 7
    %v633 = vsub.s32 0, %v632
    %v634 = vrot.slane %v602, %v633
    %vm643 = vcmp.lt.f32.partialorder %v552, %v606
    %vm644 = vcmp.lt.f32.partialorder %v552, %v610
    %vm645 = vcmp.lt.f32.partialorder %v552, %v614
    %vm646 = vcmp.lt.f32.partialorder %v552, %v618
    %vm647 = vcmp.lt.f32.partialorder %v552, %v622
    %vm648 = vcmp.lt.f32.partialorder %v552, %v626
    %vm649 = vcmp.lt.f32.partialorder %v552, %v630
    %vm650 = vcmp.lt.f32.partialorder %v552, %v634
    %v651 = vsel %vm643, 1, 0
    %v652 = vsel %vm644, 1, 0
    %v653 = vsel %vm645, 1, 0
    %v654 = vsel %vm646, 1, 0
    %v655 = vsel %vm647, 1, 0
    %v656 = vsel %vm648, 1, 0
    %v657 = vsel %vm649, 1, 0
    %v658 = vsel %vm650, 1, 0
    %v659 = vcvt.s32.f32 %v651
    %v660 = vcvt.s32.f32 %v652
    %v661 = vcvt.s32.f32 %v653
    %v662 = vcvt.s32.f32 %v654
    %v663 = vcvt.s32.f32 %v655
    %v664 = vcvt.s32.f32 %v656
    %v665 = vcvt.s32.f32 %v657
    %v666 = vcvt.s32.f32 %v658
    %v667 = vsel %vm147, %v659, 0.0
    %v668 = vrot.slane %v667, 4
    %v669 = vadd.f32 %v667, %v668
    %v670 = vrot.slane %v669, 2
    %v671 = vadd.f32 %v669, %v670
    %v672 = vrot.slane %v671, 1
    %v673 = vadd.f32 %v671, %v672
    %v674 = vsel %vm147, %v660, 0.0
    %v675 = vrot.slane %v674, 4
    %v676 = vadd.f32 %v674, %v675
    %v677 = vrot.slane %v676, 2
    %v678 = vadd.f32 %v676, %v677
    %v679 = vrot.slane %v678, 1
    %v680 = vadd.f32 %v678, %v679
    %v681 = vsel %vm147, %v661, 0.0
    %v682 = vrot.slane %v681, 4
    %v683 = vadd.f32 %v681, %v682
    %v684 = vrot.slane %v683, 2
    %v685 = vadd.f32 %v683, %v684
    %v686 = vrot.slane %v685, 1
    %v687 = vadd.f32 %v685, %v686
    %v688 = vsel %vm147, %v662, 0.0
    %v689 = vrot.slane %v688, 4
    %v690 = vadd.f32 %v688, %v689
    %v691 = vrot.slane %v690, 2
    %v692 = vadd.f32 %v690, %v691
    %v693 = vrot.slane %v692, 1
    %v694 = vadd.f32 %v692, %v693
    %v695 = vsel %vm147, %v663, 0.0
    %v696 = vrot.slane %v695, 4
    %v697 = vadd.f32 %v695, %v696
    %v698 = vrot.slane %v697, 2
    %v699 = vadd.f32 %v697, %v698
    %v700 = vrot.slane %v699, 1
    %v701 = vadd.f32 %v699, %v700
    %v702 = vsel %vm147, %v664, 0.0
    %v703 = vrot.slane %v702, 4
    %v704 = vadd.f32 %v702, %v703
    %v705 = vrot.slane %v704, 2
    %v706 = vadd.f32 %v704, %v705
    %v707 = vrot.slane %v706, 1
    %v708 = vadd.f32 %v706, %v707
    %v709 = vsel %vm147, %v665, 0.0
    %v710 = vrot.slane %v709, 4
    %v711 = vadd.f32 %v709, %v710
    %v712 = vrot.slane %v711, 2
    %v713 = vadd.f32 %v711, %v712
    %v714 = vrot.slane %v713, 1
    %v715 = vadd.f32 %v713, %v714
    %v716 = vsel %vm147, %v666, 0.0
    %v717 = vrot.slane %v716, 4
    %v718 = vadd.f32 %v716, %v717
    %v719 = vrot.slane %v718, 2
    %v720 = vadd.f32 %v718, %v719
    %v721 = vrot.slane %v720, 1
    %v722 = vadd.f32 %v720, %v721
    %vm723 = vcmp.le.f32.partialorder %v673, 2.0
    %vm724 = vcmp.le.f32.partialorder %v680, 2.0
    %vm725 = vcmp.le.f32.partialorder %v687, 2.0
    %vm726 = vcmp.le.f32.partialorder %v694, 2.0
    %vm727 = vcmp.le.f32.partialorder %v701, 2.0
    %vm728 = vcmp.le.f32.partialorder %v708, 2.0
    %vm729 = vcmp.le.f32.partialorder %v715, 2.0
    %vm730 = vcmp.le.f32.partialorder %v722, 2.0
    %v731 = vrot.slane %v552, 1
    %v732 = vrot.slane %v552, 2
    %v733 = vrot.slane %v552, 3
    %v734 = vrot.slane %v552, 4
    %v735 = vrot.slane %v552, 5
    %v736 = vrot.slane %v552, 6
    %v737 = vrot.slane %v552, 7
    %v746 = vsel %vm723, %v552, -1e+30
    %v747 = vsel %vm724, %v731, -1e+30
    %v748 = vsel %vm725, %v732, -1e+30
    %v749 = vsel %vm726, %v733, -1e+30
    %v750 = vsel %vm727, %v734, -1e+30
    %v751 = vsel %vm728, %v735, -1e+30
    %v752 = vsel %vm729, %v736, -1e+30
    %v753 = vsel %vm730, %v737, -1e+30
    %vm754 = vcmask 8192
    %v755 = vsel %vm754, %v746, -inf
    %v756 = vsel %vm754, %v747, -inf
    %v757 = vsel %vm754, %v748, -inf
    %v758 = vsel %vm754, %v749, -inf
    %v759 = vsel %vm754, %v750, -inf
    %v760 = vmax.f32 %v755, %v759
    %v761 = vsel %vm754, %v751, -inf
    %v762 = vmax.f32 %v756, %v761
    %v763 = vsel %vm754, %v752, -inf
    %v764 = vmax.f32 %v757, %v763
    %v765 = vsel %vm754, %v753, -inf
    %v766 = vmax.f32 %v758, %v765
    %v767 = vmax.f32 %v760, %v762
    %v768 = vmax.f32 %v764, %v766
    %v769 = vmax.f32 %v767, %v768
    %v770 = vadd.f32 %v769, 1e-06
    %v771 = vlaneseq
    %v772 = vshrl.u32 %v771, 7
    %v773 = vsub.s32 0, %v772
    %v774 = vrot.slane %v770, %v773
    %v775 = vrcp.pop %v774
    %v776 = vmul.f32 %v544, %v775
    %v777 = vsel %vm551, %v776, 1e+30
    %v778 = vlaneseq
    %v779 = vshrl.u32 %v778, 7
    %v780 = vsub.s32 0, %v779
    %v781 = vrot.slane %v777, %v780
    %783 = vbcast.lane.b32.xlu0 %v781, 256
    %v784 = vpop.permute.xlu0 %783
    %v785 = vlaneseq
    %v786 = vshrl.u32 %v785, 7
    %v787 = vsub.s32 1, %v786
    %v788 = vrot.slane %v777, %v787
    %790 = vbcast.lane.b32.xlu0 %v788, 256
    %v791 = vpop.permute.xlu0 %790
    %v792 = vlaneseq
    %v793 = vshrl.u32 %v792, 7
    %v794 = vsub.s32 2, %v793
    %v795 = vrot.slane %v777, %v794
    %797 = vbcast.lane.b32.xlu0 %v795, 256
    %v798 = vpop.permute.xlu0 %797
    %v799 = vlaneseq
    %v800 = vshrl.u32 %v799, 7
    %v801 = vsub.s32 3, %v800
    %v802 = vrot.slane %v777, %v801
    %804 = vbcast.lane.b32.xlu0 %v802, 256
    %v805 = vpop.permute.xlu0 %804
    %v806 = vlaneseq
    %v807 = vshrl.u32 %v806, 7
    %v808 = vsub.s32 4, %v807
    %v809 = vrot.slane %v777, %v808
    %811 = vbcast.lane.b32.xlu0 %v809, 256
    %v812 = vpop.permute.xlu0 %811
    %v813 = vlaneseq
    %v814 = vshrl.u32 %v813, 7
    %v815 = vsub.s32 5, %v814
    %v816 = vrot.slane %v777, %v815
    %818 = vbcast.lane.b32.xlu0 %v816, 256
    %v819 = vpop.permute.xlu0 %818
    %v820 = vlaneseq
    %v821 = vshrl.u32 %v820, 7
    %v822 = vsub.s32 6, %v821
    %v823 = vrot.slane %v777, %v822
    %825 = vbcast.lane.b32.xlu0 %v823, 256
    %v826 = vpop.permute.xlu0 %825
    %v827 = vlaneseq
    %v828 = vshrl.u32 %v827, 7
    %v829 = vsub.s32 7, %v828
    %v830 = vrot.slane %v777, %v829
    %832 = vbcast.lane.b32.xlu0 %v830, 256
    %v833 = vpop.permute.xlu0 %832
    %v834 = vlaneseq
    %v835 = vshrl.u32 %v834, 7
    %v836 = vsub.s32 0, %v835
    %v837 = vrot.slane %v784, %v836
    %v838 = vlaneseq
    %v839 = vshrl.u32 %v838, 7
    %v840 = vsub.s32 1, %v839
    %v841 = vrot.slane %v784, %v840
    %v842 = vlaneseq
    %v843 = vshrl.u32 %v842, 7
    %v844 = vsub.s32 0, %v843
    %v845 = vrot.slane %v791, %v844
    %v846 = vlaneseq
    %v847 = vshrl.u32 %v846, 7
    %v848 = vsub.s32 1, %v847
    %v849 = vrot.slane %v791, %v848
    %v850 = vlaneseq
    %v851 = vshrl.u32 %v850, 7
    %v852 = vsub.s32 0, %v851
    %v853 = vrot.slane %v798, %v852
    %v854 = vlaneseq
    %v855 = vshrl.u32 %v854, 7
    %v856 = vsub.s32 1, %v855
    %v857 = vrot.slane %v798, %v856
    %v858 = vlaneseq
    %v859 = vshrl.u32 %v858, 7
    %v860 = vsub.s32 0, %v859
    %v861 = vrot.slane %v805, %v860
    %v862 = vlaneseq
    %v863 = vshrl.u32 %v862, 7
    %v864 = vsub.s32 1, %v863
    %v865 = vrot.slane %v805, %v864
    %v866 = vlaneseq
    %v867 = vshrl.u32 %v866, 7
    %v868 = vsub.s32 0, %v867
    %v869 = vrot.slane %v812, %v868
    %v870 = vlaneseq
    %v871 = vshrl.u32 %v870, 7
    %v872 = vsub.s32 1, %v871
    %v873 = vrot.slane %v812, %v872
    %v874 = vlaneseq
    %v875 = vshrl.u32 %v874, 7
    %v876 = vsub.s32 0, %v875
    %v877 = vrot.slane %v819, %v876
    %v878 = vlaneseq
    %v879 = vshrl.u32 %v878, 7
    %v880 = vsub.s32 1, %v879
    %v881 = vrot.slane %v819, %v880
    %v882 = vlaneseq
    %v883 = vshrl.u32 %v882, 7
    %v884 = vsub.s32 0, %v883
    %v885 = vrot.slane %v826, %v884
    %v886 = vlaneseq
    %v887 = vshrl.u32 %v886, 7
    %v888 = vsub.s32 1, %v887
    %v889 = vrot.slane %v826, %v888
    %v890 = vlaneseq
    %v891 = vshrl.u32 %v890, 7
    %v892 = vsub.s32 0, %v891
    %v893 = vrot.slane %v833, %v892
    %v894 = vlaneseq
    %v895 = vshrl.u32 %v894, 7
    %v896 = vsub.s32 1, %v895
    %v897 = vrot.slane %v833, %v896
    %vm898 = vcmp.lt.f32.partialorder %v777, %v837
    %vm899 = vcmp.lt.f32.partialorder %v777, %v841
    %vm900 = vcmp.lt.f32.partialorder %v777, %v845
    %vm901 = vcmp.lt.f32.partialorder %v777, %v849
    %vm902 = vcmp.lt.f32.partialorder %v777, %v853
    %vm903 = vcmp.lt.f32.partialorder %v777, %v857
    %vm904 = vcmp.lt.f32.partialorder %v777, %v861
    %vm905 = vcmp.lt.f32.partialorder %v777, %v865
    %vm906 = vcmp.lt.f32.partialorder %v777, %v869
    %vm907 = vcmp.lt.f32.partialorder %v777, %v873
    %vm908 = vcmp.lt.f32.partialorder %v777, %v877
    %vm909 = vcmp.lt.f32.partialorder %v777, %v881
    %vm910 = vcmp.lt.f32.partialorder %v777, %v885
    %vm911 = vcmp.lt.f32.partialorder %v777, %v889
    %vm912 = vcmp.lt.f32.partialorder %v777, %v893
    %vm913 = vcmp.lt.f32.partialorder %v777, %v897
    %v914 = vsel %vm898, 1, 0
    %v915 = vsel %vm899, 1, 0
    %v916 = vsel %vm900, 1, 0
    %v917 = vsel %vm901, 1, 0
    %v918 = vsel %vm902, 1, 0
    %v919 = vsel %vm903, 1, 0
    %v920 = vsel %vm904, 1, 0
    %v921 = vsel %vm905, 1, 0
    %v922 = vsel %vm906, 1, 0
    %v923 = vsel %vm907, 1, 0
    %v924 = vsel %vm908, 1, 0
    %v925 = vsel %vm909, 1, 0
    %v926 = vsel %vm910, 1, 0
    %v927 = vsel %vm911, 1, 0
    %v928 = vsel %vm912, 1, 0
    %v929 = vsel %vm913, 1, 0
    %v930 = vcvt.s32.f32 %v914
    %v931 = vcvt.s32.f32 %v915
    %v932 = vcvt.s32.f32 %v916
    %v933 = vcvt.s32.f32 %v917
    %v934 = vcvt.s32.f32 %v918
    %v935 = vcvt.s32.f32 %v919
    %v936 = vcvt.s32.f32 %v920
    %v937 = vcvt.s32.f32 %v921
    %v938 = vcvt.s32.f32 %v922
    %v939 = vcvt.s32.f32 %v923
    %v940 = vcvt.s32.f32 %v924
    %v941 = vcvt.s32.f32 %v925
    %v942 = vcvt.s32.f32 %v926
    %v943 = vcvt.s32.f32 %v927
    %v944 = vcvt.s32.f32 %v928
    %v945 = vcvt.s32.f32 %v929
    %v946 = vsel %vm147, %v930, 0.0
    %947 = vadd.xlane.f32.xlu0 %v946
    %v948 = vpop.xlane.xlu0 %947
    %v949 = vsel %vm147, %v931, 0.0
    %950 = vadd.xlane.f32.xlu0 %v949
    %v951 = vpop.xlane.xlu0 %950
    %v952 = vsel %vm147, %v932, 0.0
    %953 = vadd.xlane.f32.xlu0 %v952
    %v954 = vpop.xlane.xlu0 %953
    %v955 = vsel %vm147, %v933, 0.0
    %956 = vadd.xlane.f32.xlu0 %v955
    %v957 = vpop.xlane.xlu0 %956
    %v958 = vsel %vm147, %v934, 0.0
    %959 = vadd.xlane.f32.xlu0 %v958
    %v960 = vpop.xlane.xlu0 %959
    %v961 = vsel %vm147, %v935, 0.0
    %962 = vadd.xlane.f32.xlu0 %v961
    %v963 = vpop.xlane.xlu0 %962
    %v964 = vsel %vm147, %v936, 0.0
    %965 = vadd.xlane.f32.xlu0 %v964
    %v966 = vpop.xlane.xlu0 %965
    %v967 = vsel %vm147, %v937, 0.0
    %968 = vadd.xlane.f32.xlu0 %v967
    %v969 = vpop.xlane.xlu0 %968
    %v970 = vsel %vm147, %v938, 0.0
    %971 = vadd.xlane.f32.xlu0 %v970
    %v972 = vpop.xlane.xlu0 %971
    %v973 = vsel %vm147, %v939, 0.0
    %974 = vadd.xlane.f32.xlu0 %v973
    %v975 = vpop.xlane.xlu0 %974
    %v976 = vsel %vm147, %v940, 0.0
    %977 = vadd.xlane.f32.xlu0 %v976
    %v978 = vpop.xlane.xlu0 %977
    %v979 = vsel %vm147, %v941, 0.0
    %980 = vadd.xlane.f32.xlu0 %v979
    %v981 = vpop.xlane.xlu0 %980
    %v982 = vsel %vm147, %v942, 0.0
    %983 = vadd.xlane.f32.xlu0 %v982
    %v984 = vpop.xlane.xlu0 %983
    %v985 = vsel %vm147, %v943, 0.0
    %986 = vadd.xlane.f32.xlu0 %v985
    %v987 = vpop.xlane.xlu0 %986
    %v988 = vsel %vm147, %v944, 0.0
    %989 = vadd.xlane.f32.xlu0 %v988
    %v990 = vpop.xlane.xlu0 %989
    %v991 = vsel %vm147, %v945, 0.0
    %992 = vadd.xlane.f32.xlu0 %v991
    %v993 = vpop.xlane.xlu0 %992
    %v1010 = vlaneseq
    %v1011 = vand.u32 %v1010, 127
    %v1012 = vlaneseq
    %v1013 = vshrl.u32 %v1012, 7
    %v1014 = vsub.s32 %v1011, %v1013
    %v1015 = vrot.slane %v948, %v1014
    %v1016 = vlaneseq
    %v1017 = vshrl.u32 %v1016, 7
    %v1018 = vsub.s32 %v1011, %v1017
    %v1019 = vrot.slane %v951, %v1018
    %v1020 = vlaneseq
    %v1021 = vshrl.u32 %v1020, 7
    %v1022 = vsub.s32 %v1011, %v1021
    %v1023 = vrot.slane %v954, %v1022
    %v1024 = vlaneseq
    %v1025 = vshrl.u32 %v1024, 7
    %v1026 = vsub.s32 %v1011, %v1025
    %v1027 = vrot.slane %v957, %v1026
    %v1028 = vlaneseq
    %v1029 = vshrl.u32 %v1028, 7
    %v1030 = vsub.s32 %v1011, %v1029
    %v1031 = vrot.slane %v960, %v1030
    %v1032 = vlaneseq
    %v1033 = vshrl.u32 %v1032, 7
    %v1034 = vsub.s32 %v1011, %v1033
    %v1035 = vrot.slane %v963, %v1034
    %v1036 = vlaneseq
    %v1037 = vshrl.u32 %v1036, 7
    %v1038 = vsub.s32 %v1011, %v1037
    %v1039 = vrot.slane %v966, %v1038
    %v1040 = vlaneseq
    %v1041 = vshrl.u32 %v1040, 7
    %v1042 = vsub.s32 %v1011, %v1041
    %v1043 = vrot.slane %v969, %v1042
    %v1044 = vlaneseq
    %v1045 = vshrl.u32 %v1044, 7
    %v1046 = vsub.s32 %v1011, %v1045
    %v1047 = vrot.slane %v972, %v1046
    %v1048 = vlaneseq
    %v1049 = vshrl.u32 %v1048, 7
    %v1050 = vsub.s32 %v1011, %v1049
    %v1051 = vrot.slane %v975, %v1050
    %v1052 = vlaneseq
    %v1053 = vshrl.u32 %v1052, 7
    %v1054 = vsub.s32 %v1011, %v1053
    %v1055 = vrot.slane %v978, %v1054
    %v1056 = vlaneseq
    %v1057 = vshrl.u32 %v1056, 7
    %v1058 = vsub.s32 %v1011, %v1057
    %v1059 = vrot.slane %v981, %v1058
    %v1060 = vlaneseq
    %v1061 = vshrl.u32 %v1060, 7
    %v1062 = vsub.s32 %v1011, %v1061
    %v1063 = vrot.slane %v984, %v1062
    %v1064 = vlaneseq
    %v1065 = vshrl.u32 %v1064, 7
    %v1066 = vsub.s32 %v1011, %v1065
    %v1067 = vrot.slane %v987, %v1066
    %v1068 = vlaneseq
    %v1069 = vshrl.u32 %v1068, 7
    %v1070 = vsub.s32 %v1011, %v1069
    %v1071 = vrot.slane %v990, %v1070
    %v1072 = vlaneseq
    %v1073 = vshrl.u32 %v1072, 7
    %v1074 = vsub.s32 %v1011, %v1073
    %v1075 = vrot.slane %v993, %v1074
    %vm1076 = vcmask 1041409
    %v1077 = vsel %vm1076, %v1019, %v1015
    %v1078 = vsel %vm1076, %v1027, %v1023
    %v1079 = vsel %vm1076, %v1035, %v1031
    %v1080 = vsel %vm1076, %v1043, %v1039
    %v1081 = vsel %vm1076, %v1051, %v1047
    %v1082 = vsel %vm1076, %v1059, %v1055
    %v1083 = vsel %vm1076, %v1067, %v1063
    %v1084 = vsel %vm1076, %v1075, %v1071
    %vm1093 = vcmask 58368
    %v1094 = vsel %vm1093, %v1077, 0.0
    %1095 = vadd.xlane.f32.xlu0 %v1094
    %v1096 = vpop.xlane.xlu0 %1095
    %v1097 = vsel %vm1093, %v1078, 0.0
    %1098 = vadd.xlane.f32.xlu0 %v1097
    %v1099 = vpop.xlane.xlu0 %1098
    %v1100 = vsel %vm1093, %v1079, 0.0
    %1101 = vadd.xlane.f32.xlu0 %v1100
    %v1102 = vpop.xlane.xlu0 %1101
    %v1103 = vsel %vm1093, %v1080, 0.0
    %1104 = vadd.xlane.f32.xlu0 %v1103
    %v1105 = vpop.xlane.xlu0 %1104
    %v1106 = vsel %vm1093, %v1081, 0.0
    %1107 = vadd.xlane.f32.xlu0 %v1106
    %v1108 = vpop.xlane.xlu0 %1107
    %v1109 = vsel %vm1093, %v1082, 0.0
    %1110 = vadd.xlane.f32.xlu0 %v1109
    %v1111 = vpop.xlane.xlu0 %1110
    %v1112 = vsel %vm1093, %v1083, 0.0
    %1113 = vadd.xlane.f32.xlu0 %v1112
    %v1114 = vpop.xlane.xlu0 %1113
    %v1115 = vsel %vm1093, %v1084, 0.0
    %1116 = vadd.xlane.f32.xlu0 %v1115
    %v1117 = vpop.xlane.xlu0 %1116
    %s1118 = sld [smem:[#allocation2]]
    %s1119 = sld [smem:[#allocation2 + $0x1]]
    %s1120 = sld [smem:[#allocation2 + $0x2]]
    %v1121 = vstv %s1118
    %vm1122 = vcmp.le.f32.partialorder %v1096, %v1121
    %vm1123 = vcmp.le.f32.partialorder %v1099, %v1121
    %vm1124 = vcmp.le.f32.partialorder %v1102, %v1121
    %vm1125 = vcmp.le.f32.partialorder %v1105, %v1121
    %vm1126 = vcmp.le.f32.partialorder %v1108, %v1121
    %vm1127 = vcmp.le.f32.partialorder %v1111, %v1121
    %vm1128 = vcmp.le.f32.partialorder %v1114, %v1121
    %vm1129 = vcmp.le.f32.partialorder %v1117, %v1121
    %v1131 = vlaneseq
    %v1132 = vshrl.u32 %v1131, 7
    %v1133 = vsub.s32 0, %v1132
    %v1134 = vrot.slane %v777, %v1133
    %1136 = vbcast.lane.b32.xlu0 %v1134, 256
    %v1137 = vpop.permute.xlu0 %1136
    %v1138 = vlaneseq
    %v1139 = vshrl.u32 %v1138, 7
    %v1140 = vsub.s32 1, %v1139
    %v1141 = vrot.slane %v777, %v1140
    %1143 = vbcast.lane.b32.xlu0 %v1141, 256
    %v1144 = vpop.permute.xlu0 %1143
    %v1145 = vlaneseq
    %v1146 = vshrl.u32 %v1145, 7
    %v1147 = vsub.s32 2, %v1146
    %v1148 = vrot.slane %v777, %v1147
    %1150 = vbcast.lane.b32.xlu0 %v1148, 256
    %v1151 = vpop.permute.xlu0 %1150
    %v1152 = vlaneseq
    %v1153 = vshrl.u32 %v1152, 7
    %v1154 = vsub.s32 3, %v1153
    %v1155 = vrot.slane %v777, %v1154
    %1157 = vbcast.lane.b32.xlu0 %v1155, 256
    %v1158 = vpop.permute.xlu0 %1157
    %v1159 = vlaneseq
    %v1160 = vshrl.u32 %v1159, 7
    %v1161 = vsub.s32 4, %v1160
    %v1162 = vrot.slane %v777, %v1161
    %1164 = vbcast.lane.b32.xlu0 %v1162, 256
    %v1165 = vpop.permute.xlu0 %1164
    %v1166 = vlaneseq
    %v1167 = vshrl.u32 %v1166, 7
    %v1168 = vsub.s32 5, %v1167
    %v1169 = vrot.slane %v777, %v1168
    %1171 = vbcast.lane.b32.xlu0 %v1169, 256
    %v1172 = vpop.permute.xlu0 %1171
    %v1173 = vlaneseq
    %v1174 = vshrl.u32 %v1173, 7
    %v1175 = vsub.s32 6, %v1174
    %v1176 = vrot.slane %v777, %v1175
    %1178 = vbcast.lane.b32.xlu0 %v1176, 256
    %v1179 = vpop.permute.xlu0 %1178
    %v1180 = vlaneseq
    %v1181 = vshrl.u32 %v1180, 7
    %v1182 = vsub.s32 7, %v1181
    %v1183 = vrot.slane %v777, %v1182
    %1185 = vbcast.lane.b32.xlu0 %v1183, 256
    %v1186 = vpop.permute.xlu0 %1185
    %v1195 = vsel %vm1122, %v1137, -1e+30
    %v1196 = vsel %vm1123, %v1144, -1e+30
    %v1197 = vsel %vm1124, %v1151, -1e+30
    %v1198 = vsel %vm1125, %v1158, -1e+30
    %v1199 = vsel %vm1126, %v1165, -1e+30
    %v1200 = vsel %vm1127, %v1172, -1e+30
    %v1201 = vsel %vm1128, %v1179, -1e+30
    %v1202 = vsel %vm1129, %v1186, -1e+30
    %1211 = vset.pattern.permute.xlu0 0
    %1212 = vperm.xlu0 %1211, %v1195
    %v1213 = vpop.permute.xlu0 %1212
    %1214 = vset.pattern.permute.xlu0 0
    %1215 = vperm.xlu0 %1214, %v1196
    %v1216 = vpop.permute.xlu0 %1215
    %1217 = vset.pattern.permute.xlu0 0
    %1218 = vperm.xlu0 %1217, %v1197
    %v1219 = vpop.permute.xlu0 %1218
    %1220 = vset.pattern.permute.xlu0 0
    %1221 = vperm.xlu0 %1220, %v1198
    %v1222 = vpop.permute.xlu0 %1221
    %1223 = vset.pattern.permute.xlu0 0
    %1224 = vperm.xlu0 %1223, %v1199
    %v1225 = vpop.permute.xlu0 %1224
    %1226 = vset.pattern.permute.xlu0 0
    %1227 = vperm.xlu0 %1226, %v1200
    %v1228 = vpop.permute.xlu0 %1227
    %1229 = vset.pattern.permute.xlu0 0
    %1230 = vperm.xlu0 %1229, %v1201
    %v1231 = vpop.permute.xlu0 %1230
    %1232 = vset.pattern.permute.xlu0 0
    %1233 = vperm.xlu0 %1232, %v1202
    %v1234 = vpop.permute.xlu0 %1233
    %v1235 = vlaneseq
    %v1236 = vshrl.u32 %v1235, 7
    %v1237 = vsub.s32 %v1011, %v1236
    %v1238 = vrot.slane %v1213, %v1237
    %v1239 = vlaneseq
    %v1240 = vshrl.u32 %v1239, 7
    %v1241 = vsub.s32 %v1011, %v1240
    %v1242 = vrot.slane %v1216, %v1241
    %v1243 = vlaneseq
    %v1244 = vshrl.u32 %v1243, 7
    %v1245 = vsub.s32 %v1011, %v1244
    %v1246 = vrot.slane %v1219, %v1245
    %v1247 = vlaneseq
    %v1248 = vshrl.u32 %v1247, 7
    %v1249 = vsub.s32 %v1011, %v1248
    %v1250 = vrot.slane %v1222, %v1249
    %v1251 = vlaneseq
    %v1252 = vshrl.u32 %v1251, 7
    %v1253 = vsub.s32 %v1011, %v1252
    %v1254 = vrot.slane %v1225, %v1253
    %v1255 = vlaneseq
    %v1256 = vshrl.u32 %v1255, 7
    %v1257 = vsub.s32 %v1011, %v1256
    %v1258 = vrot.slane %v1228, %v1257
    %v1259 = vlaneseq
    %v1260 = vshrl.u32 %v1259, 7
    %v1261 = vsub.s32 %v1011, %v1260
    %v1262 = vrot.slane %v1231, %v1261
    %v1263 = vlaneseq
    %v1264 = vshrl.u32 %v1263, 7
    %v1265 = vsub.s32 %v1011, %v1264
    %v1266 = vrot.slane %v1234, %v1265
    %v1267 = vsel %vm1076, %v1242, %v1238
    %vm1268 = vcmask 1042434
    %v1269 = vsel %vm1268, %v1246, %v1267
    %vm1270 = vcmask 1043459
    %v1271 = vsel %vm1270, %v1250, %v1269
    %vm1272 = vcmask 1044484
    %v1273 = vsel %vm1272, %v1254, %v1271
    %vm1274 = vcmask 1045509
    %v1275 = vsel %vm1274, %v1258, %v1273
    %vm1276 = vcmask 1046534
    %v1277 = vsel %vm1276, %v1262, %v1275
    %vm1278 = vcmask 1047559
    %v1279 = vsel %vm1278, %v1266, %v1277
    %v1281 = vsel %vm147, %v1279, -inf
    %1282 = vmax.xlane.f32.xlu0 %v1281
    %v1283 = vpop.xlane.xlu0 %1282
    %v1284 = vrot.slane %v1283, 4
    %v1285 = vmax.f32 %v1283, %v1284
    %v1286 = vrot.slane %v1285, 2
    %v1287 = vmax.f32 %v1285, %v1286
    %v1288 = vrot.slane %v1287, 1
    %v1289 = vmax.f32 %v1287, %v1288
    %v1290 = vstv %s1119
    %vm1291 = vcmp.le.f32.partialorder %v1096, %v1290
    %vm1292 = vcmp.le.f32.partialorder %v1099, %v1290
    %vm1293 = vcmp.le.f32.partialorder %v1102, %v1290
    %vm1294 = vcmp.le.f32.partialorder %v1105, %v1290
    %vm1295 = vcmp.le.f32.partialorder %v1108, %v1290
    %vm1296 = vcmp.le.f32.partialorder %v1111, %v1290
    %vm1297 = vcmp.le.f32.partialorder %v1114, %v1290
    %vm1298 = vcmp.le.f32.partialorder %v1117, %v1290
    %v1299 = vsel %vm1291, %v1137, -1e+30
    %v1300 = vsel %vm1292, %v1144, -1e+30
    %v1301 = vsel %vm1293, %v1151, -1e+30
    %v1302 = vsel %vm1294, %v1158, -1e+30
    %v1303 = vsel %vm1295, %v1165, -1e+30
    %v1304 = vsel %vm1296, %v1172, -1e+30
    %v1305 = vsel %vm1297, %v1179, -1e+30
    %v1306 = vsel %vm1298, %v1186, -1e+30
    %1315 = vset.pattern.permute.xlu0 0
    %1316 = vperm.xlu0 %1315, %v1299
    %v1317 = vpop.permute.xlu0 %1316
    %1318 = vset.pattern.permute.xlu0 0
    %1319 = vperm.xlu0 %1318, %v1300
    %v1320 = vpop.permute.xlu0 %1319
    %1321 = vset.pattern.permute.xlu0 0
    %1322 = vperm.xlu0 %1321, %v1301
    %v1323 = vpop.permute.xlu0 %1322
    %1324 = vset.pattern.permute.xlu0 0
    %1325 = vperm.xlu0 %1324, %v1302
    %v1326 = vpop.permute.xlu0 %1325
    %1327 = vset.pattern.permute.xlu0 0
    %1328 = vperm.xlu0 %1327, %v1303
    %v1329 = vpop.permute.xlu0 %1328
    %1330 = vset.pattern.permute.xlu0 0
    %1331 = vperm.xlu0 %1330, %v1304
    %v1332 = vpop.permute.xlu0 %1331
    %1333 = vset.pattern.permute.xlu0 0
    %1334 = vperm.xlu0 %1333, %v1305
    %v1335 = vpop.permute.xlu0 %1334
    %1336 = vset.pattern.permute.xlu0 0
    %1337 = vperm.xlu0 %1336, %v1306
    %v1338 = vpop.permute.xlu0 %1337
    %v1339 = vlaneseq
    %v1340 = vshrl.u32 %v1339, 7
    %v1341 = vsub.s32 %v1011, %v1340
    %v1342 = vrot.slane %v1317, %v1341
    %v1343 = vlaneseq
    %v1344 = vshrl.u32 %v1343, 7
    %v1345 = vsub.s32 %v1011, %v1344
    %v1346 = vrot.slane %v1320, %v1345
    %v1347 = vlaneseq
    %v1348 = vshrl.u32 %v1347, 7
    %v1349 = vsub.s32 %v1011, %v1348
    %v1350 = vrot.slane %v1323, %v1349
    %v1351 = vlaneseq
    %v1352 = vshrl.u32 %v1351, 7
    %v1353 = vsub.s32 %v1011, %v1352
    %v1354 = vrot.slane %v1326, %v1353
    %v1355 = vlaneseq
    %v1356 = vshrl.u32 %v1355, 7
    %v1357 = vsub.s32 %v1011, %v1356
    %v1358 = vrot.slane %v1329, %v1357
    %v1359 = vlaneseq
    %v1360 = vshrl.u32 %v1359, 7
    %v1361 = vsub.s32 %v1011, %v1360
    %v1362 = vrot.slane %v1332, %v1361
    %v1363 = vlaneseq
    %v1364 = vshrl.u32 %v1363, 7
    %v1365 = vsub.s32 %v1011, %v1364
    %v1366 = vrot.slane %v1335, %v1365
    %v1367 = vlaneseq
    %v1368 = vshrl.u32 %v1367, 7
    %v1369 = vsub.s32 %v1011, %v1368
    %v1370 = vrot.slane %v1338, %v1369
    %v1371 = vsel %vm1076, %v1346, %v1342
    %v1372 = vsel %vm1268, %v1350, %v1371
    %v1373 = vsel %vm1270, %v1354, %v1372
    %v1374 = vsel %vm1272, %v1358, %v1373
    %v1375 = vsel %vm1274, %v1362, %v1374
    %v1376 = vsel %vm1276, %v1366, %v1375
    %v1377 = vsel %vm1278, %v1370, %v1376
    %v1379 = vsel %vm147, %v1377, -inf
    %1380 = vmax.xlane.f32.xlu0 %v1379
    %v1381 = vpop.xlane.xlu0 %1380
    %v1382 = vrot.slane %v1381, 4
    %v1383 = vmax.f32 %v1381, %v1382
    %v1384 = vrot.slane %v1383, 2
    %v1385 = vmax.f32 %v1383, %v1384
    %v1386 = vrot.slane %v1385, 1
    %v1387 = vmax.f32 %v1385, %v1386
    %s1388 = ssub.f32 1.0, %s1120
    %v1389 = vstv %s1388
    %v1390 = vmul.f32 %v1289, %v1389
    %v1391 = vstv %s1120
    %v1392 = vmul.f32 %v1387, %v1391
    %v1393 = vadd.f32 %v1390, %v1392
    %vm1394 = vcmp.lt.f32.partialorder %v776, %v1393
    %v1395 = vsel %vm1394, 1, 0
    %v1396 = vcvt.s32.f32 %v1395
    %v1398 = vsel %vm147, %v1396, 0
    %1400 = vmatprep.subr.mxu0 0.0
    %1401 = vmatpush1.msra.mxu0 0.0
    %1402 = vmatprep.subr.mxu0 0.0
    %1403 = vmatpush1.msra.mxu0 0.0
    %1404 = vmatprep.subr.mxu0 0.0
    %1405 = vmatpush1.msra.mxu0 0.0
    %1406 = vmatprep.subr.mxu0 0.0
    %1407 = vmatpush1.msra.mxu0 0.0
    %1408 = vmatprep.subr.mxu0 0.0
    %1409 = vmatpush1.msra.mxu0 0.0
    %1410 = vmatprep.subr.mxu0 0.0
    %1411 = vmatpush1.msra.mxu0 0.0
    %1412 = vmatprep.subr.mxu0 0.0
    %1413 = vmatpush1.msra.mxu0 0.0
    %1414 = vmatprep.subr.mxu0 0.0
    %1415 = vmatpush1.msra.mxu0 0.0
    %1416 = vmatprep.subr.mxu0 0.0
    %1417 = vmatpush1.msra.mxu0 0.0
    %1418 = vmatprep.subr.mxu0 0.0
    %1419 = vmatpush1.msra.mxu0 0.0
    %1420 = vmatprep.subr.mxu0 0.0
    %1421 = vmatpush1.msra.mxu0 0.0
    %1422 = vmatprep.subr.mxu0 0.0
    %1423 = vmatpush1.msra.mxu0 0.0
    %1424 = vmatprep.subr.mxu0 0.0
    %1425 = vmatpush1.msra.mxu0 0.0
    %1426 = vmatprep.subr.mxu0 0.0
    %1427 = vmatpush1.msra.mxu0 0.0
    %1428 = vmatprep.subr.mxu0 0.0
    %1429 = vmatpush1.msra.mxu0 0.0
    %1430 = vmatprep.subr.mxu0 0.0
    %1431 = vmatpush1.msra.mxu0 %v153
    %1432 = vmatprep.subr.mxu0 0.0
    %1433 = vmatpush2.msra.mxu0 0.0
    %1434 = vmatprep.subr.mxu0 0.0
    %1435 = vmatpush2.msra.mxu0 0.0
    %1436 = vmatprep.subr.mxu0 0.0
    %1437 = vmatpush2.msra.mxu0 0.0
    %1438 = vmatprep.subr.mxu0 0.0
    %1439 = vmatpush2.msra.mxu0 0.0
    %1440 = vmatprep.subr.mxu0 0.0
    %1441 = vmatpush2.msra.mxu0 0.0
    %1442 = vmatprep.subr.mxu0 0.0
    %1443 = vmatpush2.msra.mxu0 0.0
    %1444 = vmatprep.subr.mxu0 0.0
    %1445 = vmatpush2.msra.mxu0 0.0
    %1446 = vmatprep.subr.mxu0 0.0
    %1447 = vmatpush2.msra.mxu0 0.0
    %1448 = vmatprep.subr.mxu0 0.0
    %1449 = vmatpush2.msra.mxu0 0.0
    %1450 = vmatprep.subr.mxu0 0.0
    %1451 = vmatpush2.msra.mxu0 0.0
    %1452 = vmatprep.subr.mxu0 0.0
    %1453 = vmatpush2.msra.mxu0 0.0
    %1454 = vmatprep.subr.mxu0 0.0
    %1455 = vmatpush2.msra.mxu0 0.0
    %1456 = vmatprep.subr.mxu0 0.0
    %1457 = vmatpush2.msra.mxu0 0.0
    %1458 = vmatprep.subr.mxu0 0.0
    %1459 = vmatpush2.msra.mxu0 0.0
    %1460 = vmatprep.subr.mxu0 0.0
    %1461 = vmatpush2.msra.mxu0 0.0
    %1462 = vmatprep.subr.mxu0 0.0
    %1463 = vmatpush2.msra.mxu0 0.0
    %1464 = vmatprep.mubr.f32.mxu0 0.0
    %1465 = vmatmul.mubr.f32.gmra.mxu0 %v1398
    %v1466 = vpop.f32.mrf.mxu0
    %v1467 = vadd.f32 0.0, %v1466
    %v1468 = vpop.f32.mrf.mxu0
    %1469 = vdwg.mxu0
    %v1470 = vlaneseq
    %v1471 = vshrl.u32 %v1470, 7
    %v1472 = vsub.s32 2, %v1471
    %v1473 = vrot.slane %v58, %v1472
    %v1474 = vmul.f32 %v463, %v1473
    %v1475 = vlaneseq
    %v1476 = vshrl.u32 %v1475, 7
    %v1477 = vsub.s32 3, %v1476
    %v1478 = vrot.slane %v58, %v1477
    %v1479 = vmul.f32 %v468, %v1478
    %v1480 = vsub.f32 %v1474, %v1479
    %v1481 = vlaneseq
    %v1482 = vshrl.u32 %v1481, 7
    %v1483 = vsub.s32 4, %v1482
    %v1484 = vrot.slane %v58, %v1483
    %v1485 = vmul.f32 %v463, %v1484
    %v1486 = vlaneseq
    %v1487 = vshrl.u32 %v1486, 7
    %v1488 = vsub.s32 5, %v1487
    %v1489 = vrot.slane %v58, %v1488
    %v1490 = vmul.f32 %v468, %v1489
    %v1491 = vsub.f32 %v1485, %v1490
    %v1492 = vmul.f32 %v1467, %v1491
    %v1493 = vadd.f32 %v1480, %v1492
    %v1494 = vmul.f32 %v463, %v1478
    %v1495 = vmul.f32 %v468, %v1473
    %v1496 = vadd.f32 %v1494, %v1495
    %v1497 = vmul.f32 %v463, %v1489
    %v1498 = vmul.f32 %v468, %v1484
    %v1499 = vadd.f32 %v1497, %v1498
    %v1500 = vmul.f32 %v1467, %v1499
    %v1501 = vadd.f32 %v1496, %v1500
    %v1502 = vld [vmem:[%s7] sm:$0xff]
    %vm1503 = vcmask 130048
    %v1505 = vsel %vm1503, %v1502, 0
    %1507 = vmatprep.subr.mxu0 0.0
    %1508 = vmatpush1.msra.mxu0 0.0
    %1509 = vmatprep.subr.mxu0 0.0
    %1510 = vmatpush1.msra.mxu0 0.0
    %1511 = vmatprep.subr.mxu0 0.0
    %1512 = vmatpush1.msra.mxu0 0.0
    %1513 = vmatprep.subr.mxu0 0.0
    %1514 = vmatpush1.msra.mxu0 0.0
    %1515 = vmatprep.subr.mxu0 0.0
    %1516 = vmatpush1.msra.mxu0 0.0
    %1517 = vmatprep.subr.mxu0 0.0
    %1518 = vmatpush1.msra.mxu0 0.0
    %1519 = vmatprep.subr.mxu0 0.0
    %1520 = vmatpush1.msra.mxu0 0.0
    %1521 = vmatprep.subr.mxu0 0.0
    %1522 = vmatpush1.msra.mxu0 0.0
    %1523 = vmatprep.subr.mxu0 0.0
    %1524 = vmatpush1.msra.mxu0 0.0
    %1525 = vmatprep.subr.mxu0 0.0
    %1526 = vmatpush1.msra.mxu0 0.0
    %1527 = vmatprep.subr.mxu0 0.0
    %1528 = vmatpush1.msra.mxu0 0.0
    %1529 = vmatprep.subr.mxu0 0.0
    %1530 = vmatpush1.msra.mxu0 0.0
    %1531 = vmatprep.subr.mxu0 0.0
    %1532 = vmatpush1.msra.mxu0 0.0
    %1533 = vmatprep.subr.mxu0 0.0
    %1534 = vmatpush1.msra.mxu0 0.0
    %1535 = vmatprep.subr.mxu0 0.0
    %1536 = vmatpush1.msra.mxu0 %v1501
    %1537 = vmatprep.subr.mxu0 0.0
    %1538 = vmatpush1.msra.mxu0 %v1493
    %1539 = vmatprep.subr.mxu0 0.0
    %1540 = vmatpush2.msra.mxu0 0.0
    %1541 = vmatprep.subr.mxu0 0.0
    %1542 = vmatpush2.msra.mxu0 0.0
    %1543 = vmatprep.subr.mxu0 0.0
    %1544 = vmatpush2.msra.mxu0 0.0
    %1545 = vmatprep.subr.mxu0 0.0
    %1546 = vmatpush2.msra.mxu0 0.0
    %1547 = vmatprep.subr.mxu0 0.0
    %1548 = vmatpush2.msra.mxu0 0.0
    %1549 = vmatprep.subr.mxu0 0.0
    %1550 = vmatpush2.msra.mxu0 0.0
    %1551 = vmatprep.subr.mxu0 0.0
    %1552 = vmatpush2.msra.mxu0 0.0
    %1553 = vmatprep.subr.mxu0 0.0
    %1554 = vmatpush2.msra.mxu0 0.0
    %1555 = vmatprep.subr.mxu0 0.0
    %1556 = vmatpush2.msra.mxu0 0.0
    %1557 = vmatprep.subr.mxu0 0.0
    %1558 = vmatpush2.msra.mxu0 0.0
    %1559 = vmatprep.subr.mxu0 0.0
    %1560 = vmatpush2.msra.mxu0 0.0
    %1561 = vmatprep.subr.mxu0 0.0
    %1562 = vmatpush2.msra.mxu0 0.0
    %1563 = vmatprep.subr.mxu0 0.0
    %1564 = vmatpush2.msra.mxu0 0.0
    %1565 = vmatprep.subr.mxu0 0.0
    %1566 = vmatpush2.msra.mxu0 0.0
    %1567 = vmatprep.subr.mxu0 0.0
    %1568 = vmatpush2.msra.mxu0 0.0
    %1569 = vmatprep.subr.mxu0 0.0
    %1570 = vmatpush2.msra.mxu0 0.0
    %1571 = vmatprep.mubr.f32.mxu0 0.0
    %1572 = vmatmul.mubr.f32.gmra.mxu0 %v1505
    %v1573 = vpop.f32.mrf.mxu0
    %v1574 = vadd.f32 0.0, %v1573
    %v1575 = vpop.f32.mrf.mxu0
    %1576 = vdwg.mxu0
    %v1577 = vld [vmem:[%s10] sm:$0xf]
    %v1578 = vpack.c.bf16 %v1574, %v1574
    %v1579 = vld [vmem:[%s8] sm:$0xf]
    %v1580 = vld [vmem:[%s8 + $0x4] sm:$0xf]
    %v1581 = vld [vmem:[%s8 + $0x8] sm:$0xf]
    %v1582 = vld [vmem:[%s8 + $0xc] sm:$0xf]
    %v1583 = vld [vmem:[%s8 + $0x10] sm:$0xf]
    %v1584 = vld [vmem:[%s8 + $0x14] sm:$0xf]
    %v1585 = vld [vmem:[%s8 + $0x18] sm:$0xf]
    %v1586 = vld [vmem:[%s8 + $0x1c] sm:$0xf]
    %v1587 = vlaneseq
    %v1588 = vshrl.u32 %v1587, 7
    %v1589 = vsub.s32 0, %v1588
    %v1590 = vrot.slane %v1577, %v1589
    %v1599 = vunpack.c.l.b16 %v1579
    %v1600 = vunpack.c.l.b16 %v1580
    %v1601 = vunpack.c.l.b16 %v1581
    %v1602 = vunpack.c.l.b16 %v1582
    %v1603 = vunpack.c.l.b16 %v1583
    %v1604 = vunpack.c.l.b16 %v1584
    %v1605 = vunpack.c.l.b16 %v1585
    %v1606 = vunpack.c.l.b16 %v1586
    %v1607 = vpack.c.b16 %v1600, %v1599
    %v1608 = vpack.c.b16 %v1602, %v1601
    %v1609 = vpack.c.b16 %v1604, %v1603
    %v1610 = vpack.c.b16 %v1606, %v1605
    %v1616 = vsel %vm72, %v1578, 0
    %1618 = vmatprep.subr.bf16.mxu0 0
    %1619 = vmatpush1.bf16.msra.mxu0 0
    %1620 = vmatprep.subr.bf16.mxu0 0
    %1621 = vmatpush1.bf16.msra.mxu0 0
    %1622 = vmatprep.subr.bf16.mxu0 0
    %1623 = vmatpush1.bf16.msra.mxu0 0
    %1624 = vmatprep.subr.bf16.mxu0 0
    %1625 = vmatpush1.bf16.msra.mxu0 0
    %1626 = vmatprep.subr.bf16.mxu0 0
    %1627 = vmatpush1.bf16.msra.mxu0 %v1610
    %1628 = vmatprep.subr.bf16.mxu0 0
    %1629 = vmatpush1.bf16.msra.mxu0 %v1609
    %1630 = vmatprep.subr.bf16.mxu0 0
    %1631 = vmatpush1.bf16.msra.mxu0 %v1608
    %1632 = vmatprep.subr.bf16.mxu0 0
    %1633 = vmatpush1.bf16.msra.mxu0 %v1607
    %1634 = vmatprep.subr.bf16.mxu0 0
    %1635 = vmatpush2.bf16.msra.mxu0 0
    %1636 = vmatprep.subr.bf16.mxu0 0
    %1637 = vmatpush2.bf16.msra.mxu0 0
    %1638 = vmatprep.subr.bf16.mxu0 0
    %1639 = vmatpush2.bf16.msra.mxu0 0
    %1640 = vmatprep.subr.bf16.mxu0 0
    %1641 = vmatpush2.bf16.msra.mxu0 0
    %1642 = vmatprep.subr.bf16.mxu0 0
    %1643 = vmatpush2.bf16.msra.mxu0 0
    %1644 = vmatprep.subr.bf16.mxu0 0
    %1645 = vmatpush2.bf16.msra.mxu0 0
    %1646 = vmatprep.subr.bf16.mxu0 0
    %1647 = vmatpush2.bf16.msra.mxu0 0
    %1648 = vmatprep.subr.bf16.mxu0 0
    %1649 = vmatpush2.bf16.msra.mxu0 0
    %1650 = vmatprep.mubr.bf16.mxu0 0
    %1651 = vmatmul.mubr.bf16.gmra.mxu0 %v1616
    %v1652 = vpop.f32.mrf.mxu0
    %v1653 = vadd.f32 %v1590, %v1652
    %v1654 = vpop.f32.mrf.mxu0
    %v1655 = vpop.f32.mrf.mxu0
    %v1656 = vpop.f32.mrf.mxu0
    %1657 = vdwg.mxu0
    %s1658 = scalar_lea.vmem %s8, 32
    %v1659 = vld [vmem:[%s1658] sm:$0xf]
    %v1660 = vld [vmem:[%s1658 + $0x4] sm:$0xf]
    %v1661 = vld [vmem:[%s1658 + $0x8] sm:$0xf]
    %v1662 = vld [vmem:[%s1658 + $0xc] sm:$0xf]
    %v1663 = vld [vmem:[%s1658 + $0x10] sm:$0xf]
    %v1664 = vld [vmem:[%s1658 + $0x14] sm:$0xf]
    %v1665 = vld [vmem:[%s1658 + $0x18] sm:$0xf]
    %v1666 = vld [vmem:[%s1658 + $0x1c] sm:$0xf]
    %v1667 = vlaneseq
    %v1668 = vshrl.u32 %v1667, 7
    %v1669 = vsub.s32 1, %v1668
    %v1670 = vrot.slane %v1577, %v1669
    %v1679 = vunpack.c.l.b16 %v1659
    %v1680 = vunpack.c.l.b16 %v1660
    %v1681 = vunpack.c.l.b16 %v1661
    %v1682 = vunpack.c.l.b16 %v1662
    %v1683 = vunpack.c.l.b16 %v1663
    %v1684 = vunpack.c.l.b16 %v1664
    %v1685 = vunpack.c.l.b16 %v1665
    %v1686 = vunpack.c.l.b16 %v1666
    %v1687 = vpack.c.b16 %v1680, %v1679
    %v1688 = vpack.c.b16 %v1682, %v1681
    %v1689 = vpack.c.b16 %v1684, %v1683
    %v1690 = vpack.c.b16 %v1686, %v1685
    %1695 = vmatprep.subr.bf16.mxu0 0
    %1696 = vmatpush1.bf16.msra.mxu0 0
    %1697 = vmatprep.subr.bf16.mxu0 0
    %1698 = vmatpush1.bf16.msra.mxu0 0
    %1699 = vmatprep.subr.bf16.mxu0 0
    %1700 = vmatpush1.bf16.msra.mxu0 0
    %1701 = vmatprep.subr.bf16.mxu0 0
    %1702 = vmatpush1.bf16.msra.mxu0 0
    %1703 = vmatprep.subr.bf16.mxu0 0
    %1704 = vmatpush1.bf16.msra.mxu0 %v1690
    %1705 = vmatprep.subr.bf16.mxu0 0
    %1706 = vmatpush1.bf16.msra.mxu0 %v1689
    %1707 = vmatprep.subr.bf16.mxu0 0
    %1708 = vmatpush1.bf16.msra.mxu0 %v1688
    %1709 = vmatprep.subr.bf16.mxu0 0
    %1710 = vmatpush1.bf16.msra.mxu0 %v1687
    %1711 = vmatprep.subr.bf16.mxu0 0
    %1712 = vmatpush2.bf16.msra.mxu0 0
    %1713 = vmatprep.subr.bf16.mxu0 0
    %1714 = vmatpush2.bf16.msra.mxu0 0
    %1715 = vmatprep.subr.bf16.mxu0 0
    %1716 = vmatpush2.bf16.msra.mxu0 0
    %1717 = vmatprep.subr.bf16.mxu0 0
    %1718 = vmatpush2.bf16.msra.mxu0 0
    %1719 = vmatprep.subr.bf16.mxu0 0
    %1720 = vmatpush2.bf16.msra.mxu0 0
    %1721 = vmatprep.subr.bf16.mxu0 0
    %1722 = vmatpush2.bf16.msra.mxu0 0
    %1723 = vmatprep.subr.bf16.mxu0 0
    %1724 = vmatpush2.bf16.msra.mxu0 0
    %1725 = vmatprep.subr.bf16.mxu0 0
    %1726 = vmatpush2.bf16.msra.mxu0 0
    %1727 = vmatprep.mubr.bf16.mxu0 0
    %1728 = vmatmul.mubr.bf16.gmra.mxu0 %v1616
    %v1729 = vpop.f32.mrf.mxu0
    %v1730 = vadd.f32 %v1670, %v1729
    %v1731 = vpop.f32.mrf.mxu0
    %v1732 = vpop.f32.mrf.mxu0
    %v1733 = vpop.f32.mrf.mxu0
    %1734 = vdwg.mxu0
    %s1735 = scalar_lea.vmem %s8, 64
    %v1736 = vld [vmem:[%s1735] sm:$0xf]
    %v1737 = vld [vmem:[%s1735 + $0x4] sm:$0xf]
    %v1738 = vld [vmem:[%s1735 + $0x8] sm:$0xf]
    %v1739 = vld [vmem:[%s1735 + $0xc] sm:$0xf]
    %v1740 = vld [vmem:[%s1735 + $0x10] sm:$0xf]
    %v1741 = vld [vmem:[%s1735 + $0x14] sm:$0xf]
    %v1742 = vld [vmem:[%s1735 + $0x18] sm:$0xf]
    %v1743 = vld [vmem:[%s1735 + $0x1c] sm:$0xf]
    %v1744 = vlaneseq
    %v1745 = vshrl.u32 %v1744, 7
    %v1746 = vsub.s32 2, %v1745
    %v1747 = vrot.slane %v1577, %v1746
    %v1756 = vunpack.c.l.b16 %v1736
    %v1757 = vunpack.c.l.b16 %v1737
    %v1758 = vunpack.c.l.b16 %v1738
    %v1759 = vunpack.c.l.b16 %v1739
    %v1760 = vunpack.c.l.b16 %v1740
    %v1761 = vunpack.c.l.b16 %v1741
    %v1762 = vunpack.c.l.b16 %v1742
    %v1763 = vunpack.c.l.b16 %v1743
    %v1764 = vpack.c.b16 %v1757, %v1756
    %v1765 = vpack.c.b16 %v1759, %v1758
    %v1766 = vpack.c.b16 %v1761, %v1760
    %v1767 = vpack.c.b16 %v1763, %v1762
    %1772 = vmatprep.subr.bf16.mxu0 0
    %1773 = vmatpush1.bf16.msra.mxu0 0
    %1774 = vmatprep.subr.bf16.mxu0 0
    %1775 = vmatpush1.bf16.msra.mxu0 0
    %1776 = vmatprep.subr.bf16.mxu0 0
    %1777 = vmatpush1.bf16.msra.mxu0 0
    %1778 = vmatprep.subr.bf16.mxu0 0
    %1779 = vmatpush1.bf16.msra.mxu0 0
    %1780 = vmatprep.subr.bf16.mxu0 0
    %1781 = vmatpush1.bf16.msra.mxu0 %v1767
    %1782 = vmatprep.subr.bf16.mxu0 0
    %1783 = vmatpush1.bf16.msra.mxu0 %v1766
    %1784 = vmatprep.subr.bf16.mxu0 0
    %1785 = vmatpush1.bf16.msra.mxu0 %v1765
    %1786 = vmatprep.subr.bf16.mxu0 0
    %1787 = vmatpush1.bf16.msra.mxu0 %v1764
    %1788 = vmatprep.subr.bf16.mxu0 0
    %1789 = vmatpush2.bf16.msra.mxu0 0
    %1790 = vmatprep.subr.bf16.mxu0 0
    %1791 = vmatpush2.bf16.msra.mxu0 0
    %1792 = vmatprep.subr.bf16.mxu0 0
    %1793 = vmatpush2.bf16.msra.mxu0 0
    %1794 = vmatprep.subr.bf16.mxu0 0
    %1795 = vmatpush2.bf16.msra.mxu0 0
    %1796 = vmatprep.subr.bf16.mxu0 0
    %1797 = vmatpush2.bf16.msra.mxu0 0
    %1798 = vmatprep.subr.bf16.mxu0 0
    %1799 = vmatpush2.bf16.msra.mxu0 0
    %1800 = vmatprep.subr.bf16.mxu0 0
    %1801 = vmatpush2.bf16.msra.mxu0 0
    %1802 = vmatprep.subr.bf16.mxu0 0
    %1803 = vmatpush2.bf16.msra.mxu0 0
    %1804 = vmatprep.mubr.bf16.mxu0 0
    %1805 = vmatmul.mubr.bf16.gmra.mxu0 %v1616
    %v1806 = vpop.f32.mrf.mxu0
    %v1807 = vadd.f32 %v1747, %v1806
    %v1808 = vpop.f32.mrf.mxu0
    %v1809 = vpop.f32.mrf.mxu0
    %v1810 = vpop.f32.mrf.mxu0
    %1811 = vdwg.mxu0
    %v1812 = vld [vmem:[%s9] sm:$0xff]
    %v1813 = vld [vmem:[%s9 + $0x8] sm:$0xff]
    %v1814 = vld [vmem:[%s9 + $0x10] sm:$0xff]
    %v1815 = vld [vmem:[%s9 + $0x18] sm:$0xff]
    %v1816 = vld [vmem:[%s9 + $0x20] sm:$0xff]
    %v1817 = vld [vmem:[%s9 + $0x28] sm:$0xff]
    %v1818 = vld [vmem:[%s9 + $0x30] sm:$0xff]
    %v1819 = vld [vmem:[%s9 + $0x38] sm:$0xff]
    %s1820 = scalar_lea.vmem %s9, 64
    %v1821 = vld [vmem:[%s1820] sm:$0xff]
    %v1822 = vld [vmem:[%s1820 + $0x8] sm:$0xff]
    %v1823 = vld [vmem:[%s1820 + $0x10] sm:$0xff]
    %v1824 = vld [vmem:[%s1820 + $0x18] sm:$0xff]
    %v1825 = vld [vmem:[%s1820 + $0x20] sm:$0xff]
    %v1826 = vld [vmem:[%s1820 + $0x28] sm:$0xff]
    %v1827 = vld [vmem:[%s1820 + $0x30] sm:$0xff]
    %v1828 = vld [vmem:[%s1820 + $0x38] sm:$0xff]
    %s1829 = scalar_lea.vmem %s9, 128
    %v1830 = vld [vmem:[%s1829] sm:$0xff]
    %v1831 = vld [vmem:[%s1829 + $0x8] sm:$0xff]
    %v1832 = vld [vmem:[%s1829 + $0x10] sm:$0xff]
    %v1833 = vld [vmem:[%s1829 + $0x18] sm:$0xff]
    %v1834 = vld [vmem:[%s1829 + $0x20] sm:$0xff]
    %v1835 = vld [vmem:[%s1829 + $0x28] sm:$0xff]
    %v1836 = vld [vmem:[%s1829 + $0x30] sm:$0xff]
    %v1837 = vld [vmem:[%s1829 + $0x38] sm:$0xff]
    %v1839 = vsel %vm72, 0.0, 0
    %1841 = vmatprep.subr.mxu0 0.0
    %1842 = vmatpush1.msra.mxu0 0.0
    %1843 = vmatprep.subr.mxu0 0.0
    %1844 = vmatpush1.msra.mxu0 0.0
    %1845 = vmatprep.subr.mxu0 0.0
    %1846 = vmatpush1.msra.mxu0 0.0
    %1847 = vmatprep.subr.mxu0 0.0
    %1848 = vmatpush1.msra.mxu0 0.0
    %1849 = vmatprep.subr.mxu0 0.0
    %1850 = vmatpush1.msra.mxu0 0.0
    %1851 = vmatprep.subr.mxu0 0.0
    %1852 = vmatpush1.msra.mxu0 0.0
    %1853 = vmatprep.subr.mxu0 0.0
    %1854 = vmatpush1.msra.mxu0 0.0
    %1855 = vmatprep.subr.mxu0 0.0
    %1856 = vmatpush1.msra.mxu0 0.0
    %1857 = vmatprep.subr.mxu0 0.0
    %1858 = vmatpush1.msra.mxu0 %v1819
    %1859 = vmatprep.subr.mxu0 0.0
    %1860 = vmatpush1.msra.mxu0 %v1818
    %1861 = vmatprep.subr.mxu0 0.0
    %1862 = vmatpush1.msra.mxu0 %v1817
    %1863 = vmatprep.subr.mxu0 0.0
    %1864 = vmatpush1.msra.mxu0 %v1816
    %1865 = vmatprep.subr.mxu0 0.0
    %1866 = vmatpush1.msra.mxu0 %v1815
    %1867 = vmatprep.subr.mxu0 0.0
    %1868 = vmatpush1.msra.mxu0 %v1814
    %1869 = vmatprep.subr.mxu0 0.0
    %1870 = vmatpush1.msra.mxu0 %v1813
    %1871 = vmatprep.subr.mxu0 0.0
    %1872 = vmatpush1.msra.mxu0 %v1812
    %1873 = vmatprep.subr.mxu0 0.0
    %1874 = vmatpush2.msra.mxu0 0.0
    %1875 = vmatprep.subr.mxu0 0.0
    %1876 = vmatpush2.msra.mxu0 0.0
    %1877 = vmatprep.subr.mxu0 0.0
    %1878 = vmatpush2.msra.mxu0 0.0
    %1879 = vmatprep.subr.mxu0 0.0
    %1880 = vmatpush2.msra.mxu0 0.0
    %1881 = vmatprep.subr.mxu0 0.0
    %1882 = vmatpush2.msra.mxu0 0.0
    %1883 = vmatprep.subr.mxu0 0.0
    %1884 = vmatpush2.msra.mxu0 0.0
    %1885 = vmatprep.subr.mxu0 0.0
    %1886 = vmatpush2.msra.mxu0 0.0
    %1887 = vmatprep.subr.mxu0 0.0
    %1888 = vmatpush2.msra.mxu0 0.0
    %1889 = vmatprep.subr.mxu0 0.0
    %1890 = vmatpush2.msra.mxu0 0.0
    %1891 = vmatprep.subr.mxu0 0.0
    %1892 = vmatpush2.msra.mxu0 0.0
    %1893 = vmatprep.subr.mxu0 0.0
    %1894 = vmatpush2.msra.mxu0 0.0
    %1895 = vmatprep.subr.mxu0 0.0
    %1896 = vmatpush2.msra.mxu0 0.0
    %1897 = vmatprep.subr.mxu0 0.0
    %1898 = vmatpush2.msra.mxu0 0.0
    %1899 = vmatprep.subr.mxu0 0.0
    %1900 = vmatpush2.msra.mxu0 0.0
    %1901 = vmatprep.subr.mxu0 0.0
    %1902 = vmatpush2.msra.mxu0 0.0
    %1903 = vmatprep.subr.mxu0 0.0
    %1904 = vmatpush2.msra.mxu0 0.0
    %1905 = vmatprep.mubr.f32.mxu0 0.0
    %1906 = vmatmul.mubr.f32.gmra.mxu0 %v1839
    %v1907 = vpop.f32.mrf.mxu0
    %v1908 = vadd.f32 0.0, %v1907
    %v1909 = vpop.f32.mrf.mxu0
    %1910 = vdwg.mxu0
    %v1911 = vadd.f32 %v1653, %v1908
    %v1912 = vxor.u32 %v1911, 2147483648
    %v1913 = vmul.f32 %v1912, 1.442695
    %v1914 = vpow.pop %v1913
    %v1915 = vadd.f32 %v1914, 1.0
    %v1916 = vrcp.pop %v1915
    %v1917 = vmul.f32 1.0, %v1916
    %1918 = vmatprep.subr.mxu0 0.0
    %1919 = vmatpush1.msra.mxu0 0.0
    %1920 = vmatprep.subr.mxu0 0.0
    %1921 = vmatpush1.msra.mxu0 0.0
    %1922 = vmatprep.subr.mxu0 0.0
    %1923 = vmatpush1.msra.mxu0 0.0
    %1924 = vmatprep.subr.mxu0 0.0
    %1925 = vmatpush1.msra.mxu0 0.0
    %1926 = vmatprep.subr.mxu0 0.0
    %1927 = vmatpush1.msra.mxu0 0.0
    %1928 = vmatprep.subr.mxu0 0.0
    %1929 = vmatpush1.msra.mxu0 0.0
    %1930 = vmatprep.subr.mxu0 0.0
    %1931 = vmatpush1.msra.mxu0 0.0
    %1932 = vmatprep.subr.mxu0 0.0
    %1933 = vmatpush1.msra.mxu0 0.0
    %1934 = vmatprep.subr.mxu0 0.0
    %1935 = vmatpush1.msra.mxu0 %v1828
    %1936 = vmatprep.subr.mxu0 0.0
    %1937 = vmatpush1.msra.mxu0 %v1827
    %1938 = vmatprep.subr.mxu0 0.0
    %1939 = vmatpush1.msra.mxu0 %v1826
    %1940 = vmatprep.subr.mxu0 0.0
    %1941 = vmatpush1.msra.mxu0 %v1825
    %1942 = vmatprep.subr.mxu0 0.0
    %1943 = vmatpush1.msra.mxu0 %v1824
    %1944 = vmatprep.subr.mxu0 0.0
    %1945 = vmatpush1.msra.mxu0 %v1823
    %1946 = vmatprep.subr.mxu0 0.0
    %1947 = vmatpush1.msra.mxu0 %v1822
    %1948 = vmatprep.subr.mxu0 0.0
    %1949 = vmatpush1.msra.mxu0 %v1821
    %1950 = vmatprep.subr.mxu0 0.0
    %1951 = vmatpush2.msra.mxu0 0.0
    %1952 = vmatprep.subr.mxu0 0.0
    %1953 = vmatpush2.msra.mxu0 0.0
    %1954 = vmatprep.subr.mxu0 0.0
    %1955 = vmatpush2.msra.mxu0 0.0
    %1956 = vmatprep.subr.mxu0 0.0
    %1957 = vmatpush2.msra.mxu0 0.0
    %1958 = vmatprep.subr.mxu0 0.0
    %1959 = vmatpush2.msra.mxu0 0.0
    %1960 = vmatprep.subr.mxu0 0.0
    %1961 = vmatpush2.msra.mxu0 0.0
    %1962 = vmatprep.subr.mxu0 0.0
    %1963 = vmatpush2.msra.mxu0 0.0
    %1964 = vmatprep.subr.mxu0 0.0
    %1965 = vmatpush2.msra.mxu0 0.0
    %1966 = vmatprep.subr.mxu0 0.0
    %1967 = vmatpush2.msra.mxu0 0.0
    %1968 = vmatprep.subr.mxu0 0.0
    %1969 = vmatpush2.msra.mxu0 0.0
    %1970 = vmatprep.subr.mxu0 0.0
    %1971 = vmatpush2.msra.mxu0 0.0
    %1972 = vmatprep.subr.mxu0 0.0
    %1973 = vmatpush2.msra.mxu0 0.0
    %1974 = vmatprep.subr.mxu0 0.0
    %1975 = vmatpush2.msra.mxu0 0.0
    %1976 = vmatprep.subr.mxu0 0.0
    %1977 = vmatpush2.msra.mxu0 0.0
    %1978 = vmatprep.subr.mxu0 0.0
    %1979 = vmatpush2.msra.mxu0 0.0
    %1980 = vmatprep.subr.mxu0 0.0
    %1981 = vmatpush2.msra.mxu0 0.0
    %1982 = vmatprep.mubr.f32.mxu0 0.0
    %1983 = vmatmul.mubr.f32.gmra.mxu0 %v1839
    %v1984 = vpop.f32.mrf.mxu0
    %v1985 = vadd.f32 0.0, %v1984
    %v1986 = vpop.f32.mrf.mxu0
    %1987 = vdwg.mxu0
    %v1988 = vadd.f32 %v1730, %v1985
    %v1989 = vxor.u32 %v1988, 2147483648
    %v1990 = vmul.f32 %v1989, 1.442695
    %v1991 = vpow.pop %v1990
    %v1992 = vadd.f32 %v1991, 1.0
    %v1993 = vrcp.pop %v1992
    %v1994 = vmul.f32 1.0, %v1993
    %v1996 = vrot.slane %v1577, 3
    %1998 = vmatprep.subr.mxu0 0.0
    %1999 = vmatpush1.msra.mxu0 0.0
    %2000 = vmatprep.subr.mxu0 0.0
    %2001 = vmatpush1.msra.mxu0 0.0
    %2002 = vmatprep.subr.mxu0 0.0
    %2003 = vmatpush1.msra.mxu0 0.0
    %2004 = vmatprep.subr.mxu0 0.0
    %2005 = vmatpush1.msra.mxu0 0.0
    %2006 = vmatprep.subr.mxu0 0.0
    %2007 = vmatpush1.msra.mxu0 0.0
    %2008 = vmatprep.subr.mxu0 0.0
    %2009 = vmatpush1.msra.mxu0 0.0
    %2010 = vmatprep.subr.mxu0 0.0
    %2011 = vmatpush1.msra.mxu0 0.0
    %2012 = vmatprep.subr.mxu0 0.0
    %2013 = vmatpush1.msra.mxu0 0.0
    %2014 = vmatprep.subr.mxu0 0.0
    %2015 = vmatpush1.msra.mxu0 %v1837
    %2016 = vmatprep.subr.mxu0 0.0
    %2017 = vmatpush1.msra.mxu0 %v1836
    %2018 = vmatprep.subr.mxu0 0.0
    %2019 = vmatpush1.msra.mxu0 %v1835
    %2020 = vmatprep.subr.mxu0 0.0
    %2021 = vmatpush1.msra.mxu0 %v1834
    %2022 = vmatprep.subr.mxu0 0.0
    %2023 = vmatpush1.msra.mxu0 %v1833
    %2024 = vmatprep.subr.mxu0 0.0
    %2025 = vmatpush1.msra.mxu0 %v1832
    %2026 = vmatprep.subr.mxu0 0.0
    %2027 = vmatpush1.msra.mxu0 %v1831
    %2028 = vmatprep.subr.mxu0 0.0
    %2029 = vmatpush1.msra.mxu0 %v1830
    %2030 = vmatprep.subr.mxu0 0.0
    %2031 = vmatpush2.msra.mxu0 0.0
    %2032 = vmatprep.subr.mxu0 0.0
    %2033 = vmatpush2.msra.mxu0 0.0
    %2034 = vmatprep.subr.mxu0 0.0
    %2035 = vmatpush2.msra.mxu0 0.0
    %2036 = vmatprep.subr.mxu0 0.0
    %2037 = vmatpush2.msra.mxu0 0.0
    %2038 = vmatprep.subr.mxu0 0.0
    %2039 = vmatpush2.msra.mxu0 0.0
    %2040 = vmatprep.subr.mxu0 0.0
    %2041 = vmatpush2.msra.mxu0 0.0
    %2042 = vmatprep.subr.mxu0 0.0
    %2043 = vmatpush2.msra.mxu0 0.0
    %2044 = vmatprep.subr.mxu0 0.0
    %2045 = vmatpush2.msra.mxu0 0.0
    %2046 = vmatprep.subr.mxu0 0.0
    %2047 = vmatpush2.msra.mxu0 0.0
    %2048 = vmatprep.subr.mxu0 0.0
    %2049 = vmatpush2.msra.mxu0 0.0
    %2050 = vmatprep.subr.mxu0 0.0
    %2051 = vmatpush2.msra.mxu0 0.0
    %2052 = vmatprep.subr.mxu0 0.0
    %2053 = vmatpush2.msra.mxu0 0.0
    %2054 = vmatprep.subr.mxu0 0.0
    %2055 = vmatpush2.msra.mxu0 0.0
    %2056 = vmatprep.subr.mxu0 0.0
    %2057 = vmatpush2.msra.mxu0 0.0
    %2058 = vmatprep.subr.mxu0 0.0
    %2059 = vmatpush2.msra.mxu0 0.0
    %2060 = vmatprep.subr.mxu0 0.0
    %2061 = vmatpush2.msra.mxu0 0.0
    %2062 = vmatprep.mubr.f32.mxu0 0.0
    %2063 = vmatmul.mubr.f32.gmra.mxu0 %v1839
    %v2064 = vpop.f32.mrf.mxu0
    %v2065 = vadd.f32 %v1996, %v2064
    %v2066 = vpop.f32.mrf.mxu0
    %2067 = vdwg.mxu0
    %v2068 = vmul.f32 %v1917, %v2065
    %v2069 = vadd.f32 %v1807, %v2068
    %v2070 = vtanh.pop %v2069
    %v2071 = vsub.f32 1.0, %v1994
    %v2072 = vmul.f32 %v2071, %v2070
    %v2073 = vmul.f32 %v1994, 0.0
    %v2074 = vadd.f32 %v2072, %v2073
    %v2076 = vsel %vm72, %v2074, 0
    %2078 = vmatprep.subr.mxu0 0.0
    %2079 = vmatpush1.msra.mxu0 0.0
    %2080 = vmatprep.subr.mxu0 0.0
    %2081 = vmatpush1.msra.mxu0 0.0
    %2082 = vmatprep.subr.mxu0 0.0
    %2083 = vmatpush1.msra.mxu0 0.0
    %2084 = vmatprep.subr.mxu0 0.0
    %2085 = vmatpush1.msra.mxu0 0.0
    %2086 = vmatprep.subr.mxu0 0.0
    %2087 = vmatpush1.msra.mxu0 0.0
    %2088 = vmatprep.subr.mxu0 0.0
    %2089 = vmatpush1.msra.mxu0 0.0
    %2090 = vmatprep.subr.mxu0 0.0
    %2091 = vmatpush1.msra.mxu0 0.0
    %2092 = vmatprep.subr.mxu0 0.0
    %2093 = vmatpush1.msra.mxu0 0.0
    %2094 = vmatprep.subr.mxu0 0.0
    %2095 = vmatpush1.msra.mxu0 %v1819
    %2096 = vmatprep.subr.mxu0 0.0
    %2097 = vmatpush1.msra.mxu0 %v1818
    %2098 = vmatprep.subr.mxu0 0.0
    %2099 = vmatpush1.msra.mxu0 %v1817
    %2100 = vmatprep.subr.mxu0 0.0
    %2101 = vmatpush1.msra.mxu0 %v1816
    %2102 = vmatprep.subr.mxu0 0.0
    %2103 = vmatpush1.msra.mxu0 %v1815
    %2104 = vmatprep.subr.mxu0 0.0
    %2105 = vmatpush1.msra.mxu0 %v1814
    %2106 = vmatprep.subr.mxu0 0.0
    %2107 = vmatpush1.msra.mxu0 %v1813
    %2108 = vmatprep.subr.mxu0 0.0
    %2109 = vmatpush1.msra.mxu0 %v1812
    %2110 = vmatprep.subr.mxu0 0.0
    %2111 = vmatpush2.msra.mxu0 0.0
    %2112 = vmatprep.subr.mxu0 0.0
    %2113 = vmatpush2.msra.mxu0 0.0
    %2114 = vmatprep.subr.mxu0 0.0
    %2115 = vmatpush2.msra.mxu0 0.0
    %2116 = vmatprep.subr.mxu0 0.0
    %2117 = vmatpush2.msra.mxu0 0.0
    %2118 = vmatprep.subr.mxu0 0.0
    %2119 = vmatpush2.msra.mxu0 0.0
    %2120 = vmatprep.subr.mxu0 0.0
    %2121 = vmatpush2.msra.mxu0 0.0
    %2122 = vmatprep.subr.mxu0 0.0
    %2123 = vmatpush2.msra.mxu0 0.0
    %2124 = vmatprep.subr.mxu0 0.0
    %2125 = vmatpush2.msra.mxu0 0.0
    %2126 = vmatprep.subr.mxu0 0.0
    %2127 = vmatpush2.msra.mxu0 0.0
    %2128 = vmatprep.subr.mxu0 0.0
    %2129 = vmatpush2.msra.mxu0 0.0
    %2130 = vmatprep.subr.mxu0 0.0
    %2131 = vmatpush2.msra.mxu0 0.0
    %2132 = vmatprep.subr.mxu0 0.0
    %2133 = vmatpush2.msra.mxu0 0.0
    %2134 = vmatprep.subr.mxu0 0.0
    %2135 = vmatpush2.msra.mxu0 0.0
    %2136 = vmatprep.subr.mxu0 0.0
    %2137 = vmatpush2.msra.mxu0 0.0
    %2138 = vmatprep.subr.mxu0 0.0
    %2139 = vmatpush2.msra.mxu0 0.0
    %2140 = vmatprep.subr.mxu0 0.0
    %2141 = vmatpush2.msra.mxu0 0.0
    %2142 = vmatprep.mubr.f32.mxu0 0.0
    %2143 = vmatmul.mubr.f32.gmra.mxu0 %v2076
    %v2144 = vpop.f32.mrf.mxu0
    %v2145 = vadd.f32 0.0, %v2144
    %v2146 = vpop.f32.mrf.mxu0
    %2147 = vdwg.mxu0
    %v2149 = vrot.slane %v2145, 7
    %v2151 = vadd.f32 %v1653, %v2149
    %v2152 = vxor.u32 %v2151, 2147483648
    %v2153 = vmul.f32 %v2152, 1.442695
    %v2154 = vpow.pop %v2153
    %v2155 = vadd.f32 %v2154, 1.0
    %v2156 = vrcp.pop %v2155
    %v2157 = vmul.f32 1.0, %v2156
    %2158 = vmatprep.subr.mxu0 0.0
    %2159 = vmatpush1.msra.mxu0 0.0
    %2160 = vmatprep.subr.mxu0 0.0
    %2161 = vmatpush1.msra.mxu0 0.0
    %2162 = vmatprep.subr.mxu0 0.0
    %2163 = vmatpush1.msra.mxu0 0.0
    %2164 = vmatprep.subr.mxu0 0.0
    %2165 = vmatpush1.msra.mxu0 0.0
    %2166 = vmatprep.subr.mxu0 0.0
    %2167 = vmatpush1.msra.mxu0 0.0
    %2168 = vmatprep.subr.mxu0 0.0
    %2169 = vmatpush1.msra.mxu0 0.0
    %2170 = vmatprep.subr.mxu0 0.0
    %2171 = vmatpush1.msra.mxu0 0.0
    %2172 = vmatprep.subr.mxu0 0.0
    %2173 = vmatpush1.msra.mxu0 0.0
    %2174 = vmatprep.subr.mxu0 0.0
    %2175 = vmatpush1.msra.mxu0 %v1828
    %2176 = vmatprep.subr.mxu0 0.0
    %2177 = vmatpush1.msra.mxu0 %v1827
    %2178 = vmatprep.subr.mxu0 0.0
    %2179 = vmatpush1.msra.mxu0 %v1826
    %2180 = vmatprep.subr.mxu0 0.0
    %2181 = vmatpush1.msra.mxu0 %v1825
    %2182 = vmatprep.subr.mxu0 0.0
    %2183 = vmatpush1.msra.mxu0 %v1824
    %2184 = vmatprep.subr.mxu0 0.0
    %2185 = vmatpush1.msra.mxu0 %v1823
    %2186 = vmatprep.subr.mxu0 0.0
    %2187 = vmatpush1.msra.mxu0 %v1822
    %2188 = vmatprep.subr.mxu0 0.0
    %2189 = vmatpush1.msra.mxu0 %v1821
    %2190 = vmatprep.subr.mxu0 0.0
    %2191 = vmatpush2.msra.mxu0 0.0
    %2192 = vmatprep.subr.mxu0 0.0
    %2193 = vmatpush2.msra.mxu0 0.0
    %2194 = vmatprep.subr.mxu0 0.0
    %2195 = vmatpush2.msra.mxu0 0.0
    %2196 = vmatprep.subr.mxu0 0.0
    %2197 = vmatpush2.msra.mxu0 0.0
    %2198 = vmatprep.subr.mxu0 0.0
    %2199 = vmatpush2.msra.mxu0 0.0
    %2200 = vmatprep.subr.mxu0 0.0
    %2201 = vmatpush2.msra.mxu0 0.0
    %2202 = vmatprep.subr.mxu0 0.0
    %2203 = vmatpush2.msra.mxu0 0.0
    %2204 = vmatprep.subr.mxu0 0.0
    %2205 = vmatpush2.msra.mxu0 0.0
    %2206 = vmatprep.subr.mxu0 0.0
    %2207 = vmatpush2.msra.mxu0 0.0
    %2208 = vmatprep.subr.mxu0 0.0
    %2209 = vmatpush2.msra.mxu0 0.0
    %2210 = vmatprep.subr.mxu0 0.0
    %2211 = vmatpush2.msra.mxu0 0.0
    %2212 = vmatprep.subr.mxu0 0.0
    %2213 = vmatpush2.msra.mxu0 0.0
    %2214 = vmatprep.subr.mxu0 0.0
    %2215 = vmatpush2.msra.mxu0 0.0
    %2216 = vmatprep.subr.mxu0 0.0
    %2217 = vmatpush2.msra.mxu0 0.0
    %2218 = vmatprep.subr.mxu0 0.0
    %2219 = vmatpush2.msra.mxu0 0.0
    %2220 = vmatprep.subr.mxu0 0.0
    %2221 = vmatpush2.msra.mxu0 0.0
    %2222 = vmatprep.mubr.f32.mxu0 0.0
    %2223 = vmatmul.mubr.f32.gmra.mxu0 %v2076
    %v2224 = vpop.f32.mrf.mxu0
    %v2225 = vadd.f32 0.0, %v2224
    %v2226 = vpop.f32.mrf.mxu0
    %2227 = vdwg.mxu0
    %v2229 = vrot.slane %v2225, 7
    %v2231 = vadd.f32 %v1730, %v2229
    %v2232 = vxor.u32 %v2231, 2147483648
    %v2233 = vmul.f32 %v2232, 1.442695
    %v2234 = vpow.pop %v2233
    %v2235 = vadd.f32 %v2234, 1.0
    %v2236 = vrcp.pop %v2235
    %v2237 = vmul.f32 1.0, %v2236
    %2238 = vmatprep.subr.mxu0 0.0
    %2239 = vmatpush1.msra.mxu0 0.0
    %2240 = vmatprep.subr.mxu0 0.0
    %2241 = vmatpush1.msra.mxu0 0.0
    %2242 = vmatprep.subr.mxu0 0.0
    %2243 = vmatpush1.msra.mxu0 0.0
    %2244 = vmatprep.subr.mxu0 0.0
    %2245 = vmatpush1.msra.mxu0 0.0
    %2246 = vmatprep.subr.mxu0 0.0
    %2247 = vmatpush1.msra.mxu0 0.0
    %2248 = vmatprep.subr.mxu0 0.0
    %2249 = vmatpush1.msra.mxu0 0.0
    %2250 = vmatprep.subr.mxu0 0.0
    %2251 = vmatpush1.msra.mxu0 0.0
    %2252 = vmatprep.subr.mxu0 0.0
    %2253 = vmatpush1.msra.mxu0 0.0
    %2254 = vmatprep.subr.mxu0 0.0
    %2255 = vmatpush1.msra.mxu0 %v1837
    %2256 = vmatprep.subr.mxu0 0.0
    %2257 = vmatpush1.msra.mxu0 %v1836
    %2258 = vmatprep.subr.mxu0 0.0
    %2259 = vmatpush1.msra.mxu0 %v1835
    %2260 = vmatprep.subr.mxu0 0.0
    %2261 = vmatpush1.msra.mxu0 %v1834
    %2262 = vmatprep.subr.mxu0 0.0
    %2263 = vmatpush1.msra.mxu0 %v1833
    %2264 = vmatprep.subr.mxu0 0.0
    %2265 = vmatpush1.msra.mxu0 %v1832
    %2266 = vmatprep.subr.mxu0 0.0
    %2267 = vmatpush1.msra.mxu0 %v1831
    %2268 = vmatprep.subr.mxu0 0.0
    %2269 = vmatpush1.msra.mxu0 %v1830
    %2270 = vmatprep.subr.mxu0 0.0
    %2271 = vmatpush2.msra.mxu0 0.0
    %2272 = vmatprep.subr.mxu0 0.0
    %2273 = vmatpush2.msra.mxu0 0.0
    %2274 = vmatprep.subr.mxu0 0.0
    %2275 = vmatpush2.msra.mxu0 0.0
    %2276 = vmatprep.subr.mxu0 0.0
    %2277 = vmatpush2.msra.mxu0 0.0
    %2278 = vmatprep.subr.mxu0 0.0
    %2279 = vmatpush2.msra.mxu0 0.0
    %2280 = vmatprep.subr.mxu0 0.0
    %2281 = vmatpush2.msra.mxu0 0.0
    %2282 = vmatprep.subr.mxu0 0.0
    %2283 = vmatpush2.msra.mxu0 0.0
    %2284 = vmatprep.subr.mxu0 0.0
    %2285 = vmatpush2.msra.mxu0 0.0
    %2286 = vmatprep.subr.mxu0 0.0
    %2287 = vmatpush2.msra.mxu0 0.0
    %2288 = vmatprep.subr.mxu0 0.0
    %2289 = vmatpush2.msra.mxu0 0.0
    %2290 = vmatprep.subr.mxu0 0.0
    %2291 = vmatpush2.msra.mxu0 0.0
    %2292 = vmatprep.subr.mxu0 0.0
    %2293 = vmatpush2.msra.mxu0 0.0
    %2294 = vmatprep.subr.mxu0 0.0
    %2295 = vmatpush2.msra.mxu0 0.0
    %2296 = vmatprep.subr.mxu0 0.0
    %2297 = vmatpush2.msra.mxu0 0.0
    %2298 = vmatprep.subr.mxu0 0.0
    %2299 = vmatpush2.msra.mxu0 0.0
    %2300 = vmatprep.subr.mxu0 0.0
    %2301 = vmatpush2.msra.mxu0 0.0
    %2302 = vmatprep.mubr.f32.mxu0 0.0
    %2303 = vmatmul.mubr.f32.gmra.mxu0 %v2076
    %v2304 = vpop.f32.mrf.mxu0
    %v2305 = vadd.f32 %v1996, %v2304
    %v2306 = vpop.f32.mrf.mxu0
    %2307 = vdwg.mxu0
    %v2309 = vrot.slane %v2305, 7
    %v2311 = vmul.f32 %v2157, %v2309
    %v2312 = vadd.f32 %v1807, %v2311
    %v2313 = vtanh.pop %v2312
    %v2314 = vsub.f32 1.0, %v2237
    %v2315 = vmul.f32 %v2314, %v2313
    %v2316 = vrot.slane %v2074, 7
    %v2318 = vmul.f32 %v2237, %v2316
    %v2319 = vadd.f32 %v2315, %v2318
    %v2321 = vrot.slane %v2319, 1
    %v2322 = vsel %vm72, %v2321, 0
    %2324 = vmatprep.subr.mxu0 0.0
    %2325 = vmatpush1.msra.mxu0 0.0
    %2326 = vmatprep.subr.mxu0 0.0
    %2327 = vmatpush1.msra.mxu0 0.0
    %2328 = vmatprep.subr.mxu0 0.0
    %2329 = vmatpush1.msra.mxu0 0.0
    %2330 = vmatprep.subr.mxu0 0.0
    %2331 = vmatpush1.msra.mxu0 0.0
    %2332 = vmatprep.subr.mxu0 0.0
    %2333 = vmatpush1.msra.mxu0 0.0
    %2334 = vmatprep.subr.mxu0 0.0
    %2335 = vmatpush1.msra.mxu0 0.0
    %2336 = vmatprep.subr.mxu0 0.0
    %2337 = vmatpush1.msra.mxu0 0.0
    %2338 = vmatprep.subr.mxu0 0.0
    %2339 = vmatpush1.msra.mxu0 0.0
    %2340 = vmatprep.subr.mxu0 0.0
    %2341 = vmatpush1.msra.mxu0 %v1819
    %2342 = vmatprep.subr.mxu0 0.0
    %2343 = vmatpush1.msra.mxu0 %v1818
    %2344 = vmatprep.subr.mxu0 0.0
    %2345 = vmatpush1.msra.mxu0 %v1817
    %2346 = vmatprep.subr.mxu0 0.0
    %2347 = vmatpush1.msra.mxu0 %v1816
    %2348 = vmatprep.subr.mxu0 0.0
    %2349 = vmatpush1.msra.mxu0 %v1815
    %2350 = vmatprep.subr.mxu0 0.0
    %2351 = vmatpush1.msra.mxu0 %v1814
    %2352 = vmatprep.subr.mxu0 0.0
    %2353 = vmatpush1.msra.mxu0 %v1813
    %2354 = vmatprep.subr.mxu0 0.0
    %2355 = vmatpush1.msra.mxu0 %v1812
    %2356 = vmatprep.subr.mxu0 0.0
    %2357 = vmatpush2.msra.mxu0 0.0
    %2358 = vmatprep.subr.mxu0 0.0
    %2359 = vmatpush2.msra.mxu0 0.0
    %2360 = vmatprep.subr.mxu0 0.0
    %2361 = vmatpush2.msra.mxu0 0.0
    %2362 = vmatprep.subr.mxu0 0.0
    %2363 = vmatpush2.msra.mxu0 0.0
    %2364 = vmatprep.subr.mxu0 0.0
    %2365 = vmatpush2.msra.mxu0 0.0
    %2366 = vmatprep.subr.mxu0 0.0
    %2367 = vmatpush2.msra.mxu0 0.0
    %2368 = vmatprep.subr.mxu0 0.0
    %2369 = vmatpush2.msra.mxu0 0.0
    %2370 = vmatprep.subr.mxu0 0.0
    %2371 = vmatpush2.msra.mxu0 0.0
    %2372 = vmatprep.subr.mxu0 0.0
    %2373 = vmatpush2.msra.mxu0 0.0
    %2374 = vmatprep.subr.mxu0 0.0
    %2375 = vmatpush2.msra.mxu0 0.0
    %2376 = vmatprep.subr.mxu0 0.0
    %2377 = vmatpush2.msra.mxu0 0.0
    %2378 = vmatprep.subr.mxu0 0.0
    %2379 = vmatpush2.msra.mxu0 0.0
    %2380 = vmatprep.subr.mxu0 0.0
    %2381 = vmatpush2.msra.mxu0 0.0
    %2382 = vmatprep.subr.mxu0 0.0
    %2383 = vmatpush2.msra.mxu0 0.0
    %2384 = vmatprep.subr.mxu0 0.0
    %2385 = vmatpush2.msra.mxu0 0.0
    %2386 = vmatprep.subr.mxu0 0.0
    %2387 = vmatpush2.msra.mxu0 0.0
    %2388 = vmatprep.mubr.f32.mxu0 0.0
    %2389 = vmatmul.mubr.f32.gmra.mxu0 %v2322
    %v2390 = vpop.f32.mrf.mxu0
    %v2391 = vadd.f32 0.0, %v2390
    %v2392 = vpop.f32.mrf.mxu0
    %2393 = vdwg.mxu0
    %v2395 = vrot.slane %v2391, 6
    %v2397 = vadd.f32 %v1653, %v2395
    %v2398 = vxor.u32 %v2397, 2147483648
    %v2399 = vmul.f32 %v2398, 1.442695
    %v2400 = vpow.pop %v2399
    %v2401 = vadd.f32 %v2400, 1.0
    %v2402 = vrcp.pop %v2401
    %v2403 = vmul.f32 1.0, %v2402
    %2404 = vmatprep.subr.mxu0 0.0
    %2405 = vmatpush1.msra.mxu0 0.0
    %2406 = vmatprep.subr.mxu0 0.0
    %2407 = vmatpush1.msra.mxu0 0.0
    %2408 = vmatprep.subr.mxu0 0.0
    %2409 = vmatpush1.msra.mxu0 0.0
    %2410 = vmatprep.subr.mxu0 0.0
    %2411 = vmatpush1.msra.mxu0 0.0
    %2412 = vmatprep.subr.mxu0 0.0
    %2413 = vmatpush1.msra.mxu0 0.0
    %2414 = vmatprep.subr.mxu0 0.0
    %2415 = vmatpush1.msra.mxu0 0.0
    %2416 = vmatprep.subr.mxu0 0.0
    %2417 = vmatpush1.msra.mxu0 0.0
    %2418 = vmatprep.subr.mxu0 0.0
    %2419 = vmatpush1.msra.mxu0 0.0
    %2420 = vmatprep.subr.mxu0 0.0
    %2421 = vmatpush1.msra.mxu0 %v1828
    %2422 = vmatprep.subr.mxu0 0.0
    %2423 = vmatpush1.msra.mxu0 %v1827
    %2424 = vmatprep.subr.mxu0 0.0
    %2425 = vmatpush1.msra.mxu0 %v1826
    %2426 = vmatprep.subr.mxu0 0.0
    %2427 = vmatpush1.msra.mxu0 %v1825
    %2428 = vmatprep.subr.mxu0 0.0
    %2429 = vmatpush1.msra.mxu0 %v1824
    %2430 = vmatprep.subr.mxu0 0.0
    %2431 = vmatpush1.msra.mxu0 %v1823
    %2432 = vmatprep.subr.mxu0 0.0
    %2433 = vmatpush1.msra.mxu0 %v1822
    %2434 = vmatprep.subr.mxu0 0.0
    %2435 = vmatpush1.msra.mxu0 %v1821
    %2436 = vmatprep.subr.mxu0 0.0
    %2437 = vmatpush2.msra.mxu0 0.0
    %2438 = vmatprep.subr.mxu0 0.0
    %2439 = vmatpush2.msra.mxu0 0.0
    %2440 = vmatprep.subr.mxu0 0.0
    %2441 = vmatpush2.msra.mxu0 0.0
    %2442 = vmatprep.subr.mxu0 0.0
    %2443 = vmatpush2.msra.mxu0 0.0
    %2444 = vmatprep.subr.mxu0 0.0
    %2445 = vmatpush2.msra.mxu0 0.0
    %2446 = vmatprep.subr.mxu0 0.0
    %2447 = vmatpush2.msra.mxu0 0.0
    %2448 = vmatprep.subr.mxu0 0.0
    %2449 = vmatpush2.msra.mxu0 0.0
    %2450 = vmatprep.subr.mxu0 0.0
    %2451 = vmatpush2.msra.mxu0 0.0
    %2452 = vmatprep.subr.mxu0 0.0
    %2453 = vmatpush2.msra.mxu0 0.0
    %2454 = vmatprep.subr.mxu0 0.0
    %2455 = vmatpush2.msra.mxu0 0.0
    %2456 = vmatprep.subr.mxu0 0.0
    %2457 = vmatpush2.msra.mxu0 0.0
    %2458 = vmatprep.subr.mxu0 0.0
    %2459 = vmatpush2.msra.mxu0 0.0
    %2460 = vmatprep.subr.mxu0 0.0
    %2461 = vmatpush2.msra.mxu0 0.0
    %2462 = vmatprep.subr.mxu0 0.0
    %2463 = vmatpush2.msra.mxu0 0.0
    %2464 = vmatprep.subr.mxu0 0.0
    %2465 = vmatpush2.msra.mxu0 0.0
    %2466 = vmatprep.subr.mxu0 0.0
    %2467 = vmatpush2.msra.mxu0 0.0
    %2468 = vmatprep.mubr.f32.mxu0 0.0
    %2469 = vmatmul.mubr.f32.gmra.mxu0 %v2322
    %v2470 = vpop.f32.mrf.mxu0
    %v2471 = vadd.f32 0.0, %v2470
    %v2472 = vpop.f32.mrf.mxu0
    %2473 = vdwg.mxu0
    %v2475 = vrot.slane %v2471, 6
    %v2477 = vadd.f32 %v1730, %v2475
    %v2478 = vxor.u32 %v2477, 2147483648
    %v2479 = vmul.f32 %v2478, 1.442695
    %v2480 = vpow.pop %v2479
    %v2481 = vadd.f32 %v2480, 1.0
    %v2482 = vrcp.pop %v2481
    %v2483 = vmul.f32 1.0, %v2482
    %2484 = vmatprep.subr.mxu0 0.0
    %2485 = vmatpush1.msra.mxu0 0.0
    %2486 = vmatprep.subr.mxu0 0.0
    %2487 = vmatpush1.msra.mxu0 0.0
    %2488 = vmatprep.subr.mxu0 0.0
    %2489 = vmatpush1.msra.mxu0 0.0
    %2490 = vmatprep.subr.mxu0 0.0
    %2491 = vmatpush1.msra.mxu0 0.0
    %2492 = vmatprep.subr.mxu0 0.0
    %2493 = vmatpush1.msra.mxu0 0.0
    %2494 = vmatprep.subr.mxu0 0.0
    %2495 = vmatpush1.msra.mxu0 0.0
    %2496 = vmatprep.subr.mxu0 0.0
    %2497 = vmatpush1.msra.mxu0 0.0
    %2498 = vmatprep.subr.mxu0 0.0
    %2499 = vmatpush1.msra.mxu0 0.0
    %2500 = vmatprep.subr.mxu0 0.0
    %2501 = vmatpush1.msra.mxu0 %v1837
    %2502 = vmatprep.subr.mxu0 0.0
    %2503 = vmatpush1.msra.mxu0 %v1836
    %2504 = vmatprep.subr.mxu0 0.0
    %2505 = vmatpush1.msra.mxu0 %v1835
    %2506 = vmatprep.subr.mxu0 0.0
    %2507 = vmatpush1.msra.mxu0 %v1834
    %2508 = vmatprep.subr.mxu0 0.0
    %2509 = vmatpush1.msra.mxu0 %v1833
    %2510 = vmatprep.subr.mxu0 0.0
    %2511 = vmatpush1.msra.mxu0 %v1832
    %2512 = vmatprep.subr.mxu0 0.0
    %2513 = vmatpush1.msra.mxu0 %v1831
    %2514 = vmatprep.subr.mxu0 0.0
    %2515 = vmatpush1.msra.mxu0 %v1830
    %2516 = vmatprep.subr.mxu0 0.0
    %2517 = vmatpush2.msra.mxu0 0.0
    %2518 = vmatprep.subr.mxu0 0.0
    %2519 = vmatpush2.msra.mxu0 0.0
    %2520 = vmatprep.subr.mxu0 0.0
    %2521 = vmatpush2.msra.mxu0 0.0
    %2522 = vmatprep.subr.mxu0 0.0
    %2523 = vmatpush2.msra.mxu0 0.0
    %2524 = vmatprep.subr.mxu0 0.0
    %2525 = vmatpush2.msra.mxu0 0.0
    %2526 = vmatprep.subr.mxu0 0.0
    %2527 = vmatpush2.msra.mxu0 0.0
    %2528 = vmatprep.subr.mxu0 0.0
    %2529 = vmatpush2.msra.mxu0 0.0
    %2530 = vmatprep.subr.mxu0 0.0
    %2531 = vmatpush2.msra.mxu0 0.0
    %2532 = vmatprep.subr.mxu0 0.0
    %2533 = vmatpush2.msra.mxu0 0.0
    %2534 = vmatprep.subr.mxu0 0.0
    %2535 = vmatpush2.msra.mxu0 0.0
    %2536 = vmatprep.subr.mxu0 0.0
    %2537 = vmatpush2.msra.mxu0 0.0
    %2538 = vmatprep.subr.mxu0 0.0
    %2539 = vmatpush2.msra.mxu0 0.0
    %2540 = vmatprep.subr.mxu0 0.0
    %2541 = vmatpush2.msra.mxu0 0.0
    %2542 = vmatprep.subr.mxu0 0.0
    %2543 = vmatpush2.msra.mxu0 0.0
    %2544 = vmatprep.subr.mxu0 0.0
    %2545 = vmatpush2.msra.mxu0 0.0
    %2546 = vmatprep.subr.mxu0 0.0
    %2547 = vmatpush2.msra.mxu0 0.0
    %2548 = vmatprep.mubr.f32.mxu0 0.0
    %2549 = vmatmul.mubr.f32.gmra.mxu0 %v2322
    %v2550 = vpop.f32.mrf.mxu0
    %v2551 = vadd.f32 %v1996, %v2550
    %v2552 = vpop.f32.mrf.mxu0
    %2553 = vdwg.mxu0
    %v2555 = vrot.slane %v2551, 6
    %v2557 = vmul.f32 %v2403, %v2555
    %v2558 = vadd.f32 %v1807, %v2557
    %v2559 = vtanh.pop %v2558
    %v2560 = vsub.f32 1.0, %v2483
    %v2561 = vmul.f32 %v2560, %v2559
    %v2562 = vrot.slane %v2319, 7
    %v2564 = vmul.f32 %v2483, %v2562
    %v2565 = vadd.f32 %v2561, %v2564
    %v2567 = vrot.slane %v2565, 2
    %v2568 = vsel %vm72, %v2567, 0
    %2570 = vmatprep.subr.mxu0 0.0
    %2571 = vmatpush1.msra.mxu0 0.0
    %2572 = vmatprep.subr.mxu0 0.0
    %2573 = vmatpush1.msra.mxu0 0.0
    %2574 = vmatprep.subr.mxu0 0.0
    %2575 = vmatpush1.msra.mxu0 0.0
    %2576 = vmatprep.subr.mxu0 0.0
    %2577 = vmatpush1.msra.mxu0 0.0
    %2578 = vmatprep.subr.mxu0 0.0
    %2579 = vmatpush1.msra.mxu0 0.0
    %2580 = vmatprep.subr.mxu0 0.0
    %2581 = vmatpush1.msra.mxu0 0.0
    %2582 = vmatprep.subr.mxu0 0.0
    %2583 = vmatpush1.msra.mxu0 0.0
    %2584 = vmatprep.subr.mxu0 0.0
    %2585 = vmatpush1.msra.mxu0 0.0
    %2586 = vmatprep.subr.mxu0 0.0
    %2587 = vmatpush1.msra.mxu0 %v1819
    %2588 = vmatprep.subr.mxu0 0.0
    %2589 = vmatpush1.msra.mxu0 %v1818
    %2590 = vmatprep.subr.mxu0 0.0
    %2591 = vmatpush1.msra.mxu0 %v1817
    %2592 = vmatprep.subr.mxu0 0.0
    %2593 = vmatpush1.msra.mxu0 %v1816
    %2594 = vmatprep.subr.mxu0 0.0
    %2595 = vmatpush1.msra.mxu0 %v1815
    %2596 = vmatprep.subr.mxu0 0.0
    %2597 = vmatpush1.msra.mxu0 %v1814
    %2598 = vmatprep.subr.mxu0 0.0
    %2599 = vmatpush1.msra.mxu0 %v1813
    %2600 = vmatprep.subr.mxu0 0.0
    %2601 = vmatpush1.msra.mxu0 %v1812
    %2602 = vmatprep.subr.mxu0 0.0
    %2603 = vmatpush2.msra.mxu0 0.0
    %2604 = vmatprep.subr.mxu0 0.0
    %2605 = vmatpush2.msra.mxu0 0.0
    %2606 = vmatprep.subr.mxu0 0.0
    %2607 = vmatpush2.msra.mxu0 0.0
    %2608 = vmatprep.subr.mxu0 0.0
    %2609 = vmatpush2.msra.mxu0 0.0
    %2610 = vmatprep.subr.mxu0 0.0
    %2611 = vmatpush2.msra.mxu0 0.0
    %2612 = vmatprep.subr.mxu0 0.0
    %2613 = vmatpush2.msra.mxu0 0.0
    %2614 = vmatprep.subr.mxu0 0.0
    %2615 = vmatpush2.msra.mxu0 0.0
    %2616 = vmatprep.subr.mxu0 0.0
    %2617 = vmatpush2.msra.mxu0 0.0
    %2618 = vmatprep.subr.mxu0 0.0
    %2619 = vmatpush2.msra.mxu0 0.0
    %2620 = vmatprep.subr.mxu0 0.0
    %2621 = vmatpush2.msra.mxu0 0.0
    %2622 = vmatprep.subr.mxu0 0.0
    %2623 = vmatpush2.msra.mxu0 0.0
    %2624 = vmatprep.subr.mxu0 0.0
    %2625 = vmatpush2.msra.mxu0 0.0
    %2626 = vmatprep.subr.mxu0 0.0
    %2627 = vmatpush2.msra.mxu0 0.0
    %2628 = vmatprep.subr.mxu0 0.0
    %2629 = vmatpush2.msra.mxu0 0.0
    %2630 = vmatprep.subr.mxu0 0.0
    %2631 = vmatpush2.msra.mxu0 0.0
    %2632 = vmatprep.subr.mxu0 0.0
    %2633 = vmatpush2.msra.mxu0 0.0
    %2634 = vmatprep.mubr.f32.mxu0 0.0
    %2635 = vmatmul.mubr.f32.gmra.mxu0 %v2568
    %v2636 = vpop.f32.mrf.mxu0
    %v2637 = vadd.f32 0.0, %v2636
    %v2638 = vpop.f32.mrf.mxu0
    %2639 = vdwg.mxu0
    %v2641 = vrot.slane %v2637, 5
    %v2643 = vadd.f32 %v1653, %v2641
    %v2644 = vxor.u32 %v2643, 2147483648
    %v2645 = vmul.f32 %v2644, 1.442695
    %v2646 = vpow.pop %v2645
    %v2647 = vadd.f32 %v2646, 1.0
    %v2648 = vrcp.pop %v2647
    %v2649 = vmul.f32 1.0, %v2648
    %2650 = vmatprep.subr.mxu0 0.0
    %2651 = vmatpush1.msra.mxu0 0.0
    %2652 = vmatprep.subr.mxu0 0.0
    %2653 = vmatpush1.msra.mxu0 0.0
    %2654 = vmatprep.subr.mxu0 0.0
    %2655 = vmatpush1.msra.mxu0 0.0
    %2656 = vmatprep.subr.mxu0 0.0
    %2657 = vmatpush1.msra.mxu0 0.0
    %2658 = vmatprep.subr.mxu0 0.0
    %2659 = vmatpush1.msra.mxu0 0.0
    %2660 = vmatprep.subr.mxu0 0.0
    %2661 = vmatpush1.msra.mxu0 0.0
    %2662 = vmatprep.subr.mxu0 0.0
    %2663 = vmatpush1.msra.mxu0 0.0
    %2664 = vmatprep.subr.mxu0 0.0
    %2665 = vmatpush1.msra.mxu0 0.0
    %2666 = vmatprep.subr.mxu0 0.0
    %2667 = vmatpush1.msra.mxu0 %v1828
    %2668 = vmatprep.subr.mxu0 0.0
    %2669 = vmatpush1.msra.mxu0 %v1827
    %2670 = vmatprep.subr.mxu0 0.0
    %2671 = vmatpush1.msra.mxu0 %v1826
    %2672 = vmatprep.subr.mxu0 0.0
    %2673 = vmatpush1.msra.mxu0 %v1825
    %2674 = vmatprep.subr.mxu0 0.0
    %2675 = vmatpush1.msra.mxu0 %v1824
    %2676 = vmatprep.subr.mxu0 0.0
    %2677 = vmatpush1.msra.mxu0 %v1823
    %2678 = vmatprep.subr.mxu0 0.0
    %2679 = vmatpush1.msra.mxu0 %v1822
    %2680 = vmatprep.subr.mxu0 0.0
    %2681 = vmatpush1.msra.mxu0 %v1821
    %2682 = vmatprep.subr.mxu0 0.0
    %2683 = vmatpush2.msra.mxu0 0.0
    %2684 = vmatprep.subr.mxu0 0.0
    %2685 = vmatpush2.msra.mxu0 0.0
    %2686 = vmatprep.subr.mxu0 0.0
    %2687 = vmatpush2.msra.mxu0 0.0
    %2688 = vmatprep.subr.mxu0 0.0
    %2689 = vmatpush2.msra.mxu0 0.0
    %2690 = vmatprep.subr.mxu0 0.0
    %2691 = vmatpush2.msra.mxu0 0.0
    %2692 = vmatprep.subr.mxu0 0.0
    %2693 = vmatpush2.msra.mxu0 0.0
    %2694 = vmatprep.subr.mxu0 0.0
    %2695 = vmatpush2.msra.mxu0 0.0
    %2696 = vmatprep.subr.mxu0 0.0
    %2697 = vmatpush2.msra.mxu0 0.0
    %2698 = vmatprep.subr.mxu0 0.0
    %2699 = vmatpush2.msra.mxu0 0.0
    %2700 = vmatprep.subr.mxu0 0.0
    %2701 = vmatpush2.msra.mxu0 0.0
    %2702 = vmatprep.subr.mxu0 0.0
    %2703 = vmatpush2.msra.mxu0 0.0
    %2704 = vmatprep.subr.mxu0 0.0
    %2705 = vmatpush2.msra.mxu0 0.0
    %2706 = vmatprep.subr.mxu0 0.0
    %2707 = vmatpush2.msra.mxu0 0.0
    %2708 = vmatprep.subr.mxu0 0.0
    %2709 = vmatpush2.msra.mxu0 0.0
    %2710 = vmatprep.subr.mxu0 0.0
    %2711 = vmatpush2.msra.mxu0 0.0
    %2712 = vmatprep.subr.mxu0 0.0
    %2713 = vmatpush2.msra.mxu0 0.0
    %2714 = vmatprep.mubr.f32.mxu0 0.0
    %2715 = vmatmul.mubr.f32.gmra.mxu0 %v2568
    %v2716 = vpop.f32.mrf.mxu0
    %v2717 = vadd.f32 0.0, %v2716
    %v2718 = vpop.f32.mrf.mxu0
    %2719 = vdwg.mxu0
    %v2721 = vrot.slane %v2717, 5
    %v2723 = vadd.f32 %v1730, %v2721
    %v2724 = vxor.u32 %v2723, 2147483648
    %v2725 = vmul.f32 %v2724, 1.442695
    %v2726 = vpow.pop %v2725
    %v2727 = vadd.f32 %v2726, 1.0
    %v2728 = vrcp.pop %v2727
    %v2729 = vmul.f32 1.0, %v2728
    %2730 = vmatprep.subr.mxu0 0.0
    %2731 = vmatpush1.msra.mxu0 0.0
    %2732 = vmatprep.subr.mxu0 0.0
    %2733 = vmatpush1.msra.mxu0 0.0
    %2734 = vmatprep.subr.mxu0 0.0
    %2735 = vmatpush1.msra.mxu0 0.0
    %2736 = vmatprep.subr.mxu0 0.0
    %2737 = vmatpush1.msra.mxu0 0.0
    %2738 = vmatprep.subr.mxu0 0.0
    %2739 = vmatpush1.msra.mxu0 0.0
    %2740 = vmatprep.subr.mxu0 0.0
    %2741 = vmatpush1.msra.mxu0 0.0
    %2742 = vmatprep.subr.mxu0 0.0
    %2743 = vmatpush1.msra.mxu0 0.0
    %2744 = vmatprep.subr.mxu0 0.0
    %2745 = vmatpush1.msra.mxu0 0.0
    %2746 = vmatprep.subr.mxu0 0.0
    %2747 = vmatpush1.msra.mxu0 %v1837
    %2748 = vmatprep.subr.mxu0 0.0
    %2749 = vmatpush1.msra.mxu0 %v1836
    %2750 = vmatprep.subr.mxu0 0.0
    %2751 = vmatpush1.msra.mxu0 %v1835
    %2752 = vmatprep.subr.mxu0 0.0
    %2753 = vmatpush1.msra.mxu0 %v1834
    %2754 = vmatprep.subr.mxu0 0.0
    %2755 = vmatpush1.msra.mxu0 %v1833
    %2756 = vmatprep.subr.mxu0 0.0
    %2757 = vmatpush1.msra.mxu0 %v1832
    %2758 = vmatprep.subr.mxu0 0.0
    %2759 = vmatpush1.msra.mxu0 %v1831
    %2760 = vmatprep.subr.mxu0 0.0
    %2761 = vmatpush1.msra.mxu0 %v1830
    %2762 = vmatprep.subr.mxu0 0.0
    %2763 = vmatpush2.msra.mxu0 0.0
    %2764 = vmatprep.subr.mxu0 0.0
    %2765 = vmatpush2.msra.mxu0 0.0
    %2766 = vmatprep.subr.mxu0 0.0
    %2767 = vmatpush2.msra.mxu0 0.0
    %2768 = vmatprep.subr.mxu0 0.0
    %2769 = vmatpush2.msra.mxu0 0.0
    %2770 = vmatprep.subr.mxu0 0.0
    %2771 = vmatpush2.msra.mxu0 0.0
    %2772 = vmatprep.subr.mxu0 0.0
    %2773 = vmatpush2.msra.mxu0 0.0
    %2774 = vmatprep.subr.mxu0 0.0
    %2775 = vmatpush2.msra.mxu0 0.0
    %2776 = vmatprep.subr.mxu0 0.0
    %2777 = vmatpush2.msra.mxu0 0.0
    %2778 = vmatprep.subr.mxu0 0.0
    %2779 = vmatpush2.msra.mxu0 0.0
    %2780 = vmatprep.subr.mxu0 0.0
    %2781 = vmatpush2.msra.mxu0 0.0
    %2782 = vmatprep.subr.mxu0 0.0
    %2783 = vmatpush2.msra.mxu0 0.0
    %2784 = vmatprep.subr.mxu0 0.0
    %2785 = vmatpush2.msra.mxu0 0.0
    %2786 = vmatprep.subr.mxu0 0.0
    %2787 = vmatpush2.msra.mxu0 0.0
    %2788 = vmatprep.subr.mxu0 0.0
    %2789 = vmatpush2.msra.mxu0 0.0
    %2790 = vmatprep.subr.mxu0 0.0
    %2791 = vmatpush2.msra.mxu0 0.0
    %2792 = vmatprep.subr.mxu0 0.0
    %2793 = vmatpush2.msra.mxu0 0.0
    %2794 = vmatprep.mubr.f32.mxu0 0.0
    %2795 = vmatmul.mubr.f32.gmra.mxu0 %v2568
    %v2796 = vpop.f32.mrf.mxu0
    %v2797 = vadd.f32 %v1996, %v2796
    %v2798 = vpop.f32.mrf.mxu0
    %2799 = vdwg.mxu0
    %v2801 = vrot.slane %v2797, 5
    %v2803 = vmul.f32 %v2649, %v2801
    %v2804 = vadd.f32 %v1807, %v2803
    %v2805 = vtanh.pop %v2804
    %v2806 = vsub.f32 1.0, %v2729
    %v2807 = vmul.f32 %v2806, %v2805
    %v2808 = vrot.slane %v2565, 7
    %v2810 = vmul.f32 %v2729, %v2808
    %v2811 = vadd.f32 %v2807, %v2810
    %v2813 = vrot.slane %v2811, 3
    %v2814 = vsel %vm72, %v2813, 0
    %2816 = vmatprep.subr.mxu0 0.0
    %2817 = vmatpush1.msra.mxu0 0.0
    %2818 = vmatprep.subr.mxu0 0.0
    %2819 = vmatpush1.msra.mxu0 0.0
    %2820 = vmatprep.subr.mxu0 0.0
    %2821 = vmatpush1.msra.mxu0 0.0
    %2822 = vmatprep.subr.mxu0 0.0
    %2823 = vmatpush1.msra.mxu0 0.0
    %2824 = vmatprep.subr.mxu0 0.0
    %2825 = vmatpush1.msra.mxu0 0.0
    %2826 = vmatprep.subr.mxu0 0.0
    %2827 = vmatpush1.msra.mxu0 0.0
    %2828 = vmatprep.subr.mxu0 0.0
    %2829 = vmatpush1.msra.mxu0 0.0
    %2830 = vmatprep.subr.mxu0 0.0
    %2831 = vmatpush1.msra.mxu0 0.0
    %2832 = vmatprep.subr.mxu0 0.0
    %2833 = vmatpush1.msra.mxu0 %v1819
    %2834 = vmatprep.subr.mxu0 0.0
    %2835 = vmatpush1.msra.mxu0 %v1818
    %2836 = vmatprep.subr.mxu0 0.0
    %2837 = vmatpush1.msra.mxu0 %v1817
    %2838 = vmatprep.subr.mxu0 0.0
    %2839 = vmatpush1.msra.mxu0 %v1816
    %2840 = vmatprep.subr.mxu0 0.0
    %2841 = vmatpush1.msra.mxu0 %v1815
    %2842 = vmatprep.subr.mxu0 0.0
    %2843 = vmatpush1.msra.mxu0 %v1814
    %2844 = vmatprep.subr.mxu0 0.0
    %2845 = vmatpush1.msra.mxu0 %v1813
    %2846 = vmatprep.subr.mxu0 0.0
    %2847 = vmatpush1.msra.mxu0 %v1812
    %2848 = vmatprep.subr.mxu0 0.0
    %2849 = vmatpush2.msra.mxu0 0.0
    %2850 = vmatprep.subr.mxu0 0.0
    %2851 = vmatpush2.msra.mxu0 0.0
    %2852 = vmatprep.subr.mxu0 0.0
    %2853 = vmatpush2.msra.mxu0 0.0
    %2854 = vmatprep.subr.mxu0 0.0
    %2855 = vmatpush2.msra.mxu0 0.0
    %2856 = vmatprep.subr.mxu0 0.0
    %2857 = vmatpush2.msra.mxu0 0.0
    %2858 = vmatprep.subr.mxu0 0.0
    %2859 = vmatpush2.msra.mxu0 0.0
    %2860 = vmatprep.subr.mxu0 0.0
    %2861 = vmatpush2.msra.mxu0 0.0
    %2862 = vmatprep.subr.mxu0 0.0
    %2863 = vmatpush2.msra.mxu0 0.0
    %2864 = vmatprep.subr.mxu0 0.0
    %2865 = vmatpush2.msra.mxu0 0.0
    %2866 = vmatprep.subr.mxu0 0.0
    %2867 = vmatpush2.msra.mxu0 0.0
    %2868 = vmatprep.subr.mxu0 0.0
    %2869 = vmatpush2.msra.mxu0 0.0
    %2870 = vmatprep.subr.mxu0 0.0
    %2871 = vmatpush2.msra.mxu0 0.0
    %2872 = vmatprep.subr.mxu0 0.0
    %2873 = vmatpush2.msra.mxu0 0.0
    %2874 = vmatprep.subr.mxu0 0.0
    %2875 = vmatpush2.msra.mxu0 0.0
    %2876 = vmatprep.subr.mxu0 0.0
    %2877 = vmatpush2.msra.mxu0 0.0
    %2878 = vmatprep.subr.mxu0 0.0
    %2879 = vmatpush2.msra.mxu0 0.0
    %2880 = vmatprep.mubr.f32.mxu0 0.0
    %2881 = vmatmul.mubr.f32.gmra.mxu0 %v2814
    %v2882 = vpop.f32.mrf.mxu0
    %v2883 = vadd.f32 0.0, %v2882
    %v2884 = vpop.f32.mrf.mxu0
    %2885 = vdwg.mxu0
    %v2887 = vrot.slane %v2883, 4
    %v2889 = vadd.f32 %v1653, %v2887
    %v2890 = vxor.u32 %v2889, 2147483648
    %v2891 = vmul.f32 %v2890, 1.442695
    %v2892 = vpow.pop %v2891
    %v2893 = vadd.f32 %v2892, 1.0
    %v2894 = vrcp.pop %v2893
    %v2895 = vmul.f32 1.0, %v2894
    %2896 = vmatprep.subr.mxu0 0.0
    %2897 = vmatpush1.msra.mxu0 0.0
    %2898 = vmatprep.subr.mxu0 0.0
    %2899 = vmatpush1.msra.mxu0 0.0
    %2900 = vmatprep.subr.mxu0 0.0
    %2901 = vmatpush1.msra.mxu0 0.0
    %2902 = vmatprep.subr.mxu0 0.0
    %2903 = vmatpush1.msra.mxu0 0.0
    %2904 = vmatprep.subr.mxu0 0.0
    %2905 = vmatpush1.msra.mxu0 0.0
    %2906 = vmatprep.subr.mxu0 0.0
    %2907 = vmatpush1.msra.mxu0 0.0
    %2908 = vmatprep.subr.mxu0 0.0
    %2909 = vmatpush1.msra.mxu0 0.0
    %2910 = vmatprep.subr.mxu0 0.0
    %2911 = vmatpush1.msra.mxu0 0.0
    %2912 = vmatprep.subr.mxu0 0.0
    %2913 = vmatpush1.msra.mxu0 %v1828
    %2914 = vmatprep.subr.mxu0 0.0
    %2915 = vmatpush1.msra.mxu0 %v1827
    %2916 = vmatprep.subr.mxu0 0.0
    %2917 = vmatpush1.msra.mxu0 %v1826
    %2918 = vmatprep.subr.mxu0 0.0
    %2919 = vmatpush1.msra.mxu0 %v1825
    %2920 = vmatprep.subr.mxu0 0.0
    %2921 = vmatpush1.msra.mxu0 %v1824
    %2922 = vmatprep.subr.mxu0 0.0
    %2923 = vmatpush1.msra.mxu0 %v1823
    %2924 = vmatprep.subr.mxu0 0.0
    %2925 = vmatpush1.msra.mxu0 %v1822
    %2926 = vmatprep.subr.mxu0 0.0
    %2927 = vmatpush1.msra.mxu0 %v1821
    %2928 = vmatprep.subr.mxu0 0.0
    %2929 = vmatpush2.msra.mxu0 0.0
    %2930 = vmatprep.subr.mxu0 0.0
    %2931 = vmatpush2.msra.mxu0 0.0
    %2932 = vmatprep.subr.mxu0 0.0
    %2933 = vmatpush2.msra.mxu0 0.0
    %2934 = vmatprep.subr.mxu0 0.0
    %2935 = vmatpush2.msra.mxu0 0.0
    %2936 = vmatprep.subr.mxu0 0.0
    %2937 = vmatpush2.msra.mxu0 0.0
    %2938 = vmatprep.subr.mxu0 0.0
    %2939 = vmatpush2.msra.mxu0 0.0
    %2940 = vmatprep.subr.mxu0 0.0
    %2941 = vmatpush2.msra.mxu0 0.0
    %2942 = vmatprep.subr.mxu0 0.0
    %2943 = vmatpush2.msra.mxu0 0.0
    %2944 = vmatprep.subr.mxu0 0.0
    %2945 = vmatpush2.msra.mxu0 0.0
    %2946 = vmatprep.subr.mxu0 0.0
    %2947 = vmatpush2.msra.mxu0 0.0
    %2948 = vmatprep.subr.mxu0 0.0
    %2949 = vmatpush2.msra.mxu0 0.0
    %2950 = vmatprep.subr.mxu0 0.0
    %2951 = vmatpush2.msra.mxu0 0.0
    %2952 = vmatprep.subr.mxu0 0.0
    %2953 = vmatpush2.msra.mxu0 0.0
    %2954 = vmatprep.subr.mxu0 0.0
    %2955 = vmatpush2.msra.mxu0 0.0
    %2956 = vmatprep.subr.mxu0 0.0
    %2957 = vmatpush2.msra.mxu0 0.0
    %2958 = vmatprep.subr.mxu0 0.0
    %2959 = vmatpush2.msra.mxu0 0.0
    %2960 = vmatprep.mubr.f32.mxu0 0.0
    %2961 = vmatmul.mubr.f32.gmra.mxu0 %v2814
    %v2962 = vpop.f32.mrf.mxu0
    %v2963 = vadd.f32 0.0, %v2962
    %v2964 = vpop.f32.mrf.mxu0
    %2965 = vdwg.mxu0
    %v2967 = vrot.slane %v2963, 4
    %v2969 = vadd.f32 %v1730, %v2967
    %v2970 = vxor.u32 %v2969, 2147483648
    %v2971 = vmul.f32 %v2970, 1.442695
    %v2972 = vpow.pop %v2971
    %v2973 = vadd.f32 %v2972, 1.0
    %v2974 = vrcp.pop %v2973
    %v2975 = vmul.f32 1.0, %v2974
    %2976 = vmatprep.subr.mxu0 0.0
    %2977 = vmatpush1.msra.mxu0 0.0
    %2978 = vmatprep.subr.mxu0 0.0
    %2979 = vmatpush1.msra.mxu0 0.0
    %2980 = vmatprep.subr.mxu0 0.0
    %2981 = vmatpush1.msra.mxu0 0.0
    %2982 = vmatprep.subr.mxu0 0.0
    %2983 = vmatpush1.msra.mxu0 0.0
    %2984 = vmatprep.subr.mxu0 0.0
    %2985 = vmatpush1.msra.mxu0 0.0
    %2986 = vmatprep.subr.mxu0 0.0
    %2987 = vmatpush1.msra.mxu0 0.0
    %2988 = vmatprep.subr.mxu0 0.0
    %2989 = vmatpush1.msra.mxu0 0.0
    %2990 = vmatprep.subr.mxu0 0.0
    %2991 = vmatpush1.msra.mxu0 0.0
    %2992 = vmatprep.subr.mxu0 0.0
    %2993 = vmatpush1.msra.mxu0 %v1837
    %2994 = vmatprep.subr.mxu0 0.0
    %2995 = vmatpush1.msra.mxu0 %v1836
    %2996 = vmatprep.subr.mxu0 0.0
    %2997 = vmatpush1.msra.mxu0 %v1835
    %2998 = vmatprep.subr.mxu0 0.0
    %2999 = vmatpush1.msra.mxu0 %v1834
    %3000 = vmatprep.subr.mxu0 0.0
    %3001 = vmatpush1.msra.mxu0 %v1833
    %3002 = vmatprep.subr.mxu0 0.0
    %3003 = vmatpush1.msra.mxu0 %v1832
    %3004 = vmatprep.subr.mxu0 0.0
    %3005 = vmatpush1.msra.mxu0 %v1831
    %3006 = vmatprep.subr.mxu0 0.0
    %3007 = vmatpush1.msra.mxu0 %v1830
    %3008 = vmatprep.subr.mxu0 0.0
    %3009 = vmatpush2.msra.mxu0 0.0
    %3010 = vmatprep.subr.mxu0 0.0
    %3011 = vmatpush2.msra.mxu0 0.0
    %3012 = vmatprep.subr.mxu0 0.0
    %3013 = vmatpush2.msra.mxu0 0.0
    %3014 = vmatprep.subr.mxu0 0.0
    %3015 = vmatpush2.msra.mxu0 0.0
    %3016 = vmatprep.subr.mxu0 0.0
    %3017 = vmatpush2.msra.mxu0 0.0
    %3018 = vmatprep.subr.mxu0 0.0
    %3019 = vmatpush2.msra.mxu0 0.0
    %3020 = vmatprep.subr.mxu0 0.0
    %3021 = vmatpush2.msra.mxu0 0.0
    %3022 = vmatprep.subr.mxu0 0.0
    %3023 = vmatpush2.msra.mxu0 0.0
    %3024 = vmatprep.subr.mxu0 0.0
    %3025 = vmatpush2.msra.mxu0 0.0
    %3026 = vmatprep.subr.mxu0 0.0
    %3027 = vmatpush2.msra.mxu0 0.0
    %3028 = vmatprep.subr.mxu0 0.0
    %3029 = vmatpush2.msra.mxu0 0.0
    %3030 = vmatprep.subr.mxu0 0.0
    %3031 = vmatpush2.msra.mxu0 0.0
    %3032 = vmatprep.subr.mxu0 0.0
    %3033 = vmatpush2.msra.mxu0 0.0
    %3034 = vmatprep.subr.mxu0 0.0
    %3035 = vmatpush2.msra.mxu0 0.0
    %3036 = vmatprep.subr.mxu0 0.0
    %3037 = vmatpush2.msra.mxu0 0.0
    %3038 = vmatprep.subr.mxu0 0.0
    %3039 = vmatpush2.msra.mxu0 0.0
    %3040 = vmatprep.mubr.f32.mxu0 0.0
    %3041 = vmatmul.mubr.f32.gmra.mxu0 %v2814
    %v3042 = vpop.f32.mrf.mxu0
    %v3043 = vadd.f32 %v1996, %v3042
    %v3044 = vpop.f32.mrf.mxu0
    %3045 = vdwg.mxu0
    %v3047 = vrot.slane %v3043, 4
    %v3049 = vmul.f32 %v2895, %v3047
    %v3050 = vadd.f32 %v1807, %v3049
    %v3051 = vtanh.pop %v3050
    %v3052 = vsub.f32 1.0, %v2975
    %v3053 = vmul.f32 %v3052, %v3051
    %v3054 = vrot.slane %v2811, 7
    %v3056 = vmul.f32 %v2975, %v3054
    %v3057 = vadd.f32 %v3053, %v3056
    %v3059 = vrot.slane %v3057, 4
    %v3060 = vsel %vm72, %v3059, 0
    %3062 = vmatprep.subr.mxu0 0.0
    %3063 = vmatpush1.msra.mxu0 0.0
    %3064 = vmatprep.subr.mxu0 0.0
    %3065 = vmatpush1.msra.mxu0 0.0
    %3066 = vmatprep.subr.mxu0 0.0
    %3067 = vmatpush1.msra.mxu0 0.0
    %3068 = vmatprep.subr.mxu0 0.0
    %3069 = vmatpush1.msra.mxu0 0.0
    %3070 = vmatprep.subr.mxu0 0.0
    %3071 = vmatpush1.msra.mxu0 0.0
    %3072 = vmatprep.subr.mxu0 0.0
    %3073 = vmatpush1.msra.mxu0 0.0
    %3074 = vmatprep.subr.mxu0 0.0
    %3075 = vmatpush1.msra.mxu0 0.0
    %3076 = vmatprep.subr.mxu0 0.0
    %3077 = vmatpush1.msra.mxu0 0.0
    %3078 = vmatprep.subr.mxu0 0.0
    %3079 = vmatpush1.msra.mxu0 %v1819
    %3080 = vmatprep.subr.mxu0 0.0
    %3081 = vmatpush1.msra.mxu0 %v1818
    %3082 = vmatprep.subr.mxu0 0.0
    %3083 = vmatpush1.msra.mxu0 %v1817
    %3084 = vmatprep.subr.mxu0 0.0
    %3085 = vmatpush1.msra.mxu0 %v1816
    %3086 = vmatprep.subr.mxu0 0.0
    %3087 = vmatpush1.msra.mxu0 %v1815
    %3088 = vmatprep.subr.mxu0 0.0
    %3089 = vmatpush1.msra.mxu0 %v1814
    %3090 = vmatprep.subr.mxu0 0.0
    %3091 = vmatpush1.msra.mxu0 %v1813
    %3092 = vmatprep.subr.mxu0 0.0
    %3093 = vmatpush1.msra.mxu0 %v1812
    %3094 = vmatprep.subr.mxu0 0.0
    %3095 = vmatpush2.msra.mxu0 0.0
    %3096 = vmatprep.subr.mxu0 0.0
    %3097 = vmatpush2.msra.mxu0 0.0
    %3098 = vmatprep.subr.mxu0 0.0
    %3099 = vmatpush2.msra.mxu0 0.0
    %3100 = vmatprep.subr.mxu0 0.0
    %3101 = vmatpush2.msra.mxu0 0.0
    %3102 = vmatprep.subr.mxu0 0.0
    %3103 = vmatpush2.msra.mxu0 0.0
    %3104 = vmatprep.subr.mxu0 0.0
    %3105 = vmatpush2.msra.mxu0 0.0
    %3106 = vmatprep.subr.mxu0 0.0
    %3107 = vmatpush2.msra.mxu0 0.0
    %3108 = vmatprep.subr.mxu0 0.0
    %3109 = vmatpush2.msra.mxu0 0.0
    %3110 = vmatprep.subr.mxu0 0.0
    %3111 = vmatpush2.msra.mxu0 0.0
    %3112 = vmatprep.subr.mxu0 0.0
    %3113 = vmatpush2.msra.mxu0 0.0
    %3114 = vmatprep.subr.mxu0 0.0
    %3115 = vmatpush2.msra.mxu0 0.0
    %3116 = vmatprep.subr.mxu0 0.0
    %3117 = vmatpush2.msra.mxu0 0.0
    %3118 = vmatprep.subr.mxu0 0.0
    %3119 = vmatpush2.msra.mxu0 0.0
    %3120 = vmatprep.subr.mxu0 0.0
    %3121 = vmatpush2.msra.mxu0 0.0
    %3122 = vmatprep.subr.mxu0 0.0
    %3123 = vmatpush2.msra.mxu0 0.0
    %3124 = vmatprep.subr.mxu0 0.0
    %3125 = vmatpush2.msra.mxu0 0.0
    %3126 = vmatprep.mubr.f32.mxu0 0.0
    %3127 = vmatmul.mubr.f32.gmra.mxu0 %v3060
    %v3128 = vpop.f32.mrf.mxu0
    %v3129 = vadd.f32 0.0, %v3128
    %v3130 = vpop.f32.mrf.mxu0
    %3131 = vdwg.mxu0
    %v3133 = vrot.slane %v3129, 3
    %v3135 = vadd.f32 %v1653, %v3133
    %v3136 = vxor.u32 %v3135, 2147483648
    %v3137 = vmul.f32 %v3136, 1.442695
    %v3138 = vpow.pop %v3137
    %v3139 = vadd.f32 %v3138, 1.0
    %v3140 = vrcp.pop %v3139
    %v3141 = vmul.f32 1.0, %v3140
    %3142 = vmatprep.subr.mxu0 0.0
    %3143 = vmatpush1.msra.mxu0 0.0
    %3144 = vmatprep.subr.mxu0 0.0
    %3145 = vmatpush1.msra.mxu0 0.0
    %3146 = vmatprep.subr.mxu0 0.0
    %3147 = vmatpush1.msra.mxu0 0.0
    %3148 = vmatprep.subr.mxu0 0.0
    %3149 = vmatpush1.msra.mxu0 0.0
    %3150 = vmatprep.subr.mxu0 0.0
    %3151 = vmatpush1.msra.mxu0 0.0
    %3152 = vmatprep.subr.mxu0 0.0
    %3153 = vmatpush1.msra.mxu0 0.0
    %3154 = vmatprep.subr.mxu0 0.0
    %3155 = vmatpush1.msra.mxu0 0.0
    %3156 = vmatprep.subr.mxu0 0.0
    %3157 = vmatpush1.msra.mxu0 0.0
    %3158 = vmatprep.subr.mxu0 0.0
    %3159 = vmatpush1.msra.mxu0 %v1828
    %3160 = vmatprep.subr.mxu0 0.0
    %3161 = vmatpush1.msra.mxu0 %v1827
    %3162 = vmatprep.subr.mxu0 0.0
    %3163 = vmatpush1.msra.mxu0 %v1826
    %3164 = vmatprep.subr.mxu0 0.0
    %3165 = vmatpush1.msra.mxu0 %v1825
    %3166 = vmatprep.subr.mxu0 0.0
    %3167 = vmatpush1.msra.mxu0 %v1824
    %3168 = vmatprep.subr.mxu0 0.0
    %3169 = vmatpush1.msra.mxu0 %v1823
    %3170 = vmatprep.subr.mxu0 0.0
    %3171 = vmatpush1.msra.mxu0 %v1822
    %3172 = vmatprep.subr.mxu0 0.0
    %3173 = vmatpush1.msra.mxu0 %v1821
    %3174 = vmatprep.subr.mxu0 0.0
    %3175 = vmatpush2.msra.mxu0 0.0
    %3176 = vmatprep.subr.mxu0 0.0
    %3177 = vmatpush2.msra.mxu0 0.0
    %3178 = vmatprep.subr.mxu0 0.0
    %3179 = vmatpush2.msra.mxu0 0.0
    %3180 = vmatprep.subr.mxu0 0.0
    %3181 = vmatpush2.msra.mxu0 0.0
    %3182 = vmatprep.subr.mxu0 0.0
    %3183 = vmatpush2.msra.mxu0 0.0
    %3184 = vmatprep.subr.mxu0 0.0
    %3185 = vmatpush2.msra.mxu0 0.0
    %3186 = vmatprep.subr.mxu0 0.0
    %3187 = vmatpush2.msra.mxu0 0.0
    %3188 = vmatprep.subr.mxu0 0.0
    %3189 = vmatpush2.msra.mxu0 0.0
    %3190 = vmatprep.subr.mxu0 0.0
    %3191 = vmatpush2.msra.mxu0 0.0
    %3192 = vmatprep.subr.mxu0 0.0
    %3193 = vmatpush2.msra.mxu0 0.0
    %3194 = vmatprep.subr.mxu0 0.0
    %3195 = vmatpush2.msra.mxu0 0.0
    %3196 = vmatprep.subr.mxu0 0.0
    %3197 = vmatpush2.msra.mxu0 0.0
    %3198 = vmatprep.subr.mxu0 0.0
    %3199 = vmatpush2.msra.mxu0 0.0
    %3200 = vmatprep.subr.mxu0 0.0
    %3201 = vmatpush2.msra.mxu0 0.0
    %3202 = vmatprep.subr.mxu0 0.0
    %3203 = vmatpush2.msra.mxu0 0.0
    %3204 = vmatprep.subr.mxu0 0.0
    %3205 = vmatpush2.msra.mxu0 0.0
    %3206 = vmatprep.mubr.f32.mxu0 0.0
    %3207 = vmatmul.mubr.f32.gmra.mxu0 %v3060
    %v3208 = vpop.f32.mrf.mxu0
    %v3209 = vadd.f32 0.0, %v3208
    %v3210 = vpop.f32.mrf.mxu0
    %3211 = vdwg.mxu0
    %v3213 = vrot.slane %v3209, 3
    %v3215 = vadd.f32 %v1730, %v3213
    %v3216 = vxor.u32 %v3215, 2147483648
    %v3217 = vmul.f32 %v3216, 1.442695
    %v3218 = vpow.pop %v3217
    %v3219 = vadd.f32 %v3218, 1.0
    %v3220 = vrcp.pop %v3219
    %v3221 = vmul.f32 1.0, %v3220
    %3222 = vmatprep.subr.mxu0 0.0
    %3223 = vmatpush1.msra.mxu0 0.0
    %3224 = vmatprep.subr.mxu0 0.0
    %3225 = vmatpush1.msra.mxu0 0.0
    %3226 = vmatprep.subr.mxu0 0.0
    %3227 = vmatpush1.msra.mxu0 0.0
    %3228 = vmatprep.subr.mxu0 0.0
    %3229 = vmatpush1.msra.mxu0 0.0
    %3230 = vmatprep.subr.mxu0 0.0
    %3231 = vmatpush1.msra.mxu0 0.0
    %3232 = vmatprep.subr.mxu0 0.0
    %3233 = vmatpush1.msra.mxu0 0.0
    %3234 = vmatprep.subr.mxu0 0.0
    %3235 = vmatpush1.msra.mxu0 0.0
    %3236 = vmatprep.subr.mxu0 0.0
    %3237 = vmatpush1.msra.mxu0 0.0
    %3238 = vmatprep.subr.mxu0 0.0
    %3239 = vmatpush1.msra.mxu0 %v1837
    %3240 = vmatprep.subr.mxu0 0.0
    %3241 = vmatpush1.msra.mxu0 %v1836
    %3242 = vmatprep.subr.mxu0 0.0
    %3243 = vmatpush1.msra.mxu0 %v1835
    %3244 = vmatprep.subr.mxu0 0.0
    %3245 = vmatpush1.msra.mxu0 %v1834
    %3246 = vmatprep.subr.mxu0 0.0
    %3247 = vmatpush1.msra.mxu0 %v1833
    %3248 = vmatprep.subr.mxu0 0.0
    %3249 = vmatpush1.msra.mxu0 %v1832
    %3250 = vmatprep.subr.mxu0 0.0
    %3251 = vmatpush1.msra.mxu0 %v1831
    %3252 = vmatprep.subr.mxu0 0.0
    %3253 = vmatpush1.msra.mxu0 %v1830
    %3254 = vmatprep.subr.mxu0 0.0
    %3255 = vmatpush2.msra.mxu0 0.0
    %3256 = vmatprep.subr.mxu0 0.0
    %3257 = vmatpush2.msra.mxu0 0.0
    %3258 = vmatprep.subr.mxu0 0.0
    %3259 = vmatpush2.msra.mxu0 0.0
    %3260 = vmatprep.subr.mxu0 0.0
    %3261 = vmatpush2.msra.mxu0 0.0
    %3262 = vmatprep.subr.mxu0 0.0
    %3263 = vmatpush2.msra.mxu0 0.0
    %3264 = vmatprep.subr.mxu0 0.0
    %3265 = vmatpush2.msra.mxu0 0.0
    %3266 = vmatprep.subr.mxu0 0.0
    %3267 = vmatpush2.msra.mxu0 0.0
    %3268 = vmatprep.subr.mxu0 0.0
    %3269 = vmatpush2.msra.mxu0 0.0
    %3270 = vmatprep.subr.mxu0 0.0
    %3271 = vmatpush2.msra.mxu0 0.0
    %3272 = vmatprep.subr.mxu0 0.0
    %3273 = vmatpush2.msra.mxu0 0.0
    %3274 = vmatprep.subr.mxu0 0.0
    %3275 = vmatpush2.msra.mxu0 0.0
    %3276 = vmatprep.subr.mxu0 0.0
    %3277 = vmatpush2.msra.mxu0 0.0
    %3278 = vmatprep.subr.mxu0 0.0
    %3279 = vmatpush2.msra.mxu0 0.0
    %3280 = vmatprep.subr.mxu0 0.0
    %3281 = vmatpush2.msra.mxu0 0.0
    %3282 = vmatprep.subr.mxu0 0.0
    %3283 = vmatpush2.msra.mxu0 0.0
    %3284 = vmatprep.subr.mxu0 0.0
    %3285 = vmatpush2.msra.mxu0 0.0
    %3286 = vmatprep.mubr.f32.mxu0 0.0
    %3287 = vmatmul.mubr.f32.gmra.mxu0 %v3060
    %v3288 = vpop.f32.mrf.mxu0
    %v3289 = vadd.f32 %v1996, %v3288
    %v3290 = vpop.f32.mrf.mxu0
    %3291 = vdwg.mxu0
    %v3293 = vrot.slane %v3289, 3
    %v3295 = vmul.f32 %v3141, %v3293
    %v3296 = vadd.f32 %v1807, %v3295
    %v3297 = vtanh.pop %v3296
    %v3298 = vsub.f32 1.0, %v3221
    %v3299 = vmul.f32 %v3298, %v3297
    %v3300 = vrot.slane %v3057, 7
    %v3302 = vmul.f32 %v3221, %v3300
    %v3303 = vadd.f32 %v3299, %v3302
    %v3305 = vrot.slane %v3303, 5
    %v3306 = vsel %vm72, %v3305, 0
    %3308 = vmatprep.subr.mxu0 0.0
    %3309 = vmatpush1.msra.mxu0 0.0
    %3310 = vmatprep.subr.mxu0 0.0
    %3311 = vmatpush1.msra.mxu0 0.0
    %3312 = vmatprep.subr.mxu0 0.0
    %3313 = vmatpush1.msra.mxu0 0.0
    %3314 = vmatprep.subr.mxu0 0.0
    %3315 = vmatpush1.msra.mxu0 0.0
    %3316 = vmatprep.subr.mxu0 0.0
    %3317 = vmatpush1.msra.mxu0 0.0
    %3318 = vmatprep.subr.mxu0 0.0
    %3319 = vmatpush1.msra.mxu0 0.0
    %3320 = vmatprep.subr.mxu0 0.0
    %3321 = vmatpush1.msra.mxu0 0.0
    %3322 = vmatprep.subr.mxu0 0.0
    %3323 = vmatpush1.msra.mxu0 0.0
    %3324 = vmatprep.subr.mxu0 0.0
    %3325 = vmatpush1.msra.mxu0 %v1819
    %3326 = vmatprep.subr.mxu0 0.0
    %3327 = vmatpush1.msra.mxu0 %v1818
    %3328 = vmatprep.subr.mxu0 0.0
    %3329 = vmatpush1.msra.mxu0 %v1817
    %3330 = vmatprep.subr.mxu0 0.0
    %3331 = vmatpush1.msra.mxu0 %v1816
    %3332 = vmatprep.subr.mxu0 0.0
    %3333 = vmatpush1.msra.mxu0 %v1815
    %3334 = vmatprep.subr.mxu0 0.0
    %3335 = vmatpush1.msra.mxu0 %v1814
    %3336 = vmatprep.subr.mxu0 0.0
    %3337 = vmatpush1.msra.mxu0 %v1813
    %3338 = vmatprep.subr.mxu0 0.0
    %3339 = vmatpush1.msra.mxu0 %v1812
    %3340 = vmatprep.subr.mxu0 0.0
    %3341 = vmatpush2.msra.mxu0 0.0
    %3342 = vmatprep.subr.mxu0 0.0
    %3343 = vmatpush2.msra.mxu0 0.0
    %3344 = vmatprep.subr.mxu0 0.0
    %3345 = vmatpush2.msra.mxu0 0.0
    %3346 = vmatprep.subr.mxu0 0.0
    %3347 = vmatpush2.msra.mxu0 0.0
    %3348 = vmatprep.subr.mxu0 0.0
    %3349 = vmatpush2.msra.mxu0 0.0
    %3350 = vmatprep.subr.mxu0 0.0
    %3351 = vmatpush2.msra.mxu0 0.0
    %3352 = vmatprep.subr.mxu0 0.0
    %3353 = vmatpush2.msra.mxu0 0.0
    %3354 = vmatprep.subr.mxu0 0.0
    %3355 = vmatpush2.msra.mxu0 0.0
    %3356 = vmatprep.subr.mxu0 0.0
    %3357 = vmatpush2.msra.mxu0 0.0
    %3358 = vmatprep.subr.mxu0 0.0
    %3359 = vmatpush2.msra.mxu0 0.0
    %3360 = vmatprep.subr.mxu0 0.0
    %3361 = vmatpush2.msra.mxu0 0.0
    %3362 = vmatprep.subr.mxu0 0.0
    %3363 = vmatpush2.msra.mxu0 0.0
    %3364 = vmatprep.subr.mxu0 0.0
    %3365 = vmatpush2.msra.mxu0 0.0
    %3366 = vmatprep.subr.mxu0 0.0
    %3367 = vmatpush2.msra.mxu0 0.0
    %3368 = vmatprep.subr.mxu0 0.0
    %3369 = vmatpush2.msra.mxu0 0.0
    %3370 = vmatprep.subr.mxu0 0.0
    %3371 = vmatpush2.msra.mxu0 0.0
    %3372 = vmatprep.mubr.f32.mxu0 0.0
    %3373 = vmatmul.mubr.f32.gmra.mxu0 %v3306
    %v3374 = vpop.f32.mrf.mxu0
    %v3375 = vadd.f32 0.0, %v3374
    %v3376 = vpop.f32.mrf.mxu0
    %3377 = vdwg.mxu0
    %v3379 = vrot.slane %v3375, 2
    %v3381 = vadd.f32 %v1653, %v3379
    %v3382 = vxor.u32 %v3381, 2147483648
    %v3383 = vmul.f32 %v3382, 1.442695
    %v3384 = vpow.pop %v3383
    %v3385 = vadd.f32 %v3384, 1.0
    %v3386 = vrcp.pop %v3385
    %v3387 = vmul.f32 1.0, %v3386
    %3388 = vmatprep.subr.mxu0 0.0
    %3389 = vmatpush1.msra.mxu0 0.0
    %3390 = vmatprep.subr.mxu0 0.0
    %3391 = vmatpush1.msra.mxu0 0.0
    %3392 = vmatprep.subr.mxu0 0.0
    %3393 = vmatpush1.msra.mxu0 0.0
    %3394 = vmatprep.subr.mxu0 0.0
    %3395 = vmatpush1.msra.mxu0 0.0
    %3396 = vmatprep.subr.mxu0 0.0
    %3397 = vmatpush1.msra.mxu0 0.0
    %3398 = vmatprep.subr.mxu0 0.0
    %3399 = vmatpush1.msra.mxu0 0.0
    %3400 = vmatprep.subr.mxu0 0.0
    %3401 = vmatpush1.msra.mxu0 0.0
    %3402 = vmatprep.subr.mxu0 0.0
    %3403 = vmatpush1.msra.mxu0 0.0
    %3404 = vmatprep.subr.mxu0 0.0
    %3405 = vmatpush1.msra.mxu0 %v1828
    %3406 = vmatprep.subr.mxu0 0.0
    %3407 = vmatpush1.msra.mxu0 %v1827
    %3408 = vmatprep.subr.mxu0 0.0
    %3409 = vmatpush1.msra.mxu0 %v1826
    %3410 = vmatprep.subr.mxu0 0.0
    %3411 = vmatpush1.msra.mxu0 %v1825
    %3412 = vmatprep.subr.mxu0 0.0
    %3413 = vmatpush1.msra.mxu0 %v1824
    %3414 = vmatprep.subr.mxu0 0.0
    %3415 = vmatpush1.msra.mxu0 %v1823
    %3416 = vmatprep.subr.mxu0 0.0
    %3417 = vmatpush1.msra.mxu0 %v1822
    %3418 = vmatprep.subr.mxu0 0.0
    %3419 = vmatpush1.msra.mxu0 %v1821
    %3420 = vmatprep.subr.mxu0 0.0
    %3421 = vmatpush2.msra.mxu0 0.0
    %3422 = vmatprep.subr.mxu0 0.0
    %3423 = vmatpush2.msra.mxu0 0.0
    %3424 = vmatprep.subr.mxu0 0.0
    %3425 = vmatpush2.msra.mxu0 0.0
    %3426 = vmatprep.subr.mxu0 0.0
    %3427 = vmatpush2.msra.mxu0 0.0
    %3428 = vmatprep.subr.mxu0 0.0
    %3429 = vmatpush2.msra.mxu0 0.0
    %3430 = vmatprep.subr.mxu0 0.0
    %3431 = vmatpush2.msra.mxu0 0.0
    %3432 = vmatprep.subr.mxu0 0.0
    %3433 = vmatpush2.msra.mxu0 0.0
    %3434 = vmatprep.subr.mxu0 0.0
    %3435 = vmatpush2.msra.mxu0 0.0
    %3436 = vmatprep.subr.mxu0 0.0
    %3437 = vmatpush2.msra.mxu0 0.0
    %3438 = vmatprep.subr.mxu0 0.0
    %3439 = vmatpush2.msra.mxu0 0.0
    %3440 = vmatprep.subr.mxu0 0.0
    %3441 = vmatpush2.msra.mxu0 0.0
    %3442 = vmatprep.subr.mxu0 0.0
    %3443 = vmatpush2.msra.mxu0 0.0
    %3444 = vmatprep.subr.mxu0 0.0
    %3445 = vmatpush2.msra.mxu0 0.0
    %3446 = vmatprep.subr.mxu0 0.0
    %3447 = vmatpush2.msra.mxu0 0.0
    %3448 = vmatprep.subr.mxu0 0.0
    %3449 = vmatpush2.msra.mxu0 0.0
    %3450 = vmatprep.subr.mxu0 0.0
    %3451 = vmatpush2.msra.mxu0 0.0
    %3452 = vmatprep.mubr.f32.mxu0 0.0
    %3453 = vmatmul.mubr.f32.gmra.mxu0 %v3306
    %v3454 = vpop.f32.mrf.mxu0
    %v3455 = vadd.f32 0.0, %v3454
    %v3456 = vpop.f32.mrf.mxu0
    %3457 = vdwg.mxu0
    %v3459 = vrot.slane %v3455, 2
    %v3461 = vadd.f32 %v1730, %v3459
    %v3462 = vxor.u32 %v3461, 2147483648
    %v3463 = vmul.f32 %v3462, 1.442695
    %v3464 = vpow.pop %v3463
    %v3465 = vadd.f32 %v3464, 1.0
    %v3466 = vrcp.pop %v3465
    %v3467 = vmul.f32 1.0, %v3466
    %3468 = vmatprep.subr.mxu0 0.0
    %3469 = vmatpush1.msra.mxu0 0.0
    %3470 = vmatprep.subr.mxu0 0.0
    %3471 = vmatpush1.msra.mxu0 0.0
    %3472 = vmatprep.subr.mxu0 0.0
    %3473 = vmatpush1.msra.mxu0 0.0
    %3474 = vmatprep.subr.mxu0 0.0
    %3475 = vmatpush1.msra.mxu0 0.0
    %3476 = vmatprep.subr.mxu0 0.0
    %3477 = vmatpush1.msra.mxu0 0.0
    %3478 = vmatprep.subr.mxu0 0.0
    %3479 = vmatpush1.msra.mxu0 0.0
    %3480 = vmatprep.subr.mxu0 0.0
    %3481 = vmatpush1.msra.mxu0 0.0
    %3482 = vmatprep.subr.mxu0 0.0
    %3483 = vmatpush1.msra.mxu0 0.0
    %3484 = vmatprep.subr.mxu0 0.0
    %3485 = vmatpush1.msra.mxu0 %v1837
    %3486 = vmatprep.subr.mxu0 0.0
    %3487 = vmatpush1.msra.mxu0 %v1836
    %3488 = vmatprep.subr.mxu0 0.0
    %3489 = vmatpush1.msra.mxu0 %v1835
    %3490 = vmatprep.subr.mxu0 0.0
    %3491 = vmatpush1.msra.mxu0 %v1834
    %3492 = vmatprep.subr.mxu0 0.0
    %3493 = vmatpush1.msra.mxu0 %v1833
    %3494 = vmatprep.subr.mxu0 0.0
    %3495 = vmatpush1.msra.mxu0 %v1832
    %3496 = vmatprep.subr.mxu0 0.0
    %3497 = vmatpush1.msra.mxu0 %v1831
    %3498 = vmatprep.subr.mxu0 0.0
    %3499 = vmatpush1.msra.mxu0 %v1830
    %3500 = vmatprep.subr.mxu0 0.0
    %3501 = vmatpush2.msra.mxu0 0.0
    %3502 = vmatprep.subr.mxu0 0.0
    %3503 = vmatpush2.msra.mxu0 0.0
    %3504 = vmatprep.subr.mxu0 0.0
    %3505 = vmatpush2.msra.mxu0 0.0
    %3506 = vmatprep.subr.mxu0 0.0
    %3507 = vmatpush2.msra.mxu0 0.0
    %3508 = vmatprep.subr.mxu0 0.0
    %3509 = vmatpush2.msra.mxu0 0.0
    %3510 = vmatprep.subr.mxu0 0.0
    %3511 = vmatpush2.msra.mxu0 0.0
    %3512 = vmatprep.subr.mxu0 0.0
    %3513 = vmatpush2.msra.mxu0 0.0
    %3514 = vmatprep.subr.mxu0 0.0
    %3515 = vmatpush2.msra.mxu0 0.0
    %3516 = vmatprep.subr.mxu0 0.0
    %3517 = vmatpush2.msra.mxu0 0.0
    %3518 = vmatprep.subr.mxu0 0.0
    %3519 = vmatpush2.msra.mxu0 0.0
    %3520 = vmatprep.subr.mxu0 0.0
    %3521 = vmatpush2.msra.mxu0 0.0
    %3522 = vmatprep.subr.mxu0 0.0
    %3523 = vmatpush2.msra.mxu0 0.0
    %3524 = vmatprep.subr.mxu0 0.0
    %3525 = vmatpush2.msra.mxu0 0.0
    %3526 = vmatprep.subr.mxu0 0.0
    %3527 = vmatpush2.msra.mxu0 0.0
    %3528 = vmatprep.subr.mxu0 0.0
    %3529 = vmatpush2.msra.mxu0 0.0
    %3530 = vmatprep.subr.mxu0 0.0
    %3531 = vmatpush2.msra.mxu0 0.0
    %3532 = vmatprep.mubr.f32.mxu0 0.0
    %3533 = vmatmul.mubr.f32.gmra.mxu0 %v3306
    %v3534 = vpop.f32.mrf.mxu0
    %v3535 = vadd.f32 %v1996, %v3534
    %v3536 = vpop.f32.mrf.mxu0
    %3537 = vdwg.mxu0
    %v3539 = vrot.slane %v3535, 2
    %v3541 = vmul.f32 %v3387, %v3539
    %v3542 = vadd.f32 %v1807, %v3541
    %v3543 = vtanh.pop %v3542
    %v3544 = vsub.f32 1.0, %v3467
    %v3545 = vmul.f32 %v3544, %v3543
    %v3546 = vrot.slane %v3303, 7
    %v3548 = vmul.f32 %v3467, %v3546
    %v3549 = vadd.f32 %v3545, %v3548
    %v3551 = vrot.slane %v3549, 6
    %v3552 = vsel %vm72, %v3551, 0
    %3554 = vmatprep.subr.mxu0 0.0
    %3555 = vmatpush1.msra.mxu0 0.0
    %3556 = vmatprep.subr.mxu0 0.0
    %3557 = vmatpush1.msra.mxu0 0.0
    %3558 = vmatprep.subr.mxu0 0.0
    %3559 = vmatpush1.msra.mxu0 0.0
    %3560 = vmatprep.subr.mxu0 0.0
    %3561 = vmatpush1.msra.mxu0 0.0
    %3562 = vmatprep.subr.mxu0 0.0
    %3563 = vmatpush1.msra.mxu0 0.0
    %3564 = vmatprep.subr.mxu0 0.0
    %3565 = vmatpush1.msra.mxu0 0.0
    %3566 = vmatprep.subr.mxu0 0.0
    %3567 = vmatpush1.msra.mxu0 0.0
    %3568 = vmatprep.subr.mxu0 0.0
    %3569 = vmatpush1.msra.mxu0 0.0
    %3570 = vmatprep.subr.mxu0 0.0
    %3571 = vmatpush1.msra.mxu0 %v1819
    %3572 = vmatprep.subr.mxu0 0.0
    %3573 = vmatpush1.msra.mxu0 %v1818
    %3574 = vmatprep.subr.mxu0 0.0
    %3575 = vmatpush1.msra.mxu0 %v1817
    %3576 = vmatprep.subr.mxu0 0.0
    %3577 = vmatpush1.msra.mxu0 %v1816
    %3578 = vmatprep.subr.mxu0 0.0
    %3579 = vmatpush1.msra.mxu0 %v1815
    %3580 = vmatprep.subr.mxu0 0.0
    %3581 = vmatpush1.msra.mxu0 %v1814
    %3582 = vmatprep.subr.mxu0 0.0
    %3583 = vmatpush1.msra.mxu0 %v1813
    %3584 = vmatprep.subr.mxu0 0.0
    %3585 = vmatpush1.msra.mxu0 %v1812
    %3586 = vmatprep.subr.mxu0 0.0
    %3587 = vmatpush2.msra.mxu0 0.0
    %3588 = vmatprep.subr.mxu0 0.0
    %3589 = vmatpush2.msra.mxu0 0.0
    %3590 = vmatprep.subr.mxu0 0.0
    %3591 = vmatpush2.msra.mxu0 0.0
    %3592 = vmatprep.subr.mxu0 0.0
    %3593 = vmatpush2.msra.mxu0 0.0
    %3594 = vmatprep.subr.mxu0 0.0
    %3595 = vmatpush2.msra.mxu0 0.0
    %3596 = vmatprep.subr.mxu0 0.0
    %3597 = vmatpush2.msra.mxu0 0.0
    %3598 = vmatprep.subr.mxu0 0.0
    %3599 = vmatpush2.msra.mxu0 0.0
    %3600 = vmatprep.subr.mxu0 0.0
    %3601 = vmatpush2.msra.mxu0 0.0
    %3602 = vmatprep.subr.mxu0 0.0
    %3603 = vmatpush2.msra.mxu0 0.0
    %3604 = vmatprep.subr.mxu0 0.0
    %3605 = vmatpush2.msra.mxu0 0.0
    %3606 = vmatprep.subr.mxu0 0.0
    %3607 = vmatpush2.msra.mxu0 0.0
    %3608 = vmatprep.subr.mxu0 0.0
    %3609 = vmatpush2.msra.mxu0 0.0
    %3610 = vmatprep.subr.mxu0 0.0
    %3611 = vmatpush2.msra.mxu0 0.0
    %3612 = vmatprep.subr.mxu0 0.0
    %3613 = vmatpush2.msra.mxu0 0.0
    %3614 = vmatprep.subr.mxu0 0.0
    %3615 = vmatpush2.msra.mxu0 0.0
    %3616 = vmatprep.subr.mxu0 0.0
    %3617 = vmatpush2.msra.mxu0 0.0
    %3618 = vmatprep.mubr.f32.mxu0 0.0
    %3619 = vmatmul.mubr.f32.gmra.mxu0 %v3552
    %v3620 = vpop.f32.mrf.mxu0
    %v3621 = vadd.f32 0.0, %v3620
    %v3622 = vpop.f32.mrf.mxu0
    %3623 = vdwg.mxu0
    %v3625 = vrot.slane %v3621, 1
    %v3627 = vadd.f32 %v1653, %v3625
    %v3628 = vxor.u32 %v3627, 2147483648
    %v3629 = vmul.f32 %v3628, 1.442695
    %v3630 = vpow.pop %v3629
    %v3631 = vadd.f32 %v3630, 1.0
    %v3632 = vrcp.pop %v3631
    %v3633 = vmul.f32 1.0, %v3632
    %3634 = vmatprep.subr.mxu0 0.0
    %3635 = vmatpush1.msra.mxu0 0.0
    %3636 = vmatprep.subr.mxu0 0.0
    %3637 = vmatpush1.msra.mxu0 0.0
    %3638 = vmatprep.subr.mxu0 0.0
    %3639 = vmatpush1.msra.mxu0 0.0
    %3640 = vmatprep.subr.mxu0 0.0
    %3641 = vmatpush1.msra.mxu0 0.0
    %3642 = vmatprep.subr.mxu0 0.0
    %3643 = vmatpush1.msra.mxu0 0.0
    %3644 = vmatprep.subr.mxu0 0.0
    %3645 = vmatpush1.msra.mxu0 0.0
    %3646 = vmatprep.subr.mxu0 0.0
    %3647 = vmatpush1.msra.mxu0 0.0
    %3648 = vmatprep.subr.mxu0 0.0
    %3649 = vmatpush1.msra.mxu0 0.0
    %3650 = vmatprep.subr.mxu0 0.0
    %3651 = vmatpush1.msra.mxu0 %v1828
    %3652 = vmatprep.subr.mxu0 0.0
    %3653 = vmatpush1.msra.mxu0 %v1827
    %3654 = vmatprep.subr.mxu0 0.0
    %3655 = vmatpush1.msra.mxu0 %v1826
    %3656 = vmatprep.subr.mxu0 0.0
    %3657 = vmatpush1.msra.mxu0 %v1825
    %3658 = vmatprep.subr.mxu0 0.0
    %3659 = vmatpush1.msra.mxu0 %v1824
    %3660 = vmatprep.subr.mxu0 0.0
    %3661 = vmatpush1.msra.mxu0 %v1823
    %3662 = vmatprep.subr.mxu0 0.0
    %3663 = vmatpush1.msra.mxu0 %v1822
    %3664 = vmatprep.subr.mxu0 0.0
    %3665 = vmatpush1.msra.mxu0 %v1821
    %3666 = vmatprep.subr.mxu0 0.0
    %3667 = vmatpush2.msra.mxu0 0.0
    %3668 = vmatprep.subr.mxu0 0.0
    %3669 = vmatpush2.msra.mxu0 0.0
    %3670 = vmatprep.subr.mxu0 0.0
    %3671 = vmatpush2.msra.mxu0 0.0
    %3672 = vmatprep.subr.mxu0 0.0
    %3673 = vmatpush2.msra.mxu0 0.0
    %3674 = vmatprep.subr.mxu0 0.0
    %3675 = vmatpush2.msra.mxu0 0.0
    %3676 = vmatprep.subr.mxu0 0.0
    %3677 = vmatpush2.msra.mxu0 0.0
    %3678 = vmatprep.subr.mxu0 0.0
    %3679 = vmatpush2.msra.mxu0 0.0
    %3680 = vmatprep.subr.mxu0 0.0
    %3681 = vmatpush2.msra.mxu0 0.0
    %3682 = vmatprep.subr.mxu0 0.0
    %3683 = vmatpush2.msra.mxu0 0.0
    %3684 = vmatprep.subr.mxu0 0.0
    %3685 = vmatpush2.msra.mxu0 0.0
    %3686 = vmatprep.subr.mxu0 0.0
    %3687 = vmatpush2.msra.mxu0 0.0
    %3688 = vmatprep.subr.mxu0 0.0
    %3689 = vmatpush2.msra.mxu0 0.0
    %3690 = vmatprep.subr.mxu0 0.0
    %3691 = vmatpush2.msra.mxu0 0.0
    %3692 = vmatprep.subr.mxu0 0.0
    %3693 = vmatpush2.msra.mxu0 0.0
    %3694 = vmatprep.subr.mxu0 0.0
    %3695 = vmatpush2.msra.mxu0 0.0
    %3696 = vmatprep.subr.mxu0 0.0
    %3697 = vmatpush2.msra.mxu0 0.0
    %3698 = vmatprep.mubr.f32.mxu0 0.0
    %3699 = vmatmul.mubr.f32.gmra.mxu0 %v3552
    %v3700 = vpop.f32.mrf.mxu0
    %v3701 = vadd.f32 0.0, %v3700
    %v3702 = vpop.f32.mrf.mxu0
    %3703 = vdwg.mxu0
    %v3705 = vrot.slane %v3701, 1
    %v3707 = vadd.f32 %v1730, %v3705
    %v3708 = vxor.u32 %v3707, 2147483648
    %v3709 = vmul.f32 %v3708, 1.442695
    %v3710 = vpow.pop %v3709
    %v3711 = vadd.f32 %v3710, 1.0
    %v3712 = vrcp.pop %v3711
    %v3713 = vmul.f32 1.0, %v3712
    %3714 = vmatprep.subr.mxu0 0.0
    %3715 = vmatpush1.msra.mxu0 0.0
    %3716 = vmatprep.subr.mxu0 0.0
    %3717 = vmatpush1.msra.mxu0 0.0
    %3718 = vmatprep.subr.mxu0 0.0
    %3719 = vmatpush1.msra.mxu0 0.0
    %3720 = vmatprep.subr.mxu0 0.0
    %3721 = vmatpush1.msra.mxu0 0.0
    %3722 = vmatprep.subr.mxu0 0.0
    %3723 = vmatpush1.msra.mxu0 0.0
    %3724 = vmatprep.subr.mxu0 0.0
    %3725 = vmatpush1.msra.mxu0 0.0
    %3726 = vmatprep.subr.mxu0 0.0
    %3727 = vmatpush1.msra.mxu0 0.0
    %3728 = vmatprep.subr.mxu0 0.0
    %3729 = vmatpush1.msra.mxu0 0.0
    %3730 = vmatprep.subr.mxu0 0.0
    %3731 = vmatpush1.msra.mxu0 %v1837
    %3732 = vmatprep.subr.mxu0 0.0
    %3733 = vmatpush1.msra.mxu0 %v1836
    %3734 = vmatprep.subr.mxu0 0.0
    %3735 = vmatpush1.msra.mxu0 %v1835
    %3736 = vmatprep.subr.mxu0 0.0
    %3737 = vmatpush1.msra.mxu0 %v1834
    %3738 = vmatprep.subr.mxu0 0.0
    %3739 = vmatpush1.msra.mxu0 %v1833
    %3740 = vmatprep.subr.mxu0 0.0
    %3741 = vmatpush1.msra.mxu0 %v1832
    %3742 = vmatprep.subr.mxu0 0.0
    %3743 = vmatpush1.msra.mxu0 %v1831
    %3744 = vmatprep.subr.mxu0 0.0
    %3745 = vmatpush1.msra.mxu0 %v1830
    %3746 = vmatprep.subr.mxu0 0.0
    %3747 = vmatpush2.msra.mxu0 0.0
    %3748 = vmatprep.subr.mxu0 0.0
    %3749 = vmatpush2.msra.mxu0 0.0
    %3750 = vmatprep.subr.mxu0 0.0
    %3751 = vmatpush2.msra.mxu0 0.0
    %3752 = vmatprep.subr.mxu0 0.0
    %3753 = vmatpush2.msra.mxu0 0.0
    %3754 = vmatprep.subr.mxu0 0.0
    %3755 = vmatpush2.msra.mxu0 0.0
    %3756 = vmatprep.subr.mxu0 0.0
    %3757 = vmatpush2.msra.mxu0 0.0
    %3758 = vmatprep.subr.mxu0 0.0
    %3759 = vmatpush2.msra.mxu0 0.0
    %3760 = vmatprep.subr.mxu0 0.0
    %3761 = vmatpush2.msra.mxu0 0.0
    %3762 = vmatprep.subr.mxu0 0.0
    %3763 = vmatpush2.msra.mxu0 0.0
    %3764 = vmatprep.subr.mxu0 0.0
    %3765 = vmatpush2.msra.mxu0 0.0
    %3766 = vmatprep.subr.mxu0 0.0
    %3767 = vmatpush2.msra.mxu0 0.0
    %3768 = vmatprep.subr.mxu0 0.0
    %3769 = vmatpush2.msra.mxu0 0.0
    %3770 = vmatprep.subr.mxu0 0.0
    %3771 = vmatpush2.msra.mxu0 0.0
    %3772 = vmatprep.subr.mxu0 0.0
    %3773 = vmatpush2.msra.mxu0 0.0
    %3774 = vmatprep.subr.mxu0 0.0
    %3775 = vmatpush2.msra.mxu0 0.0
    %3776 = vmatprep.subr.mxu0 0.0
    %3777 = vmatpush2.msra.mxu0 0.0
    %3778 = vmatprep.mubr.f32.mxu0 0.0
    %3779 = vmatmul.mubr.f32.gmra.mxu0 %v3552
    %v3780 = vpop.f32.mrf.mxu0
    %v3781 = vadd.f32 %v1996, %v3780
    %v3782 = vpop.f32.mrf.mxu0
    %3783 = vdwg.mxu0
    %v3785 = vrot.slane %v3781, 1
    %v3787 = vmul.f32 %v3633, %v3785
    %v3788 = vadd.f32 %v1807, %v3787
    %v3789 = vtanh.pop %v3788
    %v3790 = vsub.f32 1.0, %v3713
    %v3791 = vmul.f32 %v3790, %v3789
    %v3792 = vrot.slane %v3549, 7
    %v3794 = vmul.f32 %v3713, %v3792
    %v3795 = vadd.f32 %v3791, %v3794
    %v3796 = vld [vmem:[%s11] sm:$0xff]
    %v3797 = vld [vmem:[%s11 + $0x8] sm:$0xff]
    %v3798 = vld [vmem:[%s11 + $0x10] sm:$0xff]
    %v3799 = vld [vmem:[%s11 + $0x18] sm:$0xff]
    %v3800 = vld [vmem:[%s11 + $0x20] sm:$0xff]
    %v3801 = vld [vmem:[%s11 + $0x28] sm:$0xff]
    %v3802 = vld [vmem:[%s11 + $0x30] sm:$0xff]
    %v3803 = vld [vmem:[%s11 + $0x38] sm:$0xff]
    %v3804 = vld [vmem:[%s12] sm:$0x1]
    %v3806 = vrot.slane %v3795, 7
    %v3807 = vsel %vm72, %v3806, 0
    %3809 = vmatprep.subr.mxu0 0.0
    %3810 = vmatpush1.msra.mxu0 0.0
    %3811 = vmatprep.subr.mxu0 0.0
    %3812 = vmatpush1.msra.mxu0 0.0
    %3813 = vmatprep.subr.mxu0 0.0
    %3814 = vmatpush1.msra.mxu0 0.0
    %3815 = vmatprep.subr.mxu0 0.0
    %3816 = vmatpush1.msra.mxu0 0.0
    %3817 = vmatprep.subr.mxu0 0.0
    %3818 = vmatpush1.msra.mxu0 0.0
    %3819 = vmatprep.subr.mxu0 0.0
    %3820 = vmatpush1.msra.mxu0 0.0
    %3821 = vmatprep.subr.mxu0 0.0
    %3822 = vmatpush1.msra.mxu0 0.0
    %3823 = vmatprep.subr.mxu0 0.0
    %3824 = vmatpush1.msra.mxu0 0.0
    %3825 = vmatprep.subr.mxu0 0.0
    %3826 = vmatpush1.msra.mxu0 %v3803
    %3827 = vmatprep.subr.mxu0 0.0
    %3828 = vmatpush1.msra.mxu0 %v3802
    %3829 = vmatprep.subr.mxu0 0.0
    %3830 = vmatpush1.msra.mxu0 %v3801
    %3831 = vmatprep.subr.mxu0 0.0
    %3832 = vmatpush1.msra.mxu0 %v3800
    %3833 = vmatprep.subr.mxu0 0.0
    %3834 = vmatpush1.msra.mxu0 %v3799
    %3835 = vmatprep.subr.mxu0 0.0
    %3836 = vmatpush1.msra.mxu0 %v3798
    %3837 = vmatprep.subr.mxu0 0.0
    %3838 = vmatpush1.msra.mxu0 %v3797
    %3839 = vmatprep.subr.mxu0 0.0
    %3840 = vmatpush1.msra.mxu0 %v3796
    %3841 = vmatprep.subr.mxu0 0.0
    %3842 = vmatpush2.msra.mxu0 0.0
    %3843 = vmatprep.subr.mxu0 0.0
    %3844 = vmatpush2.msra.mxu0 0.0
    %3845 = vmatprep.subr.mxu0 0.0
    %3846 = vmatpush2.msra.mxu0 0.0
    %3847 = vmatprep.subr.mxu0 0.0
    %3848 = vmatpush2.msra.mxu0 0.0
    %3849 = vmatprep.subr.mxu0 0.0
    %3850 = vmatpush2.msra.mxu0 0.0
    %3851 = vmatprep.subr.mxu0 0.0
    %3852 = vmatpush2.msra.mxu0 0.0
    %3853 = vmatprep.subr.mxu0 0.0
    %3854 = vmatpush2.msra.mxu0 0.0
    %3855 = vmatprep.subr.mxu0 0.0
    %3856 = vmatpush2.msra.mxu0 0.0
    %3857 = vmatprep.subr.mxu0 0.0
    %3858 = vmatpush2.msra.mxu0 0.0
    %3859 = vmatprep.subr.mxu0 0.0
    %3860 = vmatpush2.msra.mxu0 0.0
    %3861 = vmatprep.subr.mxu0 0.0
    %3862 = vmatpush2.msra.mxu0 0.0
    %3863 = vmatprep.subr.mxu0 0.0
    %3864 = vmatpush2.msra.mxu0 0.0
    %3865 = vmatprep.subr.mxu0 0.0
    %3866 = vmatpush2.msra.mxu0 0.0
    %3867 = vmatprep.subr.mxu0 0.0
    %3868 = vmatpush2.msra.mxu0 0.0
    %3869 = vmatprep.subr.mxu0 0.0
    %3870 = vmatpush2.msra.mxu0 0.0
    %3871 = vmatprep.subr.mxu0 0.0
    %3872 = vmatpush2.msra.mxu0 0.0
    %3873 = vmatprep.mubr.f32.mxu0 0.0
    %3874 = vmatmul.mubr.f32.gmra.mxu0 %v3807
    %v3875 = vpop.f32.mrf.mxu0
    %v3876 = vadd.f32 %v3804, %v3875
    %v3877 = vpop.f32.mrf.mxu0
    %3878 = vdwg.mxu0
    %vm3879 = vcmask 122880
    %3880 = vst.msk [vmem:[%s13] sm:$0x1] %vm3879, %v3876
    // Predicated region
    $region58: #{state_tracker_transformer_forward.1} parent=1 // pred_check
      _
    $region59: #{state_tracker_transformer_forward.1} parent=1 // pred_check_branch
      %3882 = sbr.rel (0) target = $region61
    $region60: #{state_tracker_transformer_forward.1} parent=1 // pred_region
      _
    $region61: #{state_tracker_transformer_forward.1} parent=1 // pred_fallthru
      _
    // Predicated region
    $region62: #{state_tracker_transformer_forward.1} parent=1 // pred_check
      _
    $region63: #{state_tracker_transformer_forward.1} parent=1 // pred_check_branch
      %3884 = sbr.rel (0) target = $region65
    $region64: #{state_tracker_transformer_forward.1} parent=1 // pred_region
      _
    $region65: #{state_tracker_transformer_forward.1} parent=1 // pred_fallthru
      _
    %3885 = vsyncpa [#allocation3], 1

</llo_original>
